<compile_context>
chip_gen: v5e
topology: v5e:2x2
jax: 0.10.0
libtpu: 0.0.40
codegen_flags: <defaults>
</compile_context>

<pallas_src>
import functools
import math

import numpy as np
import jax
import jax.numpy as jnp
from jax.experimental import pallas as pl
from jax.experimental.pallas import tpu as pltpu

D_MODEL = 32
N_HEAD = 4
DIM_FF = 64
NUM_LAYERS = 2
EPS = 1e-5


# --------------------------- weight slab layout ----------------------------- #

def _build_layout(L, D, F, H):
    """Row layout of the single (rows, 128) f32 weight slab.

    Matrices (row counts are multiples of 8 -> tile-aligned) come first, then
    all 1..H-row vectors packed densely.  Returns ({name: (row0, nrows, ncols)},
    total_rows)."""
    dh = D // H
    layout = {}
    cursor = 0

    def add(name, nrows, ncols):
        nonlocal cursor
        layout[name] = (cursor, nrows, ncols)
        cursor += nrows

    # matrices
    for l in range(L):
        for m in range(2):
            add(f'wq_{l}_{m}', D, D)     # (out,in); head h = rows [h*dh:(h+1)*dh]
            add(f'wk_{l}_{m}', D, D)
            add(f'wv_{l}_{m}', D, D)
            add(f'woT_{l}_{m}', D, D)    # wo.T; head h = rows [h*dh:(h+1)*dh]
        add(f'fw1_{l}', D, F)            # w1.T
        add(f'fw2_{l}', F, D)            # w2.T
    # small vectors (packed densely, unaligned single-row loads are fine)
    for l in range(L):
        for m in range(2):
            add(f'bq_{l}_{m}', H, dh)    # per-head rows, scale folded in
            add(f'bo_{l}_{m}', 1, D)     # includes the bv @ wo.T fold
        add(f'fb1_{l}', 1, F)
        add(f'fb2_{l}', 1, D)
        for n in range(3):
            add(f'lng_{l}_{n}', 1, D)
            add(f'lnb_{l}_{n}', 1, D)
    add('gf', 1, D)
    add('bf', 1, D)
    total = ((cursor + 7) // 8) * 8
    return layout, total


def prep_params(params, H=N_HEAD):
    """Pack all PyTorch-convention params (weight (out,in), y = x@W.T + b) into
    ONE 128-lane f32 slab with static row offsets; fold 1/sqrt(dh) into wq/bq,
    drop bk (softmax-shift invariant) and fold bv into bo (exact)."""
    L = len(params['layers'])
    D = int(np.asarray(params['norm']['g']).shape[-1])
    F = int(np.asarray(params['layers'][0]['ffn']['w1']).shape[0])
    dh = D // H
    scale = 1.0 / math.sqrt(dh)
    layout, total_rows = _build_layout(L, D, F, H)
    slab = np.zeros((total_rows, 128), np.float32)

    def put(name, arr):
        r0, nr, nc = layout[name]
        slab[r0:r0 + nr, :nc] = np.asarray(arr, np.float32).reshape(nr, nc)

    for l, lp in enumerate(params['layers']):
        for m, key in enumerate(('attn_high', 'attn_low')):
            p = {k: np.asarray(v, np.float32) for k, v in lp[key].items()}
            put(f'wq_{l}_{m}', p['wq'] * scale)          # scale folded in
            put(f'wk_{l}_{m}', p['wk'])
            put(f'wv_{l}_{m}', p['wv'])
            put(f'woT_{l}_{m}', p['wo'].T)
            put(f'bq_{l}_{m}', (p['bq'] * scale).reshape(H, dh))
            # bk shifts every logit row by a constant -> cancels in softmax (exact, dropped).
            # bv passes through softmax rows summing to 1 -> contributes exactly bv @ wo.T.
            put(f'bo_{l}_{m}', p['bo'].reshape(1, D) + p['bv'].reshape(1, D) @ p['wo'].T)
        f = {k: np.asarray(v, np.float32) for k, v in lp['ffn'].items()}
        put(f'fw1_{l}', f['w1'].T)
        put(f'fw2_{l}', f['w2'].T)
        put(f'fb1_{l}', f['b1'])
        put(f'fb2_{l}', f['b2'])
        for n, nk in enumerate(('norm1', 'norm2', 'norm3')):
            put(f'lng_{l}_{n}', lp[nk]['g'])
            put(f'lnb_{l}_{n}', lp[nk]['b'])
    put('gf', params['norm']['g'])
    put('bf', params['norm']['b'])
    return jnp.asarray(slab), layout


# ------------------------------ fused kernel ------------------------------- #

def _decoder_kernel(act_ref, w_ref, out_ref, ws_ref, *, layout, B, Q, S, D, H, L):
    """Whole decoder stack, whole batch, one invocation.

    act_ref: (2*B*Q + 3*B*S, D) row-stacked [tgt, qpos, hm, lm, pos] (batch-major rows)
    w_ref:   (rows, 128) weight slab (see _build_layout)
    out_ref: (B*Q, D) final decoder state
    ws_ref:  (L, B, Q, S) head-averaged high-memory attention per layer
    """
    dh = D // H
    NQ, NS = B * Q, B * S

    def blk(name, row=0, nrows=None):
        r0, nr, nc = layout[name]
        n = nr if nrows is None else nrows
        return w_ref[r0 + row: r0 + row + n, :nc]

    # --- unpack the activation slab (static, tile-aligned row slices) ---
    tgt = act_ref[0:NQ, :]                                   # (B*Q, D)
    qpos = act_ref[NQ:2 * NQ, :]                             # (B*Q, D)
    hm = act_ref[2 * NQ:2 * NQ + NS, :]                      # (B*S, D)
    lm = act_ref[2 * NQ + NS:2 * NQ + 2 * NS, :]             # (B*S, D)
    pos = act_ref[2 * NQ + 2 * NS:2 * NQ + 3 * NS, :]        # (B*S, D)

    # loop-invariant key inputs, computed once for the whole layer stack
    hm_k = hm + pos
    lm_k = lm + pos

    def layernorm(z, g, b):
        mu = jnp.mean(z, axis=-1, keepdims=True)
        var = jnp.mean((z - mu) ** 2, axis=-1, keepdims=True)
        return (z - mu) * jax.lax.rsqrt(var + EPS) * g + b

    def attention(l, m, q_in, k_src, v_src, collect_ws):
        tag = f'{l}_{m}'
        out_acc = jnp.zeros((NQ, D), jnp.float32)
        ws_acc = jnp.zeros((B, Q, S), jnp.float32)
        cdims = (((1,), (1,)), ((), ()))   # contract model dim with dim 1 of (out,in) weight
        for h in range(H):                 # static head loop; per-head weights are
            wq_h = blk('wq_' + tag, h * dh, dh)     # row slices -> no lane slicing
            wk_h = blk('wk_' + tag, h * dh, dh)
            wv_h = blk('wv_' + tag, h * dh, dh)
            wo_h = blk('woT_' + tag, h * dh, dh)    # (dh, D)
            bq_h = blk('bq_' + tag, h, 1)           # (1, dh)

            q_h = jax.lax.dot_general(q_in, wq_h, cdims,
                                      preferred_element_type=jnp.float32) + bq_h
            k_h = jax.lax.dot_general(k_src, wk_h, cdims,
                                      preferred_element_type=jnp.float32)
            v_h = jax.lax.dot_general(v_src, wv_h, cdims,
                                      preferred_element_type=jnp.float32)

            # leading-dim splits only (layout-free): (B*N, dh) -> (B, N, dh)
            q3 = q_h.reshape(B, Q, dh)
            k3 = k_h.reshape(B, S, dh)
            v3 = v_h.reshape(B, S, dh)

            s = jnp.einsum('bqd,bkd->bqk', q3, k3,
                           preferred_element_type=jnp.float32)
            s = s - jnp.max(s, axis=-1, keepdims=True)
            e = jnp.exp(s)
            p = e * pl.reciprocal(jnp.sum(e, axis=-1, keepdims=True), approx=True)
            if collect_ws:
                ws_acc = ws_acc + p
            ctx = jnp.einsum('bqk,bkd->bqd', p, v3,
                             preferred_element_type=jnp.float32)
            # project each head's context through its slice of W_o directly
            out_acc = out_acc + jnp.dot(ctx.reshape(NQ, dh), wo_h,
                                        preferred_element_type=jnp.float32)
        out = out_acc + blk('bo_' + tag)            # bo already holds the bv fold
        return out, ws_acc * (1.0 / H)

    x = tgt                                          # running decoder state (B*Q, D)
    for l in range(L):                               # static unroll over layers
        # cross-attention over high-resolution memory (attention map kept)
        t2, ws = attention(l, 0, x + qpos, hm_k, hm, True)
        ws_ref[l] = ws
        x = layernorm(x + t2, blk(f'lng_{l}_0'), blk(f'lnb_{l}_0'))
        # cross-attention over low-resolution memory
        t2, _ = attention(l, 1, x + qpos, lm_k, lm, False)
        x = layernorm(x + t2, blk(f'lng_{l}_1'), blk(f'lnb_{l}_1'))
        # feed-forward
        h1 = jnp.maximum(jnp.dot(x, blk(f'fw1_{l}'),
                                 preferred_element_type=jnp.float32) + blk(f'fb1_{l}'), 0.0)
        t2 = jnp.dot(h1, blk(f'fw2_{l}'),
                     preferred_element_type=jnp.float32) + blk(f'fb2_{l}')
        x = layernorm(x + t2, blk(f'lng_{l}_2'), blk(f'lnb_{l}_2'))

    # final norm (self.norm) -- plain LayerNorm
    out_ref[...] = layernorm(x, blk('gf'), blk('bf')).astype(out_ref.dtype)


# ------------------------------ Pallas wrapper ------------------------------ #

def multi_transformer_decoder(tgt, high_memory, low_memory, pos, query_pos, params):
    """tgt: (Q, B, D); memories/pos: (S, B, D); query_pos: (Q, B, D).
    Returns (output (Q, B, D), atten_layers: list of (B, Q, S)).
    The whole decoder stack + whole batch is ONE pallas_call with grid=(1,)."""
    Qn, B, Dn = tgt.shape
    Sn = high_memory.shape[0]
    L = len(params['layers'])

    slab, layout = prep_params(params)               # one (rows, 128) weight slab

    # Pack the five activation inputs into ONE row-stacked slab (2 input DMAs
    # total instead of 21); splits in-kernel are tile-aligned row slices.
    to_flat = lambda a: jnp.transpose(a, (1, 0, 2)).reshape(-1, Dn)   # (N*B, D) batch-major
    act = jnp.concatenate([to_flat(tgt), to_flat(query_pos),
                           to_flat(high_memory), to_flat(low_memory),
                           to_flat(pos)], axis=0)    # (2BQ + 3BS, D)

    NQ = B * Qn
    R = slab.shape[0]

    kernel = functools.partial(_decoder_kernel, layout=layout,
                               B=B, Q=Qn, S=Sn, D=Dn, H=N_HEAD, L=L)
    out_flat, ws_all = pl.pallas_call(
        kernel,
        grid=(1,),                                    # batch folded in; nothing to shard
        in_specs=[pl.BlockSpec(act.shape, lambda i: (0, 0)),
                  pl.BlockSpec((R, 128), lambda i: (0, 0))],
        out_specs=(pl.BlockSpec((NQ, Dn), lambda i: (0, 0)),
                   pl.BlockSpec((L, B, Qn, Sn), lambda i: (0, 0, 0, 0))),
        out_shape=(jax.ShapeDtypeStruct((NQ, Dn), jnp.float32),
                   jax.ShapeDtypeStruct((L, B, Qn, Sn), jnp.float32)),
        compiler_params=pltpu.CompilerParams(dimension_semantics=("arbitrary",)),
    )(act, slab)

    out = jnp.transpose(out_flat.reshape(B, Qn, Dn), (1, 0, 2))
    atten_layers = [ws_all[l] for l in range(L)]
    return out, atten_layers


# ----------------------------- Parameter init ------------------------------ #

def _init_attn(key, D):
    ks = jax.random.split(key, 8)
    f = lambda k, s: jax.random.normal(k, s, jnp.float32) * 0.05
    return dict(wq=f(ks[0], (D, D)), bq=f(ks[1], (1, D)),
                wk=f(ks[2], (D, D)), bk=f(ks[3], (1, D)),
                wv=f(ks[4], (D, D)), bv=f(ks[5], (1, D)),
                wo=f(ks[6], (D, D)), bo=f(ks[7], (1, D)))


def _init_ln(D):
    return dict(g=jnp.ones((1, D), jnp.float32), b=jnp.zeros((1, D), jnp.float32))


def _init_ffn(key, D, F):
    ks = jax.random.split(key, 4)
    f = lambda k, s: jax.random.normal(k, s, jnp.float32) * 0.05
    return dict(w1=f(ks[0], (F, D)), b1=f(ks[1], (1, F)),
                w2=f(ks[2], (D, F)), b2=f(ks[3], (1, D)))


def init_params(key, num_layers, D, F):
    layers = []
    for _ in range(num_layers):
        k1, k2, k3, key = jax.random.split(key, 4)
        layers.append(dict(attn_high=_init_attn(k1, D),
                           attn_low=_init_attn(k2, D),
                           ffn=_init_ffn(k3, D, F),
                           norm1=_init_ln(D), norm2=_init_ln(D), norm3=_init_ln(D)))
    return dict(layers=layers, norm=_init_ln(D))


# --------------------------- Pure-JAX reference ---------------------------- #

def _ref_mha(q_in, k_in, v_in, p):
    B, Q, D = q_in.shape
    S = k_in.shape[1]
    H, dh = N_HEAD, D // N_HEAD
    q = q_in @ p['wq'].T + p['bq'][0]
    k = k_in @ p['wk'].T + p['bk'][0]
    v = v_in @ p['wv'].T + p['bv'][0]
    q = q.reshape(B, Q, H, dh).transpose(0, 2, 1, 3)
    k = k.reshape(B, S, H, dh).transpose(0, 2, 1, 3)
    v = v.reshape(B, S, H, dh).transpose(0, 2, 1, 3)
    s = jnp.einsum('bhqd,bhkd->bhqk', q, k) / math.sqrt(dh)
    a = jax.nn.softmax(s, axis=-1)
    ctx = jnp.einsum('bhqk,bhkd->bhqd', a, v).transpose(0, 2, 1, 3).reshape(B, Q, D)
    return ctx @ p['wo'].T + p['bo'][0], a.mean(axis=1)


def _ref_add_ln(x, y, p):
    z = x + y
    m = z.mean(-1, keepdims=True)
    v = ((z - m) ** 2).mean(-1, keepdims=True)
    return (z - m) / jnp.sqrt(v + EPS) * p['g'][0] + p['b'][0]


def _ref_ffn(x, p):
    h = jnp.maximum(x @ p['w1'].T + p['b1'][0], 0.0)
    return h @ p['w2'].T + p['b2'][0]


def _ref_decoder(tgt, hm, lm, pos, qpos, params):
    to_bld = lambda x: jnp.transpose(x, (1, 0, 2))
    out, hm, lm, pos, qpos = map(to_bld, (tgt, hm, lm, pos, qpos))
    attns = []
    for lp in params['layers']:
        t2, ws = _ref_mha(out + qpos, hm + pos, hm, lp['attn_high'])
        out = _ref_add_ln(out, t2, lp['norm1'])
        t2, _ = _ref_mha(out + qpos, lm + pos, lm, lp['attn_low'])
        out = _ref_add_ln(out, t2, lp['norm2'])
        out = _ref_add_ln(out, _ref_ffn(out, lp['ffn']), lp['norm3'])
        attns.append(ws)
    out = _ref_add_ln(out, jnp.zeros_like(out), params['norm'])
    return jnp.transpose(out, (1, 0, 2)), attns


# ---------------------------------- main ----------------------------------- #

if __name__ == "__main__":
    B, Q, S, D, F = 2, 8, 16, D_MODEL, DIM_FF
    key = jax.random.PRNGKey(0)
    k0, k1, k2, k3, k4, k5 = jax.random.split(key, 6)

    tgt = jax.random.normal(k0, (Q, B, D), jnp.float32)        # disease queries
    high_memory = jax.random.normal(k1, (S, B, D), jnp.float32)
    low_memory = jax.random.normal(k2, (S, B, D), jnp.float32)
    pos = jax.random.normal(k3, (S, B, D), jnp.float32)
    query_pos = jax.random.normal(k4, (Q, B, D), jnp.float32)
    params = init_params(k5, NUM_LAYERS, D, F)

    out, atten_layers = multi_transformer_decoder(
        tgt, high_memory, low_memory, pos, query_pos, params)
    out = jax.block_until_ready(out)
    atten_layers = [jax.block_until_ready(a) for a in atten_layers]

    ref_out, ref_attns = _ref_decoder(
        tgt, high_memory, low_memory, pos, query_pos, params)

    assert out.shape == (Q, B, D)
    assert len(atten_layers) == NUM_LAYERS and atten_layers[0].shape == (B, Q, S)
    assert bool(jnp.all(jnp.isfinite(out)))
    assert jnp.allclose(out, ref_out, atol=2e-2, rtol=2e-2)
    for a, ra in zip(atten_layers, ref_attns):
        assert jnp.allclose(a, ra, atol=2e-2, rtol=2e-2)

    print("KERNEL_OK")
</pallas_src>

<mosaic_0001>
module attributes {stable_mosaic.version = 11 : i64} {
  func.func @_decoder_kernel(%arg0: i32, %arg1: memref<128x32xf32, #tpu.memory_space<vmem>>, %arg2: memref<744x128xf32, #tpu.memory_space<vmem>>, %arg3: memref<16x32xf32, #tpu.memory_space<vmem>>, %arg4: memref<2x2x8x16xf32, #tpu.memory_space<vmem>>) attributes {dimension_semantics = [#tpu.dimension_semantics<arbitrary>], iteration_bounds = array<i64: 1>, scalar_prefetch = 0 : i64, scratch_operands = 0 : i64, tpu.core_type = #tpu.core_type<tc>, window_params = [{pipeline_mode = #tpu.pipeline_mode<synchronous>, transform_indices = @transform_0, window_bounds = array<i64: 128, 32>}, {pipeline_mode = #tpu.pipeline_mode<synchronous>, transform_indices = @transform_1, window_bounds = array<i64: 744, 128>}, {pipeline_mode = #tpu.pipeline_mode<synchronous>, transform_indices = @transform_2, window_bounds = array<i64: 16, 32>}, {pipeline_mode = #tpu.pipeline_mode<synchronous>, transform_indices = @transform_3, window_bounds = array<i64: 2, 2, 8, 16>}]} {
    %c0 = arith.constant 0 : index
    %c0_0 = arith.constant 0 : index
    %0 = vector.load %arg1[%c0, %c0_0] : memref<128x32xf32, #tpu.memory_space<vmem>>, vector<16x32xf32>
    %c16 = arith.constant 16 : index
    %c0_1 = arith.constant 0 : index
    %1 = vector.load %arg1[%c16, %c0_1] : memref<128x32xf32, #tpu.memory_space<vmem>>, vector<16x32xf32>
    %c32 = arith.constant 32 : index
    %c0_2 = arith.constant 0 : index
    %2 = vector.load %arg1[%c32, %c0_2] : memref<128x32xf32, #tpu.memory_space<vmem>>, vector<32x32xf32>
    %c64 = arith.constant 64 : index
    %c0_3 = arith.constant 0 : index
    %3 = vector.load %arg1[%c64, %c0_3] : memref<128x32xf32, #tpu.memory_space<vmem>>, vector<32x32xf32>
    %c96 = arith.constant 96 : index
    %c0_4 = arith.constant 0 : index
    %4 = vector.load %arg1[%c96, %c0_4] : memref<128x32xf32, #tpu.memory_space<vmem>>, vector<32x32xf32>
    %5 = arith.addf %2, %4 : vector<32x32xf32>
    %6 = arith.addf %3, %4 : vector<32x32xf32>
    %7 = arith.addf %0, %1 : vector<16x32xf32>
    %cst = arith.constant 0.000000e+00 : f32
    %8 = vector.broadcast %cst : f32 to vector<16x32xf32>
    %cst_5 = arith.constant 0.000000e+00 : f32
    %9 = vector.broadcast %cst_5 : f32 to vector<2x8x16xf32>
    %c0_6 = arith.constant 0 : index
    %c0_7 = arith.constant 0 : index
    %10 = vector.load %arg2[%c0_6, %c0_7] : memref<744x128xf32, #tpu.memory_space<vmem>>, vector<8x32xf32>
    %c32_8 = arith.constant 32 : index
    %c0_9 = arith.constant 0 : index
    %11 = vector.load %arg2[%c32_8, %c0_9] : memref<744x128xf32, #tpu.memory_space<vmem>>, vector<8x32xf32>
    %c64_10 = arith.constant 64 : index
    %c0_11 = arith.constant 0 : index
    %12 = vector.load %arg2[%c64_10, %c0_11] : memref<744x128xf32, #tpu.memory_space<vmem>>, vector<8x32xf32>
    %c96_12 = arith.constant 96 : index
    %c0_13 = arith.constant 0 : index
    %13 = vector.load %arg2[%c96_12, %c0_13] : memref<744x128xf32, #tpu.memory_space<vmem>>, vector<8x32xf32>
    %c704 = arith.constant 704 : index
    %c0_14 = arith.constant 0 : index
    %14 = vector.load %arg2[%c704, %c0_14] : memref<744x128xf32, #tpu.memory_space<vmem>>, vector<1x8xf32>
    %cst_15 = arith.constant dense<0.000000e+00> : vector<16x8xf32>
    %15 = tpu.matmul %7, %10, %cst_15 {dimension_numbers = #tpu.dot_dimension_numbers<[1], [1], [0], [0], [0, 0, 1, 0], [], []>} : vector<16x32xf32>, vector<8x32xf32>, vector<16x8xf32> -> vector<16x8xf32>
    %16 = vector.broadcast %14 : vector<1x8xf32> to vector<16x8xf32>
    %17 = arith.addf %15, %16 : vector<16x8xf32>
    %cst_16 = arith.constant dense<0.000000e+00> : vector<32x8xf32>
    %18 = tpu.matmul %5, %11, %cst_16 {dimension_numbers = #tpu.dot_dimension_numbers<[1], [1], [0], [0], [0, 0, 1, 0], [], []>} : vector<32x32xf32>, vector<8x32xf32>, vector<32x8xf32> -> vector<32x8xf32>
    %cst_17 = arith.constant dense<0.000000e+00> : vector<32x8xf32>
    %19 = tpu.matmul %2, %12, %cst_17 {dimension_numbers = #tpu.dot_dimension_numbers<[1], [1], [0], [0], [0, 0, 1, 0], [], []>} : vector<32x32xf32>, vector<8x32xf32>, vector<32x8xf32> -> vector<32x8xf32>
    %20 = vector.shape_cast %17 : vector<16x8xf32> to vector<2x8x8xf32>
    %21 = vector.shape_cast %18 : vector<32x8xf32> to vector<2x16x8xf32>
    %22 = vector.shape_cast %19 : vector<32x8xf32> to vector<2x16x8xf32>
    "tpu.trace_start"() <{level = 10 : i32, message = "bqd,bkd->bqk"}> : () -> ()
    %cst_18 = arith.constant dense<0.000000e+00> : vector<2x8x16xf32>
    %23 = tpu.matmul %20, %21, %cst_18 {dimension_numbers = #tpu.dot_dimension_numbers<[2], [2], [1], [1], [0, 0, 0, 1, 1, 1], [0], [0]>} : vector<2x8x8xf32>, vector<2x16x8xf32>, vector<2x8x16xf32> -> vector<2x8x16xf32>
    "tpu.trace_stop"() : () -> ()
    %cst_19 = arith.constant dense<0xFF800000> : vector<2x8xf32>
    %24 = vector.multi_reduction <maximumf>, %23, %cst_19 [2] : vector<2x8x16xf32> to vector<2x8xf32>
    %25 = vector.shape_cast %24 : vector<2x8xf32> to vector<2x8x1xf32>
    %26 = vector.broadcast %25 : vector<2x8x1xf32> to vector<2x8x16xf32>
    %27 = arith.subf %23, %26 : vector<2x8x16xf32>
    %28 = math.exp %27 : vector<2x8x16xf32>
    %cst_20 = arith.constant dense<0.000000e+00> : vector<2x8xf32>
    %29 = vector.multi_reduction <add>, %28, %cst_20 [2] : vector<2x8x16xf32> to vector<2x8xf32>
    %30 = vector.shape_cast %29 : vector<2x8xf32> to vector<2x8x1xf32>
    %31 = tpu.reciprocal %30 {approx = true} : vector<2x8x1xf32> -> vector<2x8x1xf32>
    %32 = vector.broadcast %31 : vector<2x8x1xf32> to vector<2x8x16xf32>
    %33 = arith.mulf %28, %32 : vector<2x8x16xf32>
    %34 = arith.addf %9, %33 : vector<2x8x16xf32>
    "tpu.trace_start"() <{level = 10 : i32, message = "bqk,bkd->bqd"}> : () -> ()
    %cst_21 = arith.constant dense<0.000000e+00> : vector<2x8x8xf32>
    %35 = tpu.matmul %33, %22, %cst_21 {dimension_numbers = #tpu.dot_dimension_numbers<[2], [1], [1], [2], [0, 0, 0, 1, 1, 2], [0], [0]>} : vector<2x8x16xf32>, vector<2x16x8xf32>, vector<2x8x8xf32> -> vector<2x8x8xf32>
    "tpu.trace_stop"() : () -> ()
    %36 = vector.shape_cast %35 : vector<2x8x8xf32> to vector<16x8xf32>
    %cst_22 = arith.constant dense<0.000000e+00> : vector<16x32xf32>
    %37 = tpu.matmul %36, %13, %cst_22 {dimension_numbers = #tpu.dot_dimension_numbers<[1], [0], [0], [1], [0, 0, 1, 1], [], []>} : vector<16x8xf32>, vector<8x32xf32>, vector<16x32xf32> -> vector<16x32xf32>
    %38 = arith.addf %8, %37 : vector<16x32xf32>
    %c8 = arith.constant 8 : index
    %c0_23 = arith.constant 0 : index
    %39 = vector.load %arg2[%c8, %c0_23] : memref<744x128xf32, #tpu.memory_space<vmem>>, vector<8x32xf32>
    %c40 = arith.constant 40 : index
    %c0_24 = arith.constant 0 : index
    %40 = vector.load %arg2[%c40, %c0_24] : memref<744x128xf32, #tpu.memory_space<vmem>>, vector<8x32xf32>
    %c72 = arith.constant 72 : index
    %c0_25 = arith.constant 0 : index
    %41 = vector.load %arg2[%c72, %c0_25] : memref<744x128xf32, #tpu.memory_space<vmem>>, vector<8x32xf32>
    %c104 = arith.constant 104 : index
    %c0_26 = arith.constant 0 : index
    %42 = vector.load %arg2[%c104, %c0_26] : memref<744x128xf32, #tpu.memory_space<vmem>>, vector<8x32xf32>
    %c705 = arith.constant 705 : index
    %c0_27 = arith.constant 0 : index
    %43 = vector.load %arg2[%c705, %c0_27] : memref<744x128xf32, #tpu.memory_space<vmem>>, vector<1x8xf32>
    %cst_28 = arith.constant dense<0.000000e+00> : vector<16x8xf32>
    %44 = tpu.matmul %7, %39, %cst_28 {dimension_numbers = #tpu.dot_dimension_numbers<[1], [1], [0], [0], [0, 0, 1, 0], [], []>} : vector<16x32xf32>, vector<8x32xf32>, vector<16x8xf32> -> vector<16x8xf32>
    %45 = vector.broadcast %43 : vector<1x8xf32> to vector<16x8xf32>
    %46 = arith.addf %44, %45 : vector<16x8xf32>
    %cst_29 = arith.constant dense<0.000000e+00> : vector<32x8xf32>
    %47 = tpu.matmul %5, %40, %cst_29 {dimension_numbers = #tpu.dot_dimension_numbers<[1], [1], [0], [0], [0, 0, 1, 0], [], []>} : vector<32x32xf32>, vector<8x32xf32>, vector<32x8xf32> -> vector<32x8xf32>
    %cst_30 = arith.constant dense<0.000000e+00> : vector<32x8xf32>
    %48 = tpu.matmul %2, %41, %cst_30 {dimension_numbers = #tpu.dot_dimension_numbers<[1], [1], [0], [0], [0, 0, 1, 0], [], []>} : vector<32x32xf32>, vector<8x32xf32>, vector<32x8xf32> -> vector<32x8xf32>
    %49 = vector.shape_cast %46 : vector<16x8xf32> to vector<2x8x8xf32>
    %50 = vector.shape_cast %47 : vector<32x8xf32> to vector<2x16x8xf32>
    %51 = vector.shape_cast %48 : vector<32x8xf32> to vector<2x16x8xf32>
    "tpu.trace_start"() <{level = 10 : i32, message = "bqd,bkd->bqk"}> : () -> ()
    %cst_31 = arith.constant dense<0.000000e+00> : vector<2x8x16xf32>
    %52 = tpu.matmul %49, %50, %cst_31 {dimension_numbers = #tpu.dot_dimension_numbers<[2], [2], [1], [1], [0, 0, 0, 1, 1, 1], [0], [0]>} : vector<2x8x8xf32>, vector<2x16x8xf32>, vector<2x8x16xf32> -> vector<2x8x16xf32>
    "tpu.trace_stop"() : () -> ()
    %cst_32 = arith.constant dense<0xFF800000> : vector<2x8xf32>
    %53 = vector.multi_reduction <maximumf>, %52, %cst_32 [2] : vector<2x8x16xf32> to vector<2x8xf32>
    %54 = vector.shape_cast %53 : vector<2x8xf32> to vector<2x8x1xf32>
    %55 = vector.broadcast %54 : vector<2x8x1xf32> to vector<2x8x16xf32>
    %56 = arith.subf %52, %55 : vector<2x8x16xf32>
    %57 = math.exp %56 : vector<2x8x16xf32>
    %cst_33 = arith.constant dense<0.000000e+00> : vector<2x8xf32>
    %58 = vector.multi_reduction <add>, %57, %cst_33 [2] : vector<2x8x16xf32> to vector<2x8xf32>
    %59 = vector.shape_cast %58 : vector<2x8xf32> to vector<2x8x1xf32>
    %60 = tpu.reciprocal %59 {approx = true} : vector<2x8x1xf32> -> vector<2x8x1xf32>
    %61 = vector.broadcast %60 : vector<2x8x1xf32> to vector<2x8x16xf32>
    %62 = arith.mulf %57, %61 : vector<2x8x16xf32>
    %63 = arith.addf %34, %62 : vector<2x8x16xf32>
    "tpu.trace_start"() <{level = 10 : i32, message = "bqk,bkd->bqd"}> : () -> ()
    %cst_34 = arith.constant dense<0.000000e+00> : vector<2x8x8xf32>
    %64 = tpu.matmul %62, %51, %cst_34 {dimension_numbers = #tpu.dot_dimension_numbers<[2], [1], [1], [2], [0, 0, 0, 1, 1, 2], [0], [0]>} : vector<2x8x16xf32>, vector<2x16x8xf32>, vector<2x8x8xf32> -> vector<2x8x8xf32>
    "tpu.trace_stop"() : () -> ()
    %65 = vector.shape_cast %64 : vector<2x8x8xf32> to vector<16x8xf32>
    %cst_35 = arith.constant dense<0.000000e+00> : vector<16x32xf32>
    %66 = tpu.matmul %65, %42, %cst_35 {dimension_numbers = #tpu.dot_dimension_numbers<[1], [0], [0], [1], [0, 0, 1, 1], [], []>} : vector<16x8xf32>, vector<8x32xf32>, vector<16x32xf32> -> vector<16x32xf32>
    %67 = arith.addf %38, %66 : vector<16x32xf32>
    %c16_36 = arith.constant 16 : index
    %c0_37 = arith.constant 0 : index
    %68 = vector.load %arg2[%c16_36, %c0_37] : memref<744x128xf32, #tpu.memory_space<vmem>>, vector<8x32xf32>
    %c48 = arith.constant 48 : index
    %c0_38 = arith.constant 0 : index
    %69 = vector.load %arg2[%c48, %c0_38] : memref<744x128xf32, #tpu.memory_space<vmem>>, vector<8x32xf32>
    %c80 = arith.constant 80 : index
    %c0_39 = arith.constant 0 : index
    %70 = vector.load %arg2[%c80, %c0_39] : memref<744x128xf32, #tpu.memory_space<vmem>>, vector<8x32xf32>
    %c112 = arith.constant 112 : index
    %c0_40 = arith.constant 0 : index
    %71 = vector.load %arg2[%c112, %c0_40] : memref<744x128xf32, #tpu.memory_space<vmem>>, vector<8x32xf32>
    %c706 = arith.constant 706 : index
    %c0_41 = arith.constant 0 : index
    %72 = vector.load %arg2[%c706, %c0_41] : memref<744x128xf32, #tpu.memory_space<vmem>>, vector<1x8xf32>
    %cst_42 = arith.constant dense<0.000000e+00> : vector<16x8xf32>
    %73 = tpu.matmul %7, %68, %cst_42 {dimension_numbers = #tpu.dot_dimension_numbers<[1], [1], [0], [0], [0, 0, 1, 0], [], []>} : vector<16x32xf32>, vector<8x32xf32>, vector<16x8xf32> -> vector<16x8xf32>
    %74 = vector.broadcast %72 : vector<1x8xf32> to vector<16x8xf32>
    %75 = arith.addf %73, %74 : vector<16x8xf32>
    %cst_43 = arith.constant dense<0.000000e+00> : vector<32x8xf32>
    %76 = tpu.matmul %5, %69, %cst_43 {dimension_numbers = #tpu.dot_dimension_numbers<[1], [1], [0], [0], [0, 0, 1, 0], [], []>} : vector<32x32xf32>, vector<8x32xf32>, vector<32x8xf32> -> vector<32x8xf32>
    %cst_44 = arith.constant dense<0.000000e+00> : vector<32x8xf32>
    %77 = tpu.matmul %2, %70, %cst_44 {dimension_numbers = #tpu.dot_dimension_numbers<[1], [1], [0], [0], [0, 0, 1, 0], [], []>} : vector<32x32xf32>, vector<8x32xf32>, vector<32x8xf32> -> vector<32x8xf32>
    %78 = vector.shape_cast %75 : vector<16x8xf32> to vector<2x8x8xf32>
    %79 = vector.shape_cast %76 : vector<32x8xf32> to vector<2x16x8xf32>
    %80 = vector.shape_cast %77 : vector<32x8xf32> to vector<2x16x8xf32>
    "tpu.trace_start"() <{level = 10 : i32, message = "bqd,bkd->bqk"}> : () -> ()
    %cst_45 = arith.constant dense<0.000000e+00> : vector<2x8x16xf32>
    %81 = tpu.matmul %78, %79, %cst_45 {dimension_numbers = #tpu.dot_dimension_numbers<[2], [2], [1], [1], [0, 0, 0, 1, 1, 1], [0], [0]>} : vector<2x8x8xf32>, vector<2x16x8xf32>, vector<2x8x16xf32> -> vector<2x8x16xf32>
    "tpu.trace_stop"() : () -> ()
    %cst_46 = arith.constant dense<0xFF800000> : vector<2x8xf32>
    %82 = vector.multi_reduction <maximumf>, %81, %cst_46 [2] : vector<2x8x16xf32> to vector<2x8xf32>
    %83 = vector.shape_cast %82 : vector<2x8xf32> to vector<2x8x1xf32>
    %84 = vector.broadcast %83 : vector<2x8x1xf32> to vector<2x8x16xf32>
    %85 = arith.subf %81, %84 : vector<2x8x16xf32>
    %86 = math.exp %85 : vector<2x8x16xf32>
    %cst_47 = arith.constant dense<0.000000e+00> : vector<2x8xf32>
    %87 = vector.multi_reduction <add>, %86, %cst_47 [2] : vector<2x8x16xf32> to vector<2x8xf32>
    %88 = vector.shape_cast %87 : vector<2x8xf32> to vector<2x8x1xf32>
    %89 = tpu.reciprocal %88 {approx = true} : vector<2x8x1xf32> -> vector<2x8x1xf32>
    %90 = vector.broadcast %89 : vector<2x8x1xf32> to vector<2x8x16xf32>
    %91 = arith.mulf %86, %90 : vector<2x8x16xf32>
    %92 = arith.addf %63, %91 : vector<2x8x16xf32>
    "tpu.trace_start"() <{level = 10 : i32, message = "bqk,bkd->bqd"}> : () -> ()
    %cst_48 = arith.constant dense<0.000000e+00> : vector<2x8x8xf32>
    %93 = tpu.matmul %91, %80, %cst_48 {dimension_numbers = #tpu.dot_dimension_numbers<[2], [1], [1], [2], [0, 0, 0, 1, 1, 2], [0], [0]>} : vector<2x8x16xf32>, vector<2x16x8xf32>, vector<2x8x8xf32> -> vector<2x8x8xf32>
    "tpu.trace_stop"() : () -> ()
    %94 = vector.shape_cast %93 : vector<2x8x8xf32> to vector<16x8xf32>
    %cst_49 = arith.constant dense<0.000000e+00> : vector<16x32xf32>
    %95 = tpu.matmul %94, %71, %cst_49 {dimension_numbers = #tpu.dot_dimension_numbers<[1], [0], [0], [1], [0, 0, 1, 1], [], []>} : vector<16x8xf32>, vector<8x32xf32>, vector<16x32xf32> -> vector<16x32xf32>
    %96 = arith.addf %67, %95 : vector<16x32xf32>
    %c24 = arith.constant 24 : index
    %c0_50 = arith.constant 0 : index
    %97 = vector.load %arg2[%c24, %c0_50] : memref<744x128xf32, #tpu.memory_space<vmem>>, vector<8x32xf32>
    %c56 = arith.constant 56 : index
    %c0_51 = arith.constant 0 : index
    %98 = vector.load %arg2[%c56, %c0_51] : memref<744x128xf32, #tpu.memory_space<vmem>>, vector<8x32xf32>
    %c88 = arith.constant 88 : index
    %c0_52 = arith.constant 0 : index
    %99 = vector.load %arg2[%c88, %c0_52] : memref<744x128xf32, #tpu.memory_space<vmem>>, vector<8x32xf32>
    %c120 = arith.constant 120 : index
    %c0_53 = arith.constant 0 : index
    %100 = vector.load %arg2[%c120, %c0_53] : memref<744x128xf32, #tpu.memory_space<vmem>>, vector<8x32xf32>
    %c707 = arith.constant 707 : index
    %c0_54 = arith.constant 0 : index
    %101 = vector.load %arg2[%c707, %c0_54] : memref<744x128xf32, #tpu.memory_space<vmem>>, vector<1x8xf32>
    %cst_55 = arith.constant dense<0.000000e+00> : vector<16x8xf32>
    %102 = tpu.matmul %7, %97, %cst_55 {dimension_numbers = #tpu.dot_dimension_numbers<[1], [1], [0], [0], [0, 0, 1, 0], [], []>} : vector<16x32xf32>, vector<8x32xf32>, vector<16x8xf32> -> vector<16x8xf32>
    %103 = vector.broadcast %101 : vector<1x8xf32> to vector<16x8xf32>
    %104 = arith.addf %102, %103 : vector<16x8xf32>
    %cst_56 = arith.constant dense<0.000000e+00> : vector<32x8xf32>
    %105 = tpu.matmul %5, %98, %cst_56 {dimension_numbers = #tpu.dot_dimension_numbers<[1], [1], [0], [0], [0, 0, 1, 0], [], []>} : vector<32x32xf32>, vector<8x32xf32>, vector<32x8xf32> -> vector<32x8xf32>
    %cst_57 = arith.constant dense<0.000000e+00> : vector<32x8xf32>
    %106 = tpu.matmul %2, %99, %cst_57 {dimension_numbers = #tpu.dot_dimension_numbers<[1], [1], [0], [0], [0, 0, 1, 0], [], []>} : vector<32x32xf32>, vector<8x32xf32>, vector<32x8xf32> -> vector<32x8xf32>
    %107 = vector.shape_cast %104 : vector<16x8xf32> to vector<2x8x8xf32>
    %108 = vector.shape_cast %105 : vector<32x8xf32> to vector<2x16x8xf32>
    %109 = vector.shape_cast %106 : vector<32x8xf32> to vector<2x16x8xf32>
    "tpu.trace_start"() <{level = 10 : i32, message = "bqd,bkd->bqk"}> : () -> ()
    %cst_58 = arith.constant dense<0.000000e+00> : vector<2x8x16xf32>
    %110 = tpu.matmul %107, %108, %cst_58 {dimension_numbers = #tpu.dot_dimension_numbers<[2], [2], [1], [1], [0, 0, 0, 1, 1, 1], [0], [0]>} : vector<2x8x8xf32>, vector<2x16x8xf32>, vector<2x8x16xf32> -> vector<2x8x16xf32>
    "tpu.trace_stop"() : () -> ()
    %cst_59 = arith.constant dense<0xFF800000> : vector<2x8xf32>
    %111 = vector.multi_reduction <maximumf>, %110, %cst_59 [2] : vector<2x8x16xf32> to vector<2x8xf32>
    %112 = vector.shape_cast %111 : vector<2x8xf32> to vector<2x8x1xf32>
    %113 = vector.broadcast %112 : vector<2x8x1xf32> to vector<2x8x16xf32>
    %114 = arith.subf %110, %113 : vector<2x8x16xf32>
    %115 = math.exp %114 : vector<2x8x16xf32>
    %cst_60 = arith.constant dense<0.000000e+00> : vector<2x8xf32>
    %116 = vector.multi_reduction <add>, %115, %cst_60 [2] : vector<2x8x16xf32> to vector<2x8xf32>
    %117 = vector.shape_cast %116 : vector<2x8xf32> to vector<2x8x1xf32>
    %118 = tpu.reciprocal %117 {approx = true} : vector<2x8x1xf32> -> vector<2x8x1xf32>
    %119 = vector.broadcast %118 : vector<2x8x1xf32> to vector<2x8x16xf32>
    %120 = arith.mulf %115, %119 : vector<2x8x16xf32>
    %121 = arith.addf %92, %120 : vector<2x8x16xf32>
    "tpu.trace_start"() <{level = 10 : i32, message = "bqk,bkd->bqd"}> : () -> ()
    %cst_61 = arith.constant dense<0.000000e+00> : vector<2x8x8xf32>
    %122 = tpu.matmul %120, %109, %cst_61 {dimension_numbers = #tpu.dot_dimension_numbers<[2], [1], [1], [2], [0, 0, 0, 1, 1, 2], [0], [0]>} : vector<2x8x16xf32>, vector<2x16x8xf32>, vector<2x8x8xf32> -> vector<2x8x8xf32>
    "tpu.trace_stop"() : () -> ()
    %123 = vector.shape_cast %122 : vector<2x8x8xf32> to vector<16x8xf32>
    %cst_62 = arith.constant dense<0.000000e+00> : vector<16x32xf32>
    %124 = tpu.matmul %123, %100, %cst_62 {dimension_numbers = #tpu.dot_dimension_numbers<[1], [0], [0], [1], [0, 0, 1, 1], [], []>} : vector<16x8xf32>, vector<8x32xf32>, vector<16x32xf32> -> vector<16x32xf32>
    %125 = arith.addf %96, %124 : vector<16x32xf32>
    %c708 = arith.constant 708 : index
    %c0_63 = arith.constant 0 : index
    %126 = vector.load %arg2[%c708, %c0_63] : memref<744x128xf32, #tpu.memory_space<vmem>>, vector<1x32xf32>
    %127 = vector.broadcast %126 : vector<1x32xf32> to vector<16x32xf32>
    %128 = arith.addf %125, %127 : vector<16x32xf32>
    %cst_64 = arith.constant 2.500000e-01 : f32
    %129 = vector.broadcast %cst_64 : f32 to vector<2x8x16xf32>
    %130 = arith.mulf %121, %129 : vector<2x8x16xf32>
    %c0_65 = arith.constant 0 : index
    %c0_66 = arith.constant 0 : index
    %c0_67 = arith.constant 0 : index
    %c0_68 = arith.constant 0 : index
    %131 = vector.load %arg4[%c0_65, %c0_66, %c0_67, %c0_68] : memref<2x2x8x16xf32, #tpu.memory_space<vmem>>, vector<1x2x8x16xf32>
    %132 = vector.shape_cast %131 : vector<1x2x8x16xf32> to vector<2x8x16xf32>
    %133 = vector.shape_cast %130 : vector<2x8x16xf32> to vector<1x2x8x16xf32>
    tpu.vector_store %arg4[%c0_65, %c0_66, %c0_67, %c0_68], %133 {strides = array<i32>} : memref<2x2x8x16xf32, #tpu.memory_space<vmem>>, vector<1x2x8x16xf32>,
    %134 = arith.addf %0, %128 : vector<16x32xf32>
    %c716 = arith.constant 716 : index
    %c0_69 = arith.constant 0 : index
    %135 = vector.load %arg2[%c716, %c0_69] : memref<744x128xf32, #tpu.memory_space<vmem>>, vector<1x32xf32>
    %c717 = arith.constant 717 : index
    %c0_70 = arith.constant 0 : index
    %136 = vector.load %arg2[%c717, %c0_70] : memref<744x128xf32, #tpu.memory_space<vmem>>, vector<1x32xf32>
    %cst_71 = arith.constant dense<0.000000e+00> : vector<16xf32>
    %137 = vector.multi_reduction <add>, %134, %cst_71 [1] : vector<16x32xf32> to vector<16xf32>
    %138 = vector.shape_cast %137 : vector<16xf32> to vector<16x1xf32>
    %cst_72 = arith.constant 3.200000e+01 : f32
    %139 = vector.broadcast %cst_72 : f32 to vector<16x1xf32>
    %140 = arith.divf %138, %139 : vector<16x1xf32>
    %141 = vector.broadcast %140 : vector<16x1xf32> to vector<16x32xf32>
    %142 = arith.subf %134, %141 : vector<16x32xf32>
    %143 = arith.mulf %142, %142 : vector<16x32xf32>
    %cst_73 = arith.constant dense<0.000000e+00> : vector<16xf32>
    %144 = vector.multi_reduction <add>, %143, %cst_73 [1] : vector<16x32xf32> to vector<16xf32>
    %145 = vector.shape_cast %144 : vector<16xf32> to vector<16x1xf32>
    %cst_74 = arith.constant 3.200000e+01 : f32
    %146 = vector.broadcast %cst_74 : f32 to vector<16x1xf32>
    %147 = arith.divf %145, %146 : vector<16x1xf32>
    %148 = vector.broadcast %140 : vector<16x1xf32> to vector<16x32xf32>
    %149 = arith.subf %134, %148 : vector<16x32xf32>
    %cst_75 = arith.constant 9.99999974E-6 : f32
    %150 = vector.broadcast %cst_75 : f32 to vector<16x1xf32>
    %151 = arith.addf %147, %150 : vector<16x1xf32>
    %152 = math.rsqrt %151 : vector<16x1xf32>
    %153 = vector.broadcast %152 : vector<16x1xf32> to vector<16x32xf32>
    %154 = arith.mulf %149, %153 : vector<16x32xf32>
    %155 = vector.broadcast %135 : vector<1x32xf32> to vector<16x32xf32>
    %156 = arith.mulf %154, %155 : vector<16x32xf32>
    %157 = vector.broadcast %136 : vector<1x32xf32> to vector<16x32xf32>
    %158 = arith.addf %156, %157 : vector<16x32xf32>
    %159 = arith.addf %158, %1 : vector<16x32xf32>
    %cst_76 = arith.constant 0.000000e+00 : f32
    %160 = vector.broadcast %cst_76 : f32 to vector<16x32xf32>
    %c128 = arith.constant 128 : index
    %c0_77 = arith.constant 0 : index
    %161 = vector.load %arg2[%c128, %c0_77] : memref<744x128xf32, #tpu.memory_space<vmem>>, vector<8x32xf32>
    %c160 = arith.constant 160 : index
    %c0_78 = arith.constant 0 : index
    %162 = vector.load %arg2[%c160, %c0_78] : memref<744x128xf32, #tpu.memory_space<vmem>>, vector<8x32xf32>
    %c192 = arith.constant 192 : index
    %c0_79 = arith.constant 0 : index
    %163 = vector.load %arg2[%c192, %c0_79] : memref<744x128xf32, #tpu.memory_space<vmem>>, vector<8x32xf32>
    %c224 = arith.constant 224 : index
    %c0_80 = arith.constant 0 : index
    %164 = vector.load %arg2[%c224, %c0_80] : memref<744x128xf32, #tpu.memory_space<vmem>>, vector<8x32xf32>
    %c709 = arith.constant 709 : index
    %c0_81 = arith.constant 0 : index
    %165 = vector.load %arg2[%c709, %c0_81] : memref<744x128xf32, #tpu.memory_space<vmem>>, vector<1x8xf32>
    %cst_82 = arith.constant dense<0.000000e+00> : vector<16x8xf32>
    %166 = tpu.matmul %159, %161, %cst_82 {dimension_numbers = #tpu.dot_dimension_numbers<[1], [1], [0], [0], [0, 0, 1, 0], [], []>} : vector<16x32xf32>, vector<8x32xf32>, vector<16x8xf32> -> vector<16x8xf32>
    %167 = vector.broadcast %165 : vector<1x8xf32> to vector<16x8xf32>
    %168 = arith.addf %166, %167 : vector<16x8xf32>
    %cst_83 = arith.constant dense<0.000000e+00> : vector<32x8xf32>
    %169 = tpu.matmul %6, %162, %cst_83 {dimension_numbers = #tpu.dot_dimension_numbers<[1], [1], [0], [0], [0, 0, 1, 0], [], []>} : vector<32x32xf32>, vector<8x32xf32>, vector<32x8xf32> -> vector<32x8xf32>
    %cst_84 = arith.constant dense<0.000000e+00> : vector<32x8xf32>
    %170 = tpu.matmul %3, %163, %cst_84 {dimension_numbers = #tpu.dot_dimension_numbers<[1], [1], [0], [0], [0, 0, 1, 0], [], []>} : vector<32x32xf32>, vector<8x32xf32>, vector<32x8xf32> -> vector<32x8xf32>
    %171 = vector.shape_cast %168 : vector<16x8xf32> to vector<2x8x8xf32>
    %172 = vector.shape_cast %169 : vector<32x8xf32> to vector<2x16x8xf32>
    %173 = vector.shape_cast %170 : vector<32x8xf32> to vector<2x16x8xf32>
    "tpu.trace_start"() <{level = 10 : i32, message = "bqd,bkd->bqk"}> : () -> ()
    %cst_85 = arith.constant dense<0.000000e+00> : vector<2x8x16xf32>
    %174 = tpu.matmul %171, %172, %cst_85 {dimension_numbers = #tpu.dot_dimension_numbers<[2], [2], [1], [1], [0, 0, 0, 1, 1, 1], [0], [0]>} : vector<2x8x8xf32>, vector<2x16x8xf32>, vector<2x8x16xf32> -> vector<2x8x16xf32>
    "tpu.trace_stop"() : () -> ()
    %cst_86 = arith.constant dense<0xFF800000> : vector<2x8xf32>
    %175 = vector.multi_reduction <maximumf>, %174, %cst_86 [2] : vector<2x8x16xf32> to vector<2x8xf32>
    %176 = vector.shape_cast %175 : vector<2x8xf32> to vector<2x8x1xf32>
    %177 = vector.broadcast %176 : vector<2x8x1xf32> to vector<2x8x16xf32>
    %178 = arith.subf %174, %177 : vector<2x8x16xf32>
    %179 = math.exp %178 : vector<2x8x16xf32>
    %cst_87 = arith.constant dense<0.000000e+00> : vector<2x8xf32>
    %180 = vector.multi_reduction <add>, %179, %cst_87 [2] : vector<2x8x16xf32> to vector<2x8xf32>
    %181 = vector.shape_cast %180 : vector<2x8xf32> to vector<2x8x1xf32>
    %182 = tpu.reciprocal %181 {approx = true} : vector<2x8x1xf32> -> vector<2x8x1xf32>
    %183 = vector.broadcast %182 : vector<2x8x1xf32> to vector<2x8x16xf32>
    %184 = arith.mulf %179, %183 : vector<2x8x16xf32>
    "tpu.trace_start"() <{level = 10 : i32, message = "bqk,bkd->bqd"}> : () -> ()
    %cst_88 = arith.constant dense<0.000000e+00> : vector<2x8x8xf32>
    %185 = tpu.matmul %184, %173, %cst_88 {dimension_numbers = #tpu.dot_dimension_numbers<[2], [1], [1], [2], [0, 0, 0, 1, 1, 2], [0], [0]>} : vector<2x8x16xf32>, vector<2x16x8xf32>, vector<2x8x8xf32> -> vector<2x8x8xf32>
    "tpu.trace_stop"() : () -> ()
    %186 = vector.shape_cast %185 : vector<2x8x8xf32> to vector<16x8xf32>
    %cst_89 = arith.constant dense<0.000000e+00> : vector<16x32xf32>
    %187 = tpu.matmul %186, %164, %cst_89 {dimension_numbers = #tpu.dot_dimension_numbers<[1], [0], [0], [1], [0, 0, 1, 1], [], []>} : vector<16x8xf32>, vector<8x32xf32>, vector<16x32xf32> -> vector<16x32xf32>
    %188 = arith.addf %160, %187 : vector<16x32xf32>
    %c136 = arith.constant 136 : index
    %c0_90 = arith.constant 0 : index
    %189 = vector.load %arg2[%c136, %c0_90] : memref<744x128xf32, #tpu.memory_space<vmem>>, vector<8x32xf32>
    %c168 = arith.constant 168 : index
    %c0_91 = arith.constant 0 : index
    %190 = vector.load %arg2[%c168, %c0_91] : memref<744x128xf32, #tpu.memory_space<vmem>>, vector<8x32xf32>
    %c200 = arith.constant 200 : index
    %c0_92 = arith.constant 0 : index
    %191 = vector.load %arg2[%c200, %c0_92] : memref<744x128xf32, #tpu.memory_space<vmem>>, vector<8x32xf32>
    %c232 = arith.constant 232 : index
    %c0_93 = arith.constant 0 : index
    %192 = vector.load %arg2[%c232, %c0_93] : memref<744x128xf32, #tpu.memory_space<vmem>>, vector<8x32xf32>
    %c710 = arith.constant 710 : index
    %c0_94 = arith.constant 0 : index
    %193 = vector.load %arg2[%c710, %c0_94] : memref<744x128xf32, #tpu.memory_space<vmem>>, vector<1x8xf32>
    %cst_95 = arith.constant dense<0.000000e+00> : vector<16x8xf32>
    %194 = tpu.matmul %159, %189, %cst_95 {dimension_numbers = #tpu.dot_dimension_numbers<[1], [1], [0], [0], [0, 0, 1, 0], [], []>} : vector<16x32xf32>, vector<8x32xf32>, vector<16x8xf32> -> vector<16x8xf32>
    %195 = vector.broadcast %193 : vector<1x8xf32> to vector<16x8xf32>
    %196 = arith.addf %194, %195 : vector<16x8xf32>
    %cst_96 = arith.constant dense<0.000000e+00> : vector<32x8xf32>
    %197 = tpu.matmul %6, %190, %cst_96 {dimension_numbers = #tpu.dot_dimension_numbers<[1], [1], [0], [0], [0, 0, 1, 0], [], []>} : vector<32x32xf32>, vector<8x32xf32>, vector<32x8xf32> -> vector<32x8xf32>
    %cst_97 = arith.constant dense<0.000000e+00> : vector<32x8xf32>
    %198 = tpu.matmul %3, %191, %cst_97 {dimension_numbers = #tpu.dot_dimension_numbers<[1], [1], [0], [0], [0, 0, 1, 0], [], []>} : vector<32x32xf32>, vector<8x32xf32>, vector<32x8xf32> -> vector<32x8xf32>
    %199 = vector.shape_cast %196 : vector<16x8xf32> to vector<2x8x8xf32>
    %200 = vector.shape_cast %197 : vector<32x8xf32> to vector<2x16x8xf32>
    %201 = vector.shape_cast %198 : vector<32x8xf32> to vector<2x16x8xf32>
    "tpu.trace_start"() <{level = 10 : i32, message = "bqd,bkd->bqk"}> : () -> ()
    %cst_98 = arith.constant dense<0.000000e+00> : vector<2x8x16xf32>
    %202 = tpu.matmul %199, %200, %cst_98 {dimension_numbers = #tpu.dot_dimension_numbers<[2], [2], [1], [1], [0, 0, 0, 1, 1, 1], [0], [0]>} : vector<2x8x8xf32>, vector<2x16x8xf32>, vector<2x8x16xf32> -> vector<2x8x16xf32>
    "tpu.trace_stop"() : () -> ()
    %cst_99 = arith.constant dense<0xFF800000> : vector<2x8xf32>
    %203 = vector.multi_reduction <maximumf>, %202, %cst_99 [2] : vector<2x8x16xf32> to vector<2x8xf32>
    %204 = vector.shape_cast %203 : vector<2x8xf32> to vector<2x8x1xf32>
    %205 = vector.broadcast %204 : vector<2x8x1xf32> to vector<2x8x16xf32>
    %206 = arith.subf %202, %205 : vector<2x8x16xf32>
    %207 = math.exp %206 : vector<2x8x16xf32>
    %cst_100 = arith.constant dense<0.000000e+00> : vector<2x8xf32>
    %208 = vector.multi_reduction <add>, %207, %cst_100 [2] : vector<2x8x16xf32> to vector<2x8xf32>
    %209 = vector.shape_cast %208 : vector<2x8xf32> to vector<2x8x1xf32>
    %210 = tpu.reciprocal %209 {approx = true} : vector<2x8x1xf32> -> vector<2x8x1xf32>
    %211 = vector.broadcast %210 : vector<2x8x1xf32> to vector<2x8x16xf32>
    %212 = arith.mulf %207, %211 : vector<2x8x16xf32>
    "tpu.trace_start"() <{level = 10 : i32, message = "bqk,bkd->bqd"}> : () -> ()
    %cst_101 = arith.constant dense<0.000000e+00> : vector<2x8x8xf32>
    %213 = tpu.matmul %212, %201, %cst_101 {dimension_numbers = #tpu.dot_dimension_numbers<[2], [1], [1], [2], [0, 0, 0, 1, 1, 2], [0], [0]>} : vector<2x8x16xf32>, vector<2x16x8xf32>, vector<2x8x8xf32> -> vector<2x8x8xf32>
    "tpu.trace_stop"() : () -> ()
    %214 = vector.shape_cast %213 : vector<2x8x8xf32> to vector<16x8xf32>
    %cst_102 = arith.constant dense<0.000000e+00> : vector<16x32xf32>
    %215 = tpu.matmul %214, %192, %cst_102 {dimension_numbers = #tpu.dot_dimension_numbers<[1], [0], [0], [1], [0, 0, 1, 1], [], []>} : vector<16x8xf32>, vector<8x32xf32>, vector<16x32xf32> -> vector<16x32xf32>
    %216 = arith.addf %188, %215 : vector<16x32xf32>
    %c144 = arith.constant 144 : index
    %c0_103 = arith.constant 0 : index
    %217 = vector.load %arg2[%c144, %c0_103] : memref<744x128xf32, #tpu.memory_space<vmem>>, vector<8x32xf32>
    %c176 = arith.constant 176 : index
    %c0_104 = arith.constant 0 : index
    %218 = vector.load %arg2[%c176, %c0_104] : memref<744x128xf32, #tpu.memory_space<vmem>>, vector<8x32xf32>
    %c208 = arith.constant 208 : index
    %c0_105 = arith.constant 0 : index
    %219 = vector.load %arg2[%c208, %c0_105] : memref<744x128xf32, #tpu.memory_space<vmem>>, vector<8x32xf32>
    %c240 = arith.constant 240 : index
    %c0_106 = arith.constant 0 : index
    %220 = vector.load %arg2[%c240, %c0_106] : memref<744x128xf32, #tpu.memory_space<vmem>>, vector<8x32xf32>
    %c711 = arith.constant 711 : index
    %c0_107 = arith.constant 0 : index
    %221 = vector.load %arg2[%c711, %c0_107] : memref<744x128xf32, #tpu.memory_space<vmem>>, vector<1x8xf32>
    %cst_108 = arith.constant dense<0.000000e+00> : vector<16x8xf32>
    %222 = tpu.matmul %159, %217, %cst_108 {dimension_numbers = #tpu.dot_dimension_numbers<[1], [1], [0], [0], [0, 0, 1, 0], [], []>} : vector<16x32xf32>, vector<8x32xf32>, vector<16x8xf32> -> vector<16x8xf32>
    %223 = vector.broadcast %221 : vector<1x8xf32> to vector<16x8xf32>
    %224 = arith.addf %222, %223 : vector<16x8xf32>
    %cst_109 = arith.constant dense<0.000000e+00> : vector<32x8xf32>
    %225 = tpu.matmul %6, %218, %cst_109 {dimension_numbers = #tpu.dot_dimension_numbers<[1], [1], [0], [0], [0, 0, 1, 0], [], []>} : vector<32x32xf32>, vector<8x32xf32>, vector<32x8xf32> -> vector<32x8xf32>
    %cst_110 = arith.constant dense<0.000000e+00> : vector<32x8xf32>
    %226 = tpu.matmul %3, %219, %cst_110 {dimension_numbers = #tpu.dot_dimension_numbers<[1], [1], [0], [0], [0, 0, 1, 0], [], []>} : vector<32x32xf32>, vector<8x32xf32>, vector<32x8xf32> -> vector<32x8xf32>
    %227 = vector.shape_cast %224 : vector<16x8xf32> to vector<2x8x8xf32>
    %228 = vector.shape_cast %225 : vector<32x8xf32> to vector<2x16x8xf32>
    %229 = vector.shape_cast %226 : vector<32x8xf32> to vector<2x16x8xf32>
    "tpu.trace_start"() <{level = 10 : i32, message = "bqd,bkd->bqk"}> : () -> ()
    %cst_111 = arith.constant dense<0.000000e+00> : vector<2x8x16xf32>
    %230 = tpu.matmul %227, %228, %cst_111 {dimension_numbers = #tpu.dot_dimension_numbers<[2], [2], [1], [1], [0, 0, 0, 1, 1, 1], [0], [0]>} : vector<2x8x8xf32>, vector<2x16x8xf32>, vector<2x8x16xf32> -> vector<2x8x16xf32>
    "tpu.trace_stop"() : () -> ()
    %cst_112 = arith.constant dense<0xFF800000> : vector<2x8xf32>
    %231 = vector.multi_reduction <maximumf>, %230, %cst_112 [2] : vector<2x8x16xf32> to vector<2x8xf32>
    %232 = vector.shape_cast %231 : vector<2x8xf32> to vector<2x8x1xf32>
    %233 = vector.broadcast %232 : vector<2x8x1xf32> to vector<2x8x16xf32>
    %234 = arith.subf %230, %233 : vector<2x8x16xf32>
    %235 = math.exp %234 : vector<2x8x16xf32>
    %cst_113 = arith.constant dense<0.000000e+00> : vector<2x8xf32>
    %236 = vector.multi_reduction <add>, %235, %cst_113 [2] : vector<2x8x16xf32> to vector<2x8xf32>
    %237 = vector.shape_cast %236 : vector<2x8xf32> to vector<2x8x1xf32>
    %238 = tpu.reciprocal %237 {approx = true} : vector<2x8x1xf32> -> vector<2x8x1xf32>
    %239 = vector.broadcast %238 : vector<2x8x1xf32> to vector<2x8x16xf32>
    %240 = arith.mulf %235, %239 : vector<2x8x16xf32>
    "tpu.trace_start"() <{level = 10 : i32, message = "bqk,bkd->bqd"}> : () -> ()
    %cst_114 = arith.constant dense<0.000000e+00> : vector<2x8x8xf32>
    %241 = tpu.matmul %240, %229, %cst_114 {dimension_numbers = #tpu.dot_dimension_numbers<[2], [1], [1], [2], [0, 0, 0, 1, 1, 2], [0], [0]>} : vector<2x8x16xf32>, vector<2x16x8xf32>, vector<2x8x8xf32> -> vector<2x8x8xf32>
    "tpu.trace_stop"() : () -> ()
    %242 = vector.shape_cast %241 : vector<2x8x8xf32> to vector<16x8xf32>
    %cst_115 = arith.constant dense<0.000000e+00> : vector<16x32xf32>
    %243 = tpu.matmul %242, %220, %cst_115 {dimension_numbers = #tpu.dot_dimension_numbers<[1], [0], [0], [1], [0, 0, 1, 1], [], []>} : vector<16x8xf32>, vector<8x32xf32>, vector<16x32xf32> -> vector<16x32xf32>
    %244 = arith.addf %216, %243 : vector<16x32xf32>
    %c152 = arith.constant 152 : index
    %c0_116 = arith.constant 0 : index
    %245 = vector.load %arg2[%c152, %c0_116] : memref<744x128xf32, #tpu.memory_space<vmem>>, vector<8x32xf32>
    %c184 = arith.constant 184 : index
    %c0_117 = arith.constant 0 : index
    %246 = vector.load %arg2[%c184, %c0_117] : memref<744x128xf32, #tpu.memory_space<vmem>>, vector<8x32xf32>
    %c216 = arith.constant 216 : index
    %c0_118 = arith.constant 0 : index
    %247 = vector.load %arg2[%c216, %c0_118] : memref<744x128xf32, #tpu.memory_space<vmem>>, vector<8x32xf32>
    %c248 = arith.constant 248 : index
    %c0_119 = arith.constant 0 : index
    %248 = vector.load %arg2[%c248, %c0_119] : memref<744x128xf32, #tpu.memory_space<vmem>>, vector<8x32xf32>
    %c712 = arith.constant 712 : index
    %c0_120 = arith.constant 0 : index
    %249 = vector.load %arg2[%c712, %c0_120] : memref<744x128xf32, #tpu.memory_space<vmem>>, vector<1x8xf32>
    %cst_121 = arith.constant dense<0.000000e+00> : vector<16x8xf32>
    %250 = tpu.matmul %159, %245, %cst_121 {dimension_numbers = #tpu.dot_dimension_numbers<[1], [1], [0], [0], [0, 0, 1, 0], [], []>} : vector<16x32xf32>, vector<8x32xf32>, vector<16x8xf32> -> vector<16x8xf32>
    %251 = vector.broadcast %249 : vector<1x8xf32> to vector<16x8xf32>
    %252 = arith.addf %250, %251 : vector<16x8xf32>
    %cst_122 = arith.constant dense<0.000000e+00> : vector<32x8xf32>
    %253 = tpu.matmul %6, %246, %cst_122 {dimension_numbers = #tpu.dot_dimension_numbers<[1], [1], [0], [0], [0, 0, 1, 0], [], []>} : vector<32x32xf32>, vector<8x32xf32>, vector<32x8xf32> -> vector<32x8xf32>
    %cst_123 = arith.constant dense<0.000000e+00> : vector<32x8xf32>
    %254 = tpu.matmul %3, %247, %cst_123 {dimension_numbers = #tpu.dot_dimension_numbers<[1], [1], [0], [0], [0, 0, 1, 0], [], []>} : vector<32x32xf32>, vector<8x32xf32>, vector<32x8xf32> -> vector<32x8xf32>
    %255 = vector.shape_cast %252 : vector<16x8xf32> to vector<2x8x8xf32>
    %256 = vector.shape_cast %253 : vector<32x8xf32> to vector<2x16x8xf32>
    %257 = vector.shape_cast %254 : vector<32x8xf32> to vector<2x16x8xf32>
    "tpu.trace_start"() <{level = 10 : i32, message = "bqd,bkd->bqk"}> : () -> ()
    %cst_124 = arith.constant dense<0.000000e+00> : vector<2x8x16xf32>
    %258 = tpu.matmul %255, %256, %cst_124 {dimension_numbers = #tpu.dot_dimension_numbers<[2], [2], [1], [1], [0, 0, 0, 1, 1, 1], [0], [0]>} : vector<2x8x8xf32>, vector<2x16x8xf32>, vector<2x8x16xf32> -> vector<2x8x16xf32>
    "tpu.trace_stop"() : () -> ()
    %cst_125 = arith.constant dense<0xFF800000> : vector<2x8xf32>
    %259 = vector.multi_reduction <maximumf>, %258, %cst_125 [2] : vector<2x8x16xf32> to vector<2x8xf32>
    %260 = vector.shape_cast %259 : vector<2x8xf32> to vector<2x8x1xf32>
    %261 = vector.broadcast %260 : vector<2x8x1xf32> to vector<2x8x16xf32>
    %262 = arith.subf %258, %261 : vector<2x8x16xf32>
    %263 = math.exp %262 : vector<2x8x16xf32>
    %cst_126 = arith.constant dense<0.000000e+00> : vector<2x8xf32>
    %264 = vector.multi_reduction <add>, %263, %cst_126 [2] : vector<2x8x16xf32> to vector<2x8xf32>
    %265 = vector.shape_cast %264 : vector<2x8xf32> to vector<2x8x1xf32>
    %266 = tpu.reciprocal %265 {approx = true} : vector<2x8x1xf32> -> vector<2x8x1xf32>
    %267 = vector.broadcast %266 : vector<2x8x1xf32> to vector<2x8x16xf32>
    %268 = arith.mulf %263, %267 : vector<2x8x16xf32>
    "tpu.trace_start"() <{level = 10 : i32, message = "bqk,bkd->bqd"}> : () -> ()
    %cst_127 = arith.constant dense<0.000000e+00> : vector<2x8x8xf32>
    %269 = tpu.matmul %268, %257, %cst_127 {dimension_numbers = #tpu.dot_dimension_numbers<[2], [1], [1], [2], [0, 0, 0, 1, 1, 2], [0], [0]>} : vector<2x8x16xf32>, vector<2x16x8xf32>, vector<2x8x8xf32> -> vector<2x8x8xf32>
    "tpu.trace_stop"() : () -> ()
    %270 = vector.shape_cast %269 : vector<2x8x8xf32> to vector<16x8xf32>
    %cst_128 = arith.constant dense<0.000000e+00> : vector<16x32xf32>
    %271 = tpu.matmul %270, %248, %cst_128 {dimension_numbers = #tpu.dot_dimension_numbers<[1], [0], [0], [1], [0, 0, 1, 1], [], []>} : vector<16x8xf32>, vector<8x32xf32>, vector<16x32xf32> -> vector<16x32xf32>
    %272 = arith.addf %244, %271 : vector<16x32xf32>
    %c713 = arith.constant 713 : index
    %c0_129 = arith.constant 0 : index
    %273 = vector.load %arg2[%c713, %c0_129] : memref<744x128xf32, #tpu.memory_space<vmem>>, vector<1x32xf32>
    %274 = vector.broadcast %273 : vector<1x32xf32> to vector<16x32xf32>
    %275 = arith.addf %272, %274 : vector<16x32xf32>
    %276 = arith.addf %158, %275 : vector<16x32xf32>
    %c718 = arith.constant 718 : index
    %c0_130 = arith.constant 0 : index
    %277 = vector.load %arg2[%c718, %c0_130] : memref<744x128xf32, #tpu.memory_space<vmem>>, vector<1x32xf32>
    %c719 = arith.constant 719 : index
    %c0_131 = arith.constant 0 : index
    %278 = vector.load %arg2[%c719, %c0_131] : memref<744x128xf32, #tpu.memory_space<vmem>>, vector<1x32xf32>
    %cst_132 = arith.constant dense<0.000000e+00> : vector<16xf32>
    %279 = vector.multi_reduction <add>, %276, %cst_132 [1] : vector<16x32xf32> to vector<16xf32>
    %280 = vector.shape_cast %279 : vector<16xf32> to vector<16x1xf32>
    %cst_133 = arith.constant 3.200000e+01 : f32
    %281 = vector.broadcast %cst_133 : f32 to vector<16x1xf32>
    %282 = arith.divf %280, %281 : vector<16x1xf32>
    %283 = vector.broadcast %282 : vector<16x1xf32> to vector<16x32xf32>
    %284 = arith.subf %276, %283 : vector<16x32xf32>
    %285 = arith.mulf %284, %284 : vector<16x32xf32>
    %cst_134 = arith.constant dense<0.000000e+00> : vector<16xf32>
    %286 = vector.multi_reduction <add>, %285, %cst_134 [1] : vector<16x32xf32> to vector<16xf32>
    %287 = vector.shape_cast %286 : vector<16xf32> to vector<16x1xf32>
    %cst_135 = arith.constant 3.200000e+01 : f32
    %288 = vector.broadcast %cst_135 : f32 to vector<16x1xf32>
    %289 = arith.divf %287, %288 : vector<16x1xf32>
    %290 = vector.broadcast %282 : vector<16x1xf32> to vector<16x32xf32>
    %291 = arith.subf %276, %290 : vector<16x32xf32>
    %cst_136 = arith.constant 9.99999974E-6 : f32
    %292 = vector.broadcast %cst_136 : f32 to vector<16x1xf32>
    %293 = arith.addf %289, %292 : vector<16x1xf32>
    %294 = math.rsqrt %293 : vector<16x1xf32>
    %295 = vector.broadcast %294 : vector<16x1xf32> to vector<16x32xf32>
    %296 = arith.mulf %291, %295 : vector<16x32xf32>
    %297 = vector.broadcast %277 : vector<1x32xf32> to vector<16x32xf32>
    %298 = arith.mulf %296, %297 : vector<16x32xf32>
    %299 = vector.broadcast %278 : vector<1x32xf32> to vector<16x32xf32>
    %300 = arith.addf %298, %299 : vector<16x32xf32>
    %c256 = arith.constant 256 : index
    %c0_137 = arith.constant 0 : index
    %301 = vector.load %arg2[%c256, %c0_137] : memref<744x128xf32, #tpu.memory_space<vmem>>, vector<32x64xf32>
    %cst_138 = arith.constant dense<0.000000e+00> : vector<16x64xf32>
    %302 = tpu.matmul %300, %301, %cst_138 {dimension_numbers = #tpu.dot_dimension_numbers<[1], [0], [0], [1], [0, 0, 1, 1], [], []>} : vector<16x32xf32>, vector<32x64xf32>, vector<16x64xf32> -> vector<16x64xf32>
    %c714 = arith.constant 714 : index
    %c0_139 = arith.constant 0 : index
    %303 = vector.load %arg2[%c714, %c0_139] : memref<744x128xf32, #tpu.memory_space<vmem>>, vector<1x64xf32>
    %304 = vector.broadcast %303 : vector<1x64xf32> to vector<16x64xf32>
    %305 = arith.addf %302, %304 : vector<16x64xf32>
    %cst_140 = arith.constant 0.000000e+00 : f32
    %306 = vector.broadcast %cst_140 : f32 to vector<16x64xf32>
    %307 = arith.maximumf %305, %306 : vector<16x64xf32>
    %c288 = arith.constant 288 : index
    %c0_141 = arith.constant 0 : index
    %308 = vector.load %arg2[%c288, %c0_141] : memref<744x128xf32, #tpu.memory_space<vmem>>, vector<64x32xf32>
    %cst_142 = arith.constant dense<0.000000e+00> : vector<16x32xf32>
    %309 = tpu.matmul %307, %308, %cst_142 {dimension_numbers = #tpu.dot_dimension_numbers<[1], [0], [0], [1], [0, 0, 1, 1], [], []>} : vector<16x64xf32>, vector<64x32xf32>, vector<16x32xf32> -> vector<16x32xf32>
    %c715 = arith.constant 715 : index
    %c0_143 = arith.constant 0 : index
    %310 = vector.load %arg2[%c715, %c0_143] : memref<744x128xf32, #tpu.memory_space<vmem>>, vector<1x32xf32>
    %311 = vector.broadcast %310 : vector<1x32xf32> to vector<16x32xf32>
    %312 = arith.addf %309, %311 : vector<16x32xf32>
    %313 = arith.addf %300, %312 : vector<16x32xf32>
    %c720 = arith.constant 720 : index
    %c0_144 = arith.constant 0 : index
    %314 = vector.load %arg2[%c720, %c0_144] : memref<744x128xf32, #tpu.memory_space<vmem>>, vector<1x32xf32>
    %c721 = arith.constant 721 : index
    %c0_145 = arith.constant 0 : index
    %315 = vector.load %arg2[%c721, %c0_145] : memref<744x128xf32, #tpu.memory_space<vmem>>, vector<1x32xf32>
    %cst_146 = arith.constant dense<0.000000e+00> : vector<16xf32>
    %316 = vector.multi_reduction <add>, %313, %cst_146 [1] : vector<16x32xf32> to vector<16xf32>
    %317 = vector.shape_cast %316 : vector<16xf32> to vector<16x1xf32>
    %cst_147 = arith.constant 3.200000e+01 : f32
    %318 = vector.broadcast %cst_147 : f32 to vector<16x1xf32>
    %319 = arith.divf %317, %318 : vector<16x1xf32>
    %320 = vector.broadcast %319 : vector<16x1xf32> to vector<16x32xf32>
    %321 = arith.subf %313, %320 : vector<16x32xf32>
    %322 = arith.mulf %321, %321 : vector<16x32xf32>
    %cst_148 = arith.constant dense<0.000000e+00> : vector<16xf32>
    %323 = vector.multi_reduction <add>, %322, %cst_148 [1] : vector<16x32xf32> to vector<16xf32>
    %324 = vector.shape_cast %323 : vector<16xf32> to vector<16x1xf32>
    %cst_149 = arith.constant 3.200000e+01 : f32
    %325 = vector.broadcast %cst_149 : f32 to vector<16x1xf32>
    %326 = arith.divf %324, %325 : vector<16x1xf32>
    %327 = vector.broadcast %319 : vector<16x1xf32> to vector<16x32xf32>
    %328 = arith.subf %313, %327 : vector<16x32xf32>
    %cst_150 = arith.constant 9.99999974E-6 : f32
    %329 = vector.broadcast %cst_150 : f32 to vector<16x1xf32>
    %330 = arith.addf %326, %329 : vector<16x1xf32>
    %331 = math.rsqrt %330 : vector<16x1xf32>
    %332 = vector.broadcast %331 : vector<16x1xf32> to vector<16x32xf32>
    %333 = arith.mulf %328, %332 : vector<16x32xf32>
    %334 = vector.broadcast %314 : vector<1x32xf32> to vector<16x32xf32>
    %335 = arith.mulf %333, %334 : vector<16x32xf32>
    %336 = vector.broadcast %315 : vector<1x32xf32> to vector<16x32xf32>
    %337 = arith.addf %335, %336 : vector<16x32xf32>
    %338 = arith.addf %337, %1 : vector<16x32xf32>
    %cst_151 = arith.constant 0.000000e+00 : f32
    %339 = vector.broadcast %cst_151 : f32 to vector<16x32xf32>
    %cst_152 = arith.constant 0.000000e+00 : f32
    %340 = vector.broadcast %cst_152 : f32 to vector<2x8x16xf32>
    %c352 = arith.constant 352 : index
    %c0_153 = arith.constant 0 : index
    %341 = vector.load %arg2[%c352, %c0_153] : memref<744x128xf32, #tpu.memory_space<vmem>>, vector<8x32xf32>
    %c384 = arith.constant 384 : index
    %c0_154 = arith.constant 0 : index
    %342 = vector.load %arg2[%c384, %c0_154] : memref<744x128xf32, #tpu.memory_space<vmem>>, vector<8x32xf32>
    %c416 = arith.constant 416 : index
    %c0_155 = arith.constant 0 : index
    %343 = vector.load %arg2[%c416, %c0_155] : memref<744x128xf32, #tpu.memory_space<vmem>>, vector<8x32xf32>
    %c448 = arith.constant 448 : index
    %c0_156 = arith.constant 0 : index
    %344 = vector.load %arg2[%c448, %c0_156] : memref<744x128xf32, #tpu.memory_space<vmem>>, vector<8x32xf32>
    %c722 = arith.constant 722 : index
    %c0_157 = arith.constant 0 : index
    %345 = vector.load %arg2[%c722, %c0_157] : memref<744x128xf32, #tpu.memory_space<vmem>>, vector<1x8xf32>
    %cst_158 = arith.constant dense<0.000000e+00> : vector<16x8xf32>
    %346 = tpu.matmul %338, %341, %cst_158 {dimension_numbers = #tpu.dot_dimension_numbers<[1], [1], [0], [0], [0, 0, 1, 0], [], []>} : vector<16x32xf32>, vector<8x32xf32>, vector<16x8xf32> -> vector<16x8xf32>
    %347 = vector.broadcast %345 : vector<1x8xf32> to vector<16x8xf32>
    %348 = arith.addf %346, %347 : vector<16x8xf32>
    %cst_159 = arith.constant dense<0.000000e+00> : vector<32x8xf32>
    %349 = tpu.matmul %5, %342, %cst_159 {dimension_numbers = #tpu.dot_dimension_numbers<[1], [1], [0], [0], [0, 0, 1, 0], [], []>} : vector<32x32xf32>, vector<8x32xf32>, vector<32x8xf32> -> vector<32x8xf32>
    %cst_160 = arith.constant dense<0.000000e+00> : vector<32x8xf32>
    %350 = tpu.matmul %2, %343, %cst_160 {dimension_numbers = #tpu.dot_dimension_numbers<[1], [1], [0], [0], [0, 0, 1, 0], [], []>} : vector<32x32xf32>, vector<8x32xf32>, vector<32x8xf32> -> vector<32x8xf32>
    %351 = vector.shape_cast %348 : vector<16x8xf32> to vector<2x8x8xf32>
    %352 = vector.shape_cast %349 : vector<32x8xf32> to vector<2x16x8xf32>
    %353 = vector.shape_cast %350 : vector<32x8xf32> to vector<2x16x8xf32>
    "tpu.trace_start"() <{level = 10 : i32, message = "bqd,bkd->bqk"}> : () -> ()
    %cst_161 = arith.constant dense<0.000000e+00> : vector<2x8x16xf32>
    %354 = tpu.matmul %351, %352, %cst_161 {dimension_numbers = #tpu.dot_dimension_numbers<[2], [2], [1], [1], [0, 0, 0, 1, 1, 1], [0], [0]>} : vector<2x8x8xf32>, vector<2x16x8xf32>, vector<2x8x16xf32> -> vector<2x8x16xf32>
    "tpu.trace_stop"() : () -> ()
    %cst_162 = arith.constant dense<0xFF800000> : vector<2x8xf32>
    %355 = vector.multi_reduction <maximumf>, %354, %cst_162 [2] : vector<2x8x16xf32> to vector<2x8xf32>
    %356 = vector.shape_cast %355 : vector<2x8xf32> to vector<2x8x1xf32>
    %357 = vector.broadcast %356 : vector<2x8x1xf32> to vector<2x8x16xf32>
    %358 = arith.subf %354, %357 : vector<2x8x16xf32>
    %359 = math.exp %358 : vector<2x8x16xf32>
    %cst_163 = arith.constant dense<0.000000e+00> : vector<2x8xf32>
    %360 = vector.multi_reduction <add>, %359, %cst_163 [2] : vector<2x8x16xf32> to vector<2x8xf32>
    %361 = vector.shape_cast %360 : vector<2x8xf32> to vector<2x8x1xf32>
    %362 = tpu.reciprocal %361 {approx = true} : vector<2x8x1xf32> -> vector<2x8x1xf32>
    %363 = vector.broadcast %362 : vector<2x8x1xf32> to vector<2x8x16xf32>
    %364 = arith.mulf %359, %363 : vector<2x8x16xf32>
    %365 = arith.addf %340, %364 : vector<2x8x16xf32>
    "tpu.trace_start"() <{level = 10 : i32, message = "bqk,bkd->bqd"}> : () -> ()
    %cst_164 = arith.constant dense<0.000000e+00> : vector<2x8x8xf32>
    %366 = tpu.matmul %364, %353, %cst_164 {dimension_numbers = #tpu.dot_dimension_numbers<[2], [1], [1], [2], [0, 0, 0, 1, 1, 2], [0], [0]>} : vector<2x8x16xf32>, vector<2x16x8xf32>, vector<2x8x8xf32> -> vector<2x8x8xf32>
    "tpu.trace_stop"() : () -> ()
    %367 = vector.shape_cast %366 : vector<2x8x8xf32> to vector<16x8xf32>
    %cst_165 = arith.constant dense<0.000000e+00> : vector<16x32xf32>
    %368 = tpu.matmul %367, %344, %cst_165 {dimension_numbers = #tpu.dot_dimension_numbers<[1], [0], [0], [1], [0, 0, 1, 1], [], []>} : vector<16x8xf32>, vector<8x32xf32>, vector<16x32xf32> -> vector<16x32xf32>
    %369 = arith.addf %339, %368 : vector<16x32xf32>
    %c360 = arith.constant 360 : index
    %c0_166 = arith.constant 0 : index
    %370 = vector.load %arg2[%c360, %c0_166] : memref<744x128xf32, #tpu.memory_space<vmem>>, vector<8x32xf32>
    %c392 = arith.constant 392 : index
    %c0_167 = arith.constant 0 : index
    %371 = vector.load %arg2[%c392, %c0_167] : memref<744x128xf32, #tpu.memory_space<vmem>>, vector<8x32xf32>
    %c424 = arith.constant 424 : index
    %c0_168 = arith.constant 0 : index
    %372 = vector.load %arg2[%c424, %c0_168] : memref<744x128xf32, #tpu.memory_space<vmem>>, vector<8x32xf32>
    %c456 = arith.constant 456 : index
    %c0_169 = arith.constant 0 : index
    %373 = vector.load %arg2[%c456, %c0_169] : memref<744x128xf32, #tpu.memory_space<vmem>>, vector<8x32xf32>
    %c723 = arith.constant 723 : index
    %c0_170 = arith.constant 0 : index
    %374 = vector.load %arg2[%c723, %c0_170] : memref<744x128xf32, #tpu.memory_space<vmem>>, vector<1x8xf32>
    %cst_171 = arith.constant dense<0.000000e+00> : vector<16x8xf32>
    %375 = tpu.matmul %338, %370, %cst_171 {dimension_numbers = #tpu.dot_dimension_numbers<[1], [1], [0], [0], [0, 0, 1, 0], [], []>} : vector<16x32xf32>, vector<8x32xf32>, vector<16x8xf32> -> vector<16x8xf32>
    %376 = vector.broadcast %374 : vector<1x8xf32> to vector<16x8xf32>
    %377 = arith.addf %375, %376 : vector<16x8xf32>
    %cst_172 = arith.constant dense<0.000000e+00> : vector<32x8xf32>
    %378 = tpu.matmul %5, %371, %cst_172 {dimension_numbers = #tpu.dot_dimension_numbers<[1], [1], [0], [0], [0, 0, 1, 0], [], []>} : vector<32x32xf32>, vector<8x32xf32>, vector<32x8xf32> -> vector<32x8xf32>
    %cst_173 = arith.constant dense<0.000000e+00> : vector<32x8xf32>
    %379 = tpu.matmul %2, %372, %cst_173 {dimension_numbers = #tpu.dot_dimension_numbers<[1], [1], [0], [0], [0, 0, 1, 0], [], []>} : vector<32x32xf32>, vector<8x32xf32>, vector<32x8xf32> -> vector<32x8xf32>
    %380 = vector.shape_cast %377 : vector<16x8xf32> to vector<2x8x8xf32>
    %381 = vector.shape_cast %378 : vector<32x8xf32> to vector<2x16x8xf32>
    %382 = vector.shape_cast %379 : vector<32x8xf32> to vector<2x16x8xf32>
    "tpu.trace_start"() <{level = 10 : i32, message = "bqd,bkd->bqk"}> : () -> ()
    %cst_174 = arith.constant dense<0.000000e+00> : vector<2x8x16xf32>
    %383 = tpu.matmul %380, %381, %cst_174 {dimension_numbers = #tpu.dot_dimension_numbers<[2], [2], [1], [1], [0, 0, 0, 1, 1, 1], [0], [0]>} : vector<2x8x8xf32>, vector<2x16x8xf32>, vector<2x8x16xf32> -> vector<2x8x16xf32>
    "tpu.trace_stop"() : () -> ()
    %cst_175 = arith.constant dense<0xFF800000> : vector<2x8xf32>
    %384 = vector.multi_reduction <maximumf>, %383, %cst_175 [2] : vector<2x8x16xf32> to vector<2x8xf32>
    %385 = vector.shape_cast %384 : vector<2x8xf32> to vector<2x8x1xf32>
    %386 = vector.broadcast %385 : vector<2x8x1xf32> to vector<2x8x16xf32>
    %387 = arith.subf %383, %386 : vector<2x8x16xf32>
    %388 = math.exp %387 : vector<2x8x16xf32>
    %cst_176 = arith.constant dense<0.000000e+00> : vector<2x8xf32>
    %389 = vector.multi_reduction <add>, %388, %cst_176 [2] : vector<2x8x16xf32> to vector<2x8xf32>
    %390 = vector.shape_cast %389 : vector<2x8xf32> to vector<2x8x1xf32>
    %391 = tpu.reciprocal %390 {approx = true} : vector<2x8x1xf32> -> vector<2x8x1xf32>
    %392 = vector.broadcast %391 : vector<2x8x1xf32> to vector<2x8x16xf32>
    %393 = arith.mulf %388, %392 : vector<2x8x16xf32>
    %394 = arith.addf %365, %393 : vector<2x8x16xf32>
    "tpu.trace_start"() <{level = 10 : i32, message = "bqk,bkd->bqd"}> : () -> ()
    %cst_177 = arith.constant dense<0.000000e+00> : vector<2x8x8xf32>
    %395 = tpu.matmul %393, %382, %cst_177 {dimension_numbers = #tpu.dot_dimension_numbers<[2], [1], [1], [2], [0, 0, 0, 1, 1, 2], [0], [0]>} : vector<2x8x16xf32>, vector<2x16x8xf32>, vector<2x8x8xf32> -> vector<2x8x8xf32>
    "tpu.trace_stop"() : () -> ()
    %396 = vector.shape_cast %395 : vector<2x8x8xf32> to vector<16x8xf32>
    %cst_178 = arith.constant dense<0.000000e+00> : vector<16x32xf32>
    %397 = tpu.matmul %396, %373, %cst_178 {dimension_numbers = #tpu.dot_dimension_numbers<[1], [0], [0], [1], [0, 0, 1, 1], [], []>} : vector<16x8xf32>, vector<8x32xf32>, vector<16x32xf32> -> vector<16x32xf32>
    %398 = arith.addf %369, %397 : vector<16x32xf32>
    %c368 = arith.constant 368 : index
    %c0_179 = arith.constant 0 : index
    %399 = vector.load %arg2[%c368, %c0_179] : memref<744x128xf32, #tpu.memory_space<vmem>>, vector<8x32xf32>
    %c400 = arith.constant 400 : index
    %c0_180 = arith.constant 0 : index
    %400 = vector.load %arg2[%c400, %c0_180] : memref<744x128xf32, #tpu.memory_space<vmem>>, vector<8x32xf32>
    %c432 = arith.constant 432 : index
    %c0_181 = arith.constant 0 : index
    %401 = vector.load %arg2[%c432, %c0_181] : memref<744x128xf32, #tpu.memory_space<vmem>>, vector<8x32xf32>
    %c464 = arith.constant 464 : index
    %c0_182 = arith.constant 0 : index
    %402 = vector.load %arg2[%c464, %c0_182] : memref<744x128xf32, #tpu.memory_space<vmem>>, vector<8x32xf32>
    %c724 = arith.constant 724 : index
    %c0_183 = arith.constant 0 : index
    %403 = vector.load %arg2[%c724, %c0_183] : memref<744x128xf32, #tpu.memory_space<vmem>>, vector<1x8xf32>
    %cst_184 = arith.constant dense<0.000000e+00> : vector<16x8xf32>
    %404 = tpu.matmul %338, %399, %cst_184 {dimension_numbers = #tpu.dot_dimension_numbers<[1], [1], [0], [0], [0, 0, 1, 0], [], []>} : vector<16x32xf32>, vector<8x32xf32>, vector<16x8xf32> -> vector<16x8xf32>
    %405 = vector.broadcast %403 : vector<1x8xf32> to vector<16x8xf32>
    %406 = arith.addf %404, %405 : vector<16x8xf32>
    %cst_185 = arith.constant dense<0.000000e+00> : vector<32x8xf32>
    %407 = tpu.matmul %5, %400, %cst_185 {dimension_numbers = #tpu.dot_dimension_numbers<[1], [1], [0], [0], [0, 0, 1, 0], [], []>} : vector<32x32xf32>, vector<8x32xf32>, vector<32x8xf32> -> vector<32x8xf32>
    %cst_186 = arith.constant dense<0.000000e+00> : vector<32x8xf32>
    %408 = tpu.matmul %2, %401, %cst_186 {dimension_numbers = #tpu.dot_dimension_numbers<[1], [1], [0], [0], [0, 0, 1, 0], [], []>} : vector<32x32xf32>, vector<8x32xf32>, vector<32x8xf32> -> vector<32x8xf32>
    %409 = vector.shape_cast %406 : vector<16x8xf32> to vector<2x8x8xf32>
    %410 = vector.shape_cast %407 : vector<32x8xf32> to vector<2x16x8xf32>
    %411 = vector.shape_cast %408 : vector<32x8xf32> to vector<2x16x8xf32>
    "tpu.trace_start"() <{level = 10 : i32, message = "bqd,bkd->bqk"}> : () -> ()
    %cst_187 = arith.constant dense<0.000000e+00> : vector<2x8x16xf32>
    %412 = tpu.matmul %409, %410, %cst_187 {dimension_numbers = #tpu.dot_dimension_numbers<[2], [2], [1], [1], [0, 0, 0, 1, 1, 1], [0], [0]>} : vector<2x8x8xf32>, vector<2x16x8xf32>, vector<2x8x16xf32> -> vector<2x8x16xf32>
    "tpu.trace_stop"() : () -> ()
    %cst_188 = arith.constant dense<0xFF800000> : vector<2x8xf32>
    %413 = vector.multi_reduction <maximumf>, %412, %cst_188 [2] : vector<2x8x16xf32> to vector<2x8xf32>
    %414 = vector.shape_cast %413 : vector<2x8xf32> to vector<2x8x1xf32>
    %415 = vector.broadcast %414 : vector<2x8x1xf32> to vector<2x8x16xf32>
    %416 = arith.subf %412, %415 : vector<2x8x16xf32>
    %417 = math.exp %416 : vector<2x8x16xf32>
    %cst_189 = arith.constant dense<0.000000e+00> : vector<2x8xf32>
    %418 = vector.multi_reduction <add>, %417, %cst_189 [2] : vector<2x8x16xf32> to vector<2x8xf32>
    %419 = vector.shape_cast %418 : vector<2x8xf32> to vector<2x8x1xf32>
    %420 = tpu.reciprocal %419 {approx = true} : vector<2x8x1xf32> -> vector<2x8x1xf32>
    %421 = vector.broadcast %420 : vector<2x8x1xf32> to vector<2x8x16xf32>
    %422 = arith.mulf %417, %421 : vector<2x8x16xf32>
    %423 = arith.addf %394, %422 : vector<2x8x16xf32>
    "tpu.trace_start"() <{level = 10 : i32, message = "bqk,bkd->bqd"}> : () -> ()
    %cst_190 = arith.constant dense<0.000000e+00> : vector<2x8x8xf32>
    %424 = tpu.matmul %422, %411, %cst_190 {dimension_numbers = #tpu.dot_dimension_numbers<[2], [1], [1], [2], [0, 0, 0, 1, 1, 2], [0], [0]>} : vector<2x8x16xf32>, vector<2x16x8xf32>, vector<2x8x8xf32> -> vector<2x8x8xf32>
    "tpu.trace_stop"() : () -> ()
    %425 = vector.shape_cast %424 : vector<2x8x8xf32> to vector<16x8xf32>
    %cst_191 = arith.constant dense<0.000000e+00> : vector<16x32xf32>
    %426 = tpu.matmul %425, %402, %cst_191 {dimension_numbers = #tpu.dot_dimension_numbers<[1], [0], [0], [1], [0, 0, 1, 1], [], []>} : vector<16x8xf32>, vector<8x32xf32>, vector<16x32xf32> -> vector<16x32xf32>
    %427 = arith.addf %398, %426 : vector<16x32xf32>
    %c376 = arith.constant 376 : index
    %c0_192 = arith.constant 0 : index
    %428 = vector.load %arg2[%c376, %c0_192] : memref<744x128xf32, #tpu.memory_space<vmem>>, vector<8x32xf32>
    %c408 = arith.constant 408 : index
    %c0_193 = arith.constant 0 : index
    %429 = vector.load %arg2[%c408, %c0_193] : memref<744x128xf32, #tpu.memory_space<vmem>>, vector<8x32xf32>
    %c440 = arith.constant 440 : index
    %c0_194 = arith.constant 0 : index
    %430 = vector.load %arg2[%c440, %c0_194] : memref<744x128xf32, #tpu.memory_space<vmem>>, vector<8x32xf32>
    %c472 = arith.constant 472 : index
    %c0_195 = arith.constant 0 : index
    %431 = vector.load %arg2[%c472, %c0_195] : memref<744x128xf32, #tpu.memory_space<vmem>>, vector<8x32xf32>
    %c725 = arith.constant 725 : index
    %c0_196 = arith.constant 0 : index
    %432 = vector.load %arg2[%c725, %c0_196] : memref<744x128xf32, #tpu.memory_space<vmem>>, vector<1x8xf32>
    %cst_197 = arith.constant dense<0.000000e+00> : vector<16x8xf32>
    %433 = tpu.matmul %338, %428, %cst_197 {dimension_numbers = #tpu.dot_dimension_numbers<[1], [1], [0], [0], [0, 0, 1, 0], [], []>} : vector<16x32xf32>, vector<8x32xf32>, vector<16x8xf32> -> vector<16x8xf32>
    %434 = vector.broadcast %432 : vector<1x8xf32> to vector<16x8xf32>
    %435 = arith.addf %433, %434 : vector<16x8xf32>
    %cst_198 = arith.constant dense<0.000000e+00> : vector<32x8xf32>
    %436 = tpu.matmul %5, %429, %cst_198 {dimension_numbers = #tpu.dot_dimension_numbers<[1], [1], [0], [0], [0, 0, 1, 0], [], []>} : vector<32x32xf32>, vector<8x32xf32>, vector<32x8xf32> -> vector<32x8xf32>
    %cst_199 = arith.constant dense<0.000000e+00> : vector<32x8xf32>
    %437 = tpu.matmul %2, %430, %cst_199 {dimension_numbers = #tpu.dot_dimension_numbers<[1], [1], [0], [0], [0, 0, 1, 0], [], []>} : vector<32x32xf32>, vector<8x32xf32>, vector<32x8xf32> -> vector<32x8xf32>
    %438 = vector.shape_cast %435 : vector<16x8xf32> to vector<2x8x8xf32>
    %439 = vector.shape_cast %436 : vector<32x8xf32> to vector<2x16x8xf32>
    %440 = vector.shape_cast %437 : vector<32x8xf32> to vector<2x16x8xf32>
    "tpu.trace_start"() <{level = 10 : i32, message = "bqd,bkd->bqk"}> : () -> ()
    %cst_200 = arith.constant dense<0.000000e+00> : vector<2x8x16xf32>
    %441 = tpu.matmul %438, %439, %cst_200 {dimension_numbers = #tpu.dot_dimension_numbers<[2], [2], [1], [1], [0, 0, 0, 1, 1, 1], [0], [0]>} : vector<2x8x8xf32>, vector<2x16x8xf32>, vector<2x8x16xf32> -> vector<2x8x16xf32>
    "tpu.trace_stop"() : () -> ()
    %cst_201 = arith.constant dense<0xFF800000> : vector<2x8xf32>
    %442 = vector.multi_reduction <maximumf>, %441, %cst_201 [2] : vector<2x8x16xf32> to vector<2x8xf32>
    %443 = vector.shape_cast %442 : vector<2x8xf32> to vector<2x8x1xf32>
    %444 = vector.broadcast %443 : vector<2x8x1xf32> to vector<2x8x16xf32>
    %445 = arith.subf %441, %444 : vector<2x8x16xf32>
    %446 = math.exp %445 : vector<2x8x16xf32>
    %cst_202 = arith.constant dense<0.000000e+00> : vector<2x8xf32>
    %447 = vector.multi_reduction <add>, %446, %cst_202 [2] : vector<2x8x16xf32> to vector<2x8xf32>
    %448 = vector.shape_cast %447 : vector<2x8xf32> to vector<2x8x1xf32>
    %449 = tpu.reciprocal %448 {approx = true} : vector<2x8x1xf32> -> vector<2x8x1xf32>
    %450 = vector.broadcast %449 : vector<2x8x1xf32> to vector<2x8x16xf32>
    %451 = arith.mulf %446, %450 : vector<2x8x16xf32>
    %452 = arith.addf %423, %451 : vector<2x8x16xf32>
    "tpu.trace_start"() <{level = 10 : i32, message = "bqk,bkd->bqd"}> : () -> ()
    %cst_203 = arith.constant dense<0.000000e+00> : vector<2x8x8xf32>
    %453 = tpu.matmul %451, %440, %cst_203 {dimension_numbers = #tpu.dot_dimension_numbers<[2], [1], [1], [2], [0, 0, 0, 1, 1, 2], [0], [0]>} : vector<2x8x16xf32>, vector<2x16x8xf32>, vector<2x8x8xf32> -> vector<2x8x8xf32>
    "tpu.trace_stop"() : () -> ()
    %454 = vector.shape_cast %453 : vector<2x8x8xf32> to vector<16x8xf32>
    %cst_204 = arith.constant dense<0.000000e+00> : vector<16x32xf32>
    %455 = tpu.matmul %454, %431, %cst_204 {dimension_numbers = #tpu.dot_dimension_numbers<[1], [0], [0], [1], [0, 0, 1, 1], [], []>} : vector<16x8xf32>, vector<8x32xf32>, vector<16x32xf32> -> vector<16x32xf32>
    %456 = arith.addf %427, %455 : vector<16x32xf32>
    %c726 = arith.constant 726 : index
    %c0_205 = arith.constant 0 : index
    %457 = vector.load %arg2[%c726, %c0_205] : memref<744x128xf32, #tpu.memory_space<vmem>>, vector<1x32xf32>
    %458 = vector.broadcast %457 : vector<1x32xf32> to vector<16x32xf32>
    %459 = arith.addf %456, %458 : vector<16x32xf32>
    %cst_206 = arith.constant 2.500000e-01 : f32
    %460 = vector.broadcast %cst_206 : f32 to vector<2x8x16xf32>
    %461 = arith.mulf %452, %460 : vector<2x8x16xf32>
    %c1 = arith.constant 1 : index
    %c0_207 = arith.constant 0 : index
    %c0_208 = arith.constant 0 : index
    %c0_209 = arith.constant 0 : index
    %462 = vector.load %arg4[%c1, %c0_207, %c0_208, %c0_209] : memref<2x2x8x16xf32, #tpu.memory_space<vmem>>, vector<1x2x8x16xf32>
    %463 = vector.shape_cast %462 : vector<1x2x8x16xf32> to vector<2x8x16xf32>
    %464 = vector.shape_cast %461 : vector<2x8x16xf32> to vector<1x2x8x16xf32>
    tpu.vector_store %arg4[%c1, %c0_207, %c0_208, %c0_209], %464 {strides = array<i32>} : memref<2x2x8x16xf32, #tpu.memory_space<vmem>>, vector<1x2x8x16xf32>,
    %465 = arith.addf %337, %459 : vector<16x32xf32>
    %c734 = arith.constant 734 : index
    %c0_210 = arith.constant 0 : index
    %466 = vector.load %arg2[%c734, %c0_210] : memref<744x128xf32, #tpu.memory_space<vmem>>, vector<1x32xf32>
    %c735 = arith.constant 735 : index
    %c0_211 = arith.constant 0 : index
    %467 = vector.load %arg2[%c735, %c0_211] : memref<744x128xf32, #tpu.memory_space<vmem>>, vector<1x32xf32>
    %cst_212 = arith.constant dense<0.000000e+00> : vector<16xf32>
    %468 = vector.multi_reduction <add>, %465, %cst_212 [1] : vector<16x32xf32> to vector<16xf32>
    %469 = vector.shape_cast %468 : vector<16xf32> to vector<16x1xf32>
    %cst_213 = arith.constant 3.200000e+01 : f32
    %470 = vector.broadcast %cst_213 : f32 to vector<16x1xf32>
    %471 = arith.divf %469, %470 : vector<16x1xf32>
    %472 = vector.broadcast %471 : vector<16x1xf32> to vector<16x32xf32>
    %473 = arith.subf %465, %472 : vector<16x32xf32>
    %474 = arith.mulf %473, %473 : vector<16x32xf32>
    %cst_214 = arith.constant dense<0.000000e+00> : vector<16xf32>
    %475 = vector.multi_reduction <add>, %474, %cst_214 [1] : vector<16x32xf32> to vector<16xf32>
    %476 = vector.shape_cast %475 : vector<16xf32> to vector<16x1xf32>
    %cst_215 = arith.constant 3.200000e+01 : f32
    %477 = vector.broadcast %cst_215 : f32 to vector<16x1xf32>
    %478 = arith.divf %476, %477 : vector<16x1xf32>
    %479 = vector.broadcast %471 : vector<16x1xf32> to vector<16x32xf32>
    %480 = arith.subf %465, %479 : vector<16x32xf32>
    %cst_216 = arith.constant 9.99999974E-6 : f32
    %481 = vector.broadcast %cst_216 : f32 to vector<16x1xf32>
    %482 = arith.addf %478, %481 : vector<16x1xf32>
    %483 = math.rsqrt %482 : vector<16x1xf32>
    %484 = vector.broadcast %483 : vector<16x1xf32> to vector<16x32xf32>
    %485 = arith.mulf %480, %484 : vector<16x32xf32>
    %486 = vector.broadcast %466 : vector<1x32xf32> to vector<16x32xf32>
    %487 = arith.mulf %485, %486 : vector<16x32xf32>
    %488 = vector.broadcast %467 : vector<1x32xf32> to vector<16x32xf32>
    %489 = arith.addf %487, %488 : vector<16x32xf32>
    %490 = arith.addf %489, %1 : vector<16x32xf32>
    %cst_217 = arith.constant 0.000000e+00 : f32
    %491 = vector.broadcast %cst_217 : f32 to vector<16x32xf32>
    %c480 = arith.constant 480 : index
    %c0_218 = arith.constant 0 : index
    %492 = vector.load %arg2[%c480, %c0_218] : memref<744x128xf32, #tpu.memory_space<vmem>>, vector<8x32xf32>
    %c512 = arith.constant 512 : index
    %c0_219 = arith.constant 0 : index
    %493 = vector.load %arg2[%c512, %c0_219] : memref<744x128xf32, #tpu.memory_space<vmem>>, vector<8x32xf32>
    %c544 = arith.constant 544 : index
    %c0_220 = arith.constant 0 : index
    %494 = vector.load %arg2[%c544, %c0_220] : memref<744x128xf32, #tpu.memory_space<vmem>>, vector<8x32xf32>
    %c576 = arith.constant 576 : index
    %c0_221 = arith.constant 0 : index
    %495 = vector.load %arg2[%c576, %c0_221] : memref<744x128xf32, #tpu.memory_space<vmem>>, vector<8x32xf32>
    %c727 = arith.constant 727 : index
    %c0_222 = arith.constant 0 : index
    %496 = vector.load %arg2[%c727, %c0_222] : memref<744x128xf32, #tpu.memory_space<vmem>>, vector<1x8xf32>
    %cst_223 = arith.constant dense<0.000000e+00> : vector<16x8xf32>
    %497 = tpu.matmul %490, %492, %cst_223 {dimension_numbers = #tpu.dot_dimension_numbers<[1], [1], [0], [0], [0, 0, 1, 0], [], []>} : vector<16x32xf32>, vector<8x32xf32>, vector<16x8xf32> -> vector<16x8xf32>
    %498 = vector.broadcast %496 : vector<1x8xf32> to vector<16x8xf32>
    %499 = arith.addf %497, %498 : vector<16x8xf32>
    %cst_224 = arith.constant dense<0.000000e+00> : vector<32x8xf32>
    %500 = tpu.matmul %6, %493, %cst_224 {dimension_numbers = #tpu.dot_dimension_numbers<[1], [1], [0], [0], [0, 0, 1, 0], [], []>} : vector<32x32xf32>, vector<8x32xf32>, vector<32x8xf32> -> vector<32x8xf32>
    %cst_225 = arith.constant dense<0.000000e+00> : vector<32x8xf32>
    %501 = tpu.matmul %3, %494, %cst_225 {dimension_numbers = #tpu.dot_dimension_numbers<[1], [1], [0], [0], [0, 0, 1, 0], [], []>} : vector<32x32xf32>, vector<8x32xf32>, vector<32x8xf32> -> vector<32x8xf32>
    %502 = vector.shape_cast %499 : vector<16x8xf32> to vector<2x8x8xf32>
    %503 = vector.shape_cast %500 : vector<32x8xf32> to vector<2x16x8xf32>
    %504 = vector.shape_cast %501 : vector<32x8xf32> to vector<2x16x8xf32>
    "tpu.trace_start"() <{level = 10 : i32, message = "bqd,bkd->bqk"}> : () -> ()
    %cst_226 = arith.constant dense<0.000000e+00> : vector<2x8x16xf32>
    %505 = tpu.matmul %502, %503, %cst_226 {dimension_numbers = #tpu.dot_dimension_numbers<[2], [2], [1], [1], [0, 0, 0, 1, 1, 1], [0], [0]>} : vector<2x8x8xf32>, vector<2x16x8xf32>, vector<2x8x16xf32> -> vector<2x8x16xf32>
    "tpu.trace_stop"() : () -> ()
    %cst_227 = arith.constant dense<0xFF800000> : vector<2x8xf32>
    %506 = vector.multi_reduction <maximumf>, %505, %cst_227 [2] : vector<2x8x16xf32> to vector<2x8xf32>
    %507 = vector.shape_cast %506 : vector<2x8xf32> to vector<2x8x1xf32>
    %508 = vector.broadcast %507 : vector<2x8x1xf32> to vector<2x8x16xf32>
    %509 = arith.subf %505, %508 : vector<2x8x16xf32>
    %510 = math.exp %509 : vector<2x8x16xf32>
    %cst_228 = arith.constant dense<0.000000e+00> : vector<2x8xf32>
    %511 = vector.multi_reduction <add>, %510, %cst_228 [2] : vector<2x8x16xf32> to vector<2x8xf32>
    %512 = vector.shape_cast %511 : vector<2x8xf32> to vector<2x8x1xf32>
    %513 = tpu.reciprocal %512 {approx = true} : vector<2x8x1xf32> -> vector<2x8x1xf32>
    %514 = vector.broadcast %513 : vector<2x8x1xf32> to vector<2x8x16xf32>
    %515 = arith.mulf %510, %514 : vector<2x8x16xf32>
    "tpu.trace_start"() <{level = 10 : i32, message = "bqk,bkd->bqd"}> : () -> ()
    %cst_229 = arith.constant dense<0.000000e+00> : vector<2x8x8xf32>
    %516 = tpu.matmul %515, %504, %cst_229 {dimension_numbers = #tpu.dot_dimension_numbers<[2], [1], [1], [2], [0, 0, 0, 1, 1, 2], [0], [0]>} : vector<2x8x16xf32>, vector<2x16x8xf32>, vector<2x8x8xf32> -> vector<2x8x8xf32>
    "tpu.trace_stop"() : () -> ()
    %517 = vector.shape_cast %516 : vector<2x8x8xf32> to vector<16x8xf32>
    %cst_230 = arith.constant dense<0.000000e+00> : vector<16x32xf32>
    %518 = tpu.matmul %517, %495, %cst_230 {dimension_numbers = #tpu.dot_dimension_numbers<[1], [0], [0], [1], [0, 0, 1, 1], [], []>} : vector<16x8xf32>, vector<8x32xf32>, vector<16x32xf32> -> vector<16x32xf32>
    %519 = arith.addf %491, %518 : vector<16x32xf32>
    %c488 = arith.constant 488 : index
    %c0_231 = arith.constant 0 : index
    %520 = vector.load %arg2[%c488, %c0_231] : memref<744x128xf32, #tpu.memory_space<vmem>>, vector<8x32xf32>
    %c520 = arith.constant 520 : index
    %c0_232 = arith.constant 0 : index
    %521 = vector.load %arg2[%c520, %c0_232] : memref<744x128xf32, #tpu.memory_space<vmem>>, vector<8x32xf32>
    %c552 = arith.constant 552 : index
    %c0_233 = arith.constant 0 : index
    %522 = vector.load %arg2[%c552, %c0_233] : memref<744x128xf32, #tpu.memory_space<vmem>>, vector<8x32xf32>
    %c584 = arith.constant 584 : index
    %c0_234 = arith.constant 0 : index
    %523 = vector.load %arg2[%c584, %c0_234] : memref<744x128xf32, #tpu.memory_space<vmem>>, vector<8x32xf32>
    %c728 = arith.constant 728 : index
    %c0_235 = arith.constant 0 : index
    %524 = vector.load %arg2[%c728, %c0_235] : memref<744x128xf32, #tpu.memory_space<vmem>>, vector<1x8xf32>
    %cst_236 = arith.constant dense<0.000000e+00> : vector<16x8xf32>
    %525 = tpu.matmul %490, %520, %cst_236 {dimension_numbers = #tpu.dot_dimension_numbers<[1], [1], [0], [0], [0, 0, 1, 0], [], []>} : vector<16x32xf32>, vector<8x32xf32>, vector<16x8xf32> -> vector<16x8xf32>
    %526 = vector.broadcast %524 : vector<1x8xf32> to vector<16x8xf32>
    %527 = arith.addf %525, %526 : vector<16x8xf32>
    %cst_237 = arith.constant dense<0.000000e+00> : vector<32x8xf32>
    %528 = tpu.matmul %6, %521, %cst_237 {dimension_numbers = #tpu.dot_dimension_numbers<[1], [1], [0], [0], [0, 0, 1, 0], [], []>} : vector<32x32xf32>, vector<8x32xf32>, vector<32x8xf32> -> vector<32x8xf32>
    %cst_238 = arith.constant dense<0.000000e+00> : vector<32x8xf32>
    %529 = tpu.matmul %3, %522, %cst_238 {dimension_numbers = #tpu.dot_dimension_numbers<[1], [1], [0], [0], [0, 0, 1, 0], [], []>} : vector<32x32xf32>, vector<8x32xf32>, vector<32x8xf32> -> vector<32x8xf32>
    %530 = vector.shape_cast %527 : vector<16x8xf32> to vector<2x8x8xf32>
    %531 = vector.shape_cast %528 : vector<32x8xf32> to vector<2x16x8xf32>
    %532 = vector.shape_cast %529 : vector<32x8xf32> to vector<2x16x8xf32>
    "tpu.trace_start"() <{level = 10 : i32, message = "bqd,bkd->bqk"}> : () -> ()
    %cst_239 = arith.constant dense<0.000000e+00> : vector<2x8x16xf32>
    %533 = tpu.matmul %530, %531, %cst_239 {dimension_numbers = #tpu.dot_dimension_numbers<[2], [2], [1], [1], [0, 0, 0, 1, 1, 1], [0], [0]>} : vector<2x8x8xf32>, vector<2x16x8xf32>, vector<2x8x16xf32> -> vector<2x8x16xf32>
    "tpu.trace_stop"() : () -> ()
    %cst_240 = arith.constant dense<0xFF800000> : vector<2x8xf32>
    %534 = vector.multi_reduction <maximumf>, %533, %cst_240 [2] : vector<2x8x16xf32> to vector<2x8xf32>
    %535 = vector.shape_cast %534 : vector<2x8xf32> to vector<2x8x1xf32>
    %536 = vector.broadcast %535 : vector<2x8x1xf32> to vector<2x8x16xf32>
    %537 = arith.subf %533, %536 : vector<2x8x16xf32>
    %538 = math.exp %537 : vector<2x8x16xf32>
    %cst_241 = arith.constant dense<0.000000e+00> : vector<2x8xf32>
    %539 = vector.multi_reduction <add>, %538, %cst_241 [2] : vector<2x8x16xf32> to vector<2x8xf32>
    %540 = vector.shape_cast %539 : vector<2x8xf32> to vector<2x8x1xf32>
    %541 = tpu.reciprocal %540 {approx = true} : vector<2x8x1xf32> -> vector<2x8x1xf32>
    %542 = vector.broadcast %541 : vector<2x8x1xf32> to vector<2x8x16xf32>
    %543 = arith.mulf %538, %542 : vector<2x8x16xf32>
    "tpu.trace_start"() <{level = 10 : i32, message = "bqk,bkd->bqd"}> : () -> ()
    %cst_242 = arith.constant dense<0.000000e+00> : vector<2x8x8xf32>
    %544 = tpu.matmul %543, %532, %cst_242 {dimension_numbers = #tpu.dot_dimension_numbers<[2], [1], [1], [2], [0, 0, 0, 1, 1, 2], [0], [0]>} : vector<2x8x16xf32>, vector<2x16x8xf32>, vector<2x8x8xf32> -> vector<2x8x8xf32>
    "tpu.trace_stop"() : () -> ()
    %545 = vector.shape_cast %544 : vector<2x8x8xf32> to vector<16x8xf32>
    %cst_243 = arith.constant dense<0.000000e+00> : vector<16x32xf32>
    %546 = tpu.matmul %545, %523, %cst_243 {dimension_numbers = #tpu.dot_dimension_numbers<[1], [0], [0], [1], [0, 0, 1, 1], [], []>} : vector<16x8xf32>, vector<8x32xf32>, vector<16x32xf32> -> vector<16x32xf32>
    %547 = arith.addf %519, %546 : vector<16x32xf32>
    %c496 = arith.constant 496 : index
    %c0_244 = arith.constant 0 : index
    %548 = vector.load %arg2[%c496, %c0_244] : memref<744x128xf32, #tpu.memory_space<vmem>>, vector<8x32xf32>
    %c528 = arith.constant 528 : index
    %c0_245 = arith.constant 0 : index
    %549 = vector.load %arg2[%c528, %c0_245] : memref<744x128xf32, #tpu.memory_space<vmem>>, vector<8x32xf32>
    %c560 = arith.constant 560 : index
    %c0_246 = arith.constant 0 : index
    %550 = vector.load %arg2[%c560, %c0_246] : memref<744x128xf32, #tpu.memory_space<vmem>>, vector<8x32xf32>
    %c592 = arith.constant 592 : index
    %c0_247 = arith.constant 0 : index
    %551 = vector.load %arg2[%c592, %c0_247] : memref<744x128xf32, #tpu.memory_space<vmem>>, vector<8x32xf32>
    %c729 = arith.constant 729 : index
    %c0_248 = arith.constant 0 : index
    %552 = vector.load %arg2[%c729, %c0_248] : memref<744x128xf32, #tpu.memory_space<vmem>>, vector<1x8xf32>
    %cst_249 = arith.constant dense<0.000000e+00> : vector<16x8xf32>
    %553 = tpu.matmul %490, %548, %cst_249 {dimension_numbers = #tpu.dot_dimension_numbers<[1], [1], [0], [0], [0, 0, 1, 0], [], []>} : vector<16x32xf32>, vector<8x32xf32>, vector<16x8xf32> -> vector<16x8xf32>
    %554 = vector.broadcast %552 : vector<1x8xf32> to vector<16x8xf32>
    %555 = arith.addf %553, %554 : vector<16x8xf32>
    %cst_250 = arith.constant dense<0.000000e+00> : vector<32x8xf32>
    %556 = tpu.matmul %6, %549, %cst_250 {dimension_numbers = #tpu.dot_dimension_numbers<[1], [1], [0], [0], [0, 0, 1, 0], [], []>} : vector<32x32xf32>, vector<8x32xf32>, vector<32x8xf32> -> vector<32x8xf32>
    %cst_251 = arith.constant dense<0.000000e+00> : vector<32x8xf32>
    %557 = tpu.matmul %3, %550, %cst_251 {dimension_numbers = #tpu.dot_dimension_numbers<[1], [1], [0], [0], [0, 0, 1, 0], [], []>} : vector<32x32xf32>, vector<8x32xf32>, vector<32x8xf32> -> vector<32x8xf32>
    %558 = vector.shape_cast %555 : vector<16x8xf32> to vector<2x8x8xf32>
    %559 = vector.shape_cast %556 : vector<32x8xf32> to vector<2x16x8xf32>
    %560 = vector.shape_cast %557 : vector<32x8xf32> to vector<2x16x8xf32>
    "tpu.trace_start"() <{level = 10 : i32, message = "bqd,bkd->bqk"}> : () -> ()
    %cst_252 = arith.constant dense<0.000000e+00> : vector<2x8x16xf32>
    %561 = tpu.matmul %558, %559, %cst_252 {dimension_numbers = #tpu.dot_dimension_numbers<[2], [2], [1], [1], [0, 0, 0, 1, 1, 1], [0], [0]>} : vector<2x8x8xf32>, vector<2x16x8xf32>, vector<2x8x16xf32> -> vector<2x8x16xf32>
    "tpu.trace_stop"() : () -> ()
    %cst_253 = arith.constant dense<0xFF800000> : vector<2x8xf32>
    %562 = vector.multi_reduction <maximumf>, %561, %cst_253 [2] : vector<2x8x16xf32> to vector<2x8xf32>
    %563 = vector.shape_cast %562 : vector<2x8xf32> to vector<2x8x1xf32>
    %564 = vector.broadcast %563 : vector<2x8x1xf32> to vector<2x8x16xf32>
    %565 = arith.subf %561, %564 : vector<2x8x16xf32>
    %566 = math.exp %565 : vector<2x8x16xf32>
    %cst_254 = arith.constant dense<0.000000e+00> : vector<2x8xf32>
    %567 = vector.multi_reduction <add>, %566, %cst_254 [2] : vector<2x8x16xf32> to vector<2x8xf32>
    %568 = vector.shape_cast %567 : vector<2x8xf32> to vector<2x8x1xf32>
    %569 = tpu.reciprocal %568 {approx = true} : vector<2x8x1xf32> -> vector<2x8x1xf32>
    %570 = vector.broadcast %569 : vector<2x8x1xf32> to vector<2x8x16xf32>
    %571 = arith.mulf %566, %570 : vector<2x8x16xf32>
    "tpu.trace_start"() <{level = 10 : i32, message = "bqk,bkd->bqd"}> : () -> ()
    %cst_255 = arith.constant dense<0.000000e+00> : vector<2x8x8xf32>
    %572 = tpu.matmul %571, %560, %cst_255 {dimension_numbers = #tpu.dot_dimension_numbers<[2], [1], [1], [2], [0, 0, 0, 1, 1, 2], [0], [0]>} : vector<2x8x16xf32>, vector<2x16x8xf32>, vector<2x8x8xf32> -> vector<2x8x8xf32>
    "tpu.trace_stop"() : () -> ()
    %573 = vector.shape_cast %572 : vector<2x8x8xf32> to vector<16x8xf32>
    %cst_256 = arith.constant dense<0.000000e+00> : vector<16x32xf32>
    %574 = tpu.matmul %573, %551, %cst_256 {dimension_numbers = #tpu.dot_dimension_numbers<[1], [0], [0], [1], [0, 0, 1, 1], [], []>} : vector<16x8xf32>, vector<8x32xf32>, vector<16x32xf32> -> vector<16x32xf32>
    %575 = arith.addf %547, %574 : vector<16x32xf32>
    %c504 = arith.constant 504 : index
    %c0_257 = arith.constant 0 : index
    %576 = vector.load %arg2[%c504, %c0_257] : memref<744x128xf32, #tpu.memory_space<vmem>>, vector<8x32xf32>
    %c536 = arith.constant 536 : index
    %c0_258 = arith.constant 0 : index
    %577 = vector.load %arg2[%c536, %c0_258] : memref<744x128xf32, #tpu.memory_space<vmem>>, vector<8x32xf32>
    %c568 = arith.constant 568 : index
    %c0_259 = arith.constant 0 : index
    %578 = vector.load %arg2[%c568, %c0_259] : memref<744x128xf32, #tpu.memory_space<vmem>>, vector<8x32xf32>
    %c600 = arith.constant 600 : index
    %c0_260 = arith.constant 0 : index
    %579 = vector.load %arg2[%c600, %c0_260] : memref<744x128xf32, #tpu.memory_space<vmem>>, vector<8x32xf32>
    %c730 = arith.constant 730 : index
    %c0_261 = arith.constant 0 : index
    %580 = vector.load %arg2[%c730, %c0_261] : memref<744x128xf32, #tpu.memory_space<vmem>>, vector<1x8xf32>
    %cst_262 = arith.constant dense<0.000000e+00> : vector<16x8xf32>
    %581 = tpu.matmul %490, %576, %cst_262 {dimension_numbers = #tpu.dot_dimension_numbers<[1], [1], [0], [0], [0, 0, 1, 0], [], []>} : vector<16x32xf32>, vector<8x32xf32>, vector<16x8xf32> -> vector<16x8xf32>
    %582 = vector.broadcast %580 : vector<1x8xf32> to vector<16x8xf32>
    %583 = arith.addf %581, %582 : vector<16x8xf32>
    %cst_263 = arith.constant dense<0.000000e+00> : vector<32x8xf32>
    %584 = tpu.matmul %6, %577, %cst_263 {dimension_numbers = #tpu.dot_dimension_numbers<[1], [1], [0], [0], [0, 0, 1, 0], [], []>} : vector<32x32xf32>, vector<8x32xf32>, vector<32x8xf32> -> vector<32x8xf32>
    %cst_264 = arith.constant dense<0.000000e+00> : vector<32x8xf32>
    %585 = tpu.matmul %3, %578, %cst_264 {dimension_numbers = #tpu.dot_dimension_numbers<[1], [1], [0], [0], [0, 0, 1, 0], [], []>} : vector<32x32xf32>, vector<8x32xf32>, vector<32x8xf32> -> vector<32x8xf32>
    %586 = vector.shape_cast %583 : vector<16x8xf32> to vector<2x8x8xf32>
    %587 = vector.shape_cast %584 : vector<32x8xf32> to vector<2x16x8xf32>
    %588 = vector.shape_cast %585 : vector<32x8xf32> to vector<2x16x8xf32>
    "tpu.trace_start"() <{level = 10 : i32, message = "bqd,bkd->bqk"}> : () -> ()
    %cst_265 = arith.constant dense<0.000000e+00> : vector<2x8x16xf32>
    %589 = tpu.matmul %586, %587, %cst_265 {dimension_numbers = #tpu.dot_dimension_numbers<[2], [2], [1], [1], [0, 0, 0, 1, 1, 1], [0], [0]>} : vector<2x8x8xf32>, vector<2x16x8xf32>, vector<2x8x16xf32> -> vector<2x8x16xf32>
    "tpu.trace_stop"() : () -> ()
    %cst_266 = arith.constant dense<0xFF800000> : vector<2x8xf32>
    %590 = vector.multi_reduction <maximumf>, %589, %cst_266 [2] : vector<2x8x16xf32> to vector<2x8xf32>
    %591 = vector.shape_cast %590 : vector<2x8xf32> to vector<2x8x1xf32>
    %592 = vector.broadcast %591 : vector<2x8x1xf32> to vector<2x8x16xf32>
    %593 = arith.subf %589, %592 : vector<2x8x16xf32>
    %594 = math.exp %593 : vector<2x8x16xf32>
    %cst_267 = arith.constant dense<0.000000e+00> : vector<2x8xf32>
    %595 = vector.multi_reduction <add>, %594, %cst_267 [2] : vector<2x8x16xf32> to vector<2x8xf32>
    %596 = vector.shape_cast %595 : vector<2x8xf32> to vector<2x8x1xf32>
    %597 = tpu.reciprocal %596 {approx = true} : vector<2x8x1xf32> -> vector<2x8x1xf32>
    %598 = vector.broadcast %597 : vector<2x8x1xf32> to vector<2x8x16xf32>
    %599 = arith.mulf %594, %598 : vector<2x8x16xf32>
    "tpu.trace_start"() <{level = 10 : i32, message = "bqk,bkd->bqd"}> : () -> ()
    %cst_268 = arith.constant dense<0.000000e+00> : vector<2x8x8xf32>
    %600 = tpu.matmul %599, %588, %cst_268 {dimension_numbers = #tpu.dot_dimension_numbers<[2], [1], [1], [2], [0, 0, 0, 1, 1, 2], [0], [0]>} : vector<2x8x16xf32>, vector<2x16x8xf32>, vector<2x8x8xf32> -> vector<2x8x8xf32>
    "tpu.trace_stop"() : () -> ()
    %601 = vector.shape_cast %600 : vector<2x8x8xf32> to vector<16x8xf32>
    %cst_269 = arith.constant dense<0.000000e+00> : vector<16x32xf32>
    %602 = tpu.matmul %601, %579, %cst_269 {dimension_numbers = #tpu.dot_dimension_numbers<[1], [0], [0], [1], [0, 0, 1, 1], [], []>} : vector<16x8xf32>, vector<8x32xf32>, vector<16x32xf32> -> vector<16x32xf32>
    %603 = arith.addf %575, %602 : vector<16x32xf32>
    %c731 = arith.constant 731 : index
    %c0_270 = arith.constant 0 : index
    %604 = vector.load %arg2[%c731, %c0_270] : memref<744x128xf32, #tpu.memory_space<vmem>>, vector<1x32xf32>
    %605 = vector.broadcast %604 : vector<1x32xf32> to vector<16x32xf32>
    %606 = arith.addf %603, %605 : vector<16x32xf32>
    %607 = arith.addf %489, %606 : vector<16x32xf32>
    %c736 = arith.constant 736 : index
    %c0_271 = arith.constant 0 : index
    %608 = vector.load %arg2[%c736, %c0_271] : memref<744x128xf32, #tpu.memory_space<vmem>>, vector<1x32xf32>
    %c737 = arith.constant 737 : index
    %c0_272 = arith.constant 0 : index
    %609 = vector.load %arg2[%c737, %c0_272] : memref<744x128xf32, #tpu.memory_space<vmem>>, vector<1x32xf32>
    %cst_273 = arith.constant dense<0.000000e+00> : vector<16xf32>
    %610 = vector.multi_reduction <add>, %607, %cst_273 [1] : vector<16x32xf32> to vector<16xf32>
    %611 = vector.shape_cast %610 : vector<16xf32> to vector<16x1xf32>
    %cst_274 = arith.constant 3.200000e+01 : f32
    %612 = vector.broadcast %cst_274 : f32 to vector<16x1xf32>
    %613 = arith.divf %611, %612 : vector<16x1xf32>
    %614 = vector.broadcast %613 : vector<16x1xf32> to vector<16x32xf32>
    %615 = arith.subf %607, %614 : vector<16x32xf32>
    %616 = arith.mulf %615, %615 : vector<16x32xf32>
    %cst_275 = arith.constant dense<0.000000e+00> : vector<16xf32>
    %617 = vector.multi_reduction <add>, %616, %cst_275 [1] : vector<16x32xf32> to vector<16xf32>
    %618 = vector.shape_cast %617 : vector<16xf32> to vector<16x1xf32>
    %cst_276 = arith.constant 3.200000e+01 : f32
    %619 = vector.broadcast %cst_276 : f32 to vector<16x1xf32>
    %620 = arith.divf %618, %619 : vector<16x1xf32>
    %621 = vector.broadcast %613 : vector<16x1xf32> to vector<16x32xf32>
    %622 = arith.subf %607, %621 : vector<16x32xf32>
    %cst_277 = arith.constant 9.99999974E-6 : f32
    %623 = vector.broadcast %cst_277 : f32 to vector<16x1xf32>
    %624 = arith.addf %620, %623 : vector<16x1xf32>
    %625 = math.rsqrt %624 : vector<16x1xf32>
    %626 = vector.broadcast %625 : vector<16x1xf32> to vector<16x32xf32>
    %627 = arith.mulf %622, %626 : vector<16x32xf32>
    %628 = vector.broadcast %608 : vector<1x32xf32> to vector<16x32xf32>
    %629 = arith.mulf %627, %628 : vector<16x32xf32>
    %630 = vector.broadcast %609 : vector<1x32xf32> to vector<16x32xf32>
    %631 = arith.addf %629, %630 : vector<16x32xf32>
    %c608 = arith.constant 608 : index
    %c0_278 = arith.constant 0 : index
    %632 = vector.load %arg2[%c608, %c0_278] : memref<744x128xf32, #tpu.memory_space<vmem>>, vector<32x64xf32>
    %cst_279 = arith.constant dense<0.000000e+00> : vector<16x64xf32>
    %633 = tpu.matmul %631, %632, %cst_279 {dimension_numbers = #tpu.dot_dimension_numbers<[1], [0], [0], [1], [0, 0, 1, 1], [], []>} : vector<16x32xf32>, vector<32x64xf32>, vector<16x64xf32> -> vector<16x64xf32>
    %c732 = arith.constant 732 : index
    %c0_280 = arith.constant 0 : index
    %634 = vector.load %arg2[%c732, %c0_280] : memref<744x128xf32, #tpu.memory_space<vmem>>, vector<1x64xf32>
    %635 = vector.broadcast %634 : vector<1x64xf32> to vector<16x64xf32>
    %636 = arith.addf %633, %635 : vector<16x64xf32>
    %cst_281 = arith.constant 0.000000e+00 : f32
    %637 = vector.broadcast %cst_281 : f32 to vector<16x64xf32>
    %638 = arith.maximumf %636, %637 : vector<16x64xf32>
    %c640 = arith.constant 640 : index
    %c0_282 = arith.constant 0 : index
    %639 = vector.load %arg2[%c640, %c0_282] : memref<744x128xf32, #tpu.memory_space<vmem>>, vector<64x32xf32>
    %cst_283 = arith.constant dense<0.000000e+00> : vector<16x32xf32>
    %640 = tpu.matmul %638, %639, %cst_283 {dimension_numbers = #tpu.dot_dimension_numbers<[1], [0], [0], [1], [0, 0, 1, 1], [], []>} : vector<16x64xf32>, vector<64x32xf32>, vector<16x32xf32> -> vector<16x32xf32>
    %c733 = arith.constant 733 : index
    %c0_284 = arith.constant 0 : index
    %641 = vector.load %arg2[%c733, %c0_284] : memref<744x128xf32, #tpu.memory_space<vmem>>, vector<1x32xf32>
    %642 = vector.broadcast %641 : vector<1x32xf32> to vector<16x32xf32>
    %643 = arith.addf %640, %642 : vector<16x32xf32>
    %644 = arith.addf %631, %643 : vector<16x32xf32>
    %c738 = arith.constant 738 : index
    %c0_285 = arith.constant 0 : index
    %645 = vector.load %arg2[%c738, %c0_285] : memref<744x128xf32, #tpu.memory_space<vmem>>, vector<1x32xf32>
    %c739 = arith.constant 739 : index
    %c0_286 = arith.constant 0 : index
    %646 = vector.load %arg2[%c739, %c0_286] : memref<744x128xf32, #tpu.memory_space<vmem>>, vector<1x32xf32>
    %cst_287 = arith.constant dense<0.000000e+00> : vector<16xf32>
    %647 = vector.multi_reduction <add>, %644, %cst_287 [1] : vector<16x32xf32> to vector<16xf32>
    %648 = vector.shape_cast %647 : vector<16xf32> to vector<16x1xf32>
    %cst_288 = arith.constant 3.200000e+01 : f32
    %649 = vector.broadcast %cst_288 : f32 to vector<16x1xf32>
    %650 = arith.divf %648, %649 : vector<16x1xf32>
    %651 = vector.broadcast %650 : vector<16x1xf32> to vector<16x32xf32>
    %652 = arith.subf %644, %651 : vector<16x32xf32>
    %653 = arith.mulf %652, %652 : vector<16x32xf32>
    %cst_289 = arith.constant dense<0.000000e+00> : vector<16xf32>
    %654 = vector.multi_reduction <add>, %653, %cst_289 [1] : vector<16x32xf32> to vector<16xf32>
    %655 = vector.shape_cast %654 : vector<16xf32> to vector<16x1xf32>
    %cst_290 = arith.constant 3.200000e+01 : f32
    %656 = vector.broadcast %cst_290 : f32 to vector<16x1xf32>
    %657 = arith.divf %655, %656 : vector<16x1xf32>
    %658 = vector.broadcast %650 : vector<16x1xf32> to vector<16x32xf32>
    %659 = arith.subf %644, %658 : vector<16x32xf32>
    %cst_291 = arith.constant 9.99999974E-6 : f32
    %660 = vector.broadcast %cst_291 : f32 to vector<16x1xf32>
    %661 = arith.addf %657, %660 : vector<16x1xf32>
    %662 = math.rsqrt %661 : vector<16x1xf32>
    %663 = vector.broadcast %662 : vector<16x1xf32> to vector<16x32xf32>
    %664 = arith.mulf %659, %663 : vector<16x32xf32>
    %665 = vector.broadcast %645 : vector<1x32xf32> to vector<16x32xf32>
    %666 = arith.mulf %664, %665 : vector<16x32xf32>
    %667 = vector.broadcast %646 : vector<1x32xf32> to vector<16x32xf32>
    %668 = arith.addf %666, %667 : vector<16x32xf32>
    %c740 = arith.constant 740 : index
    %c0_292 = arith.constant 0 : index
    %669 = vector.load %arg2[%c740, %c0_292] : memref<744x128xf32, #tpu.memory_space<vmem>>, vector<1x32xf32>
    %c741 = arith.constant 741 : index
    %c0_293 = arith.constant 0 : index
    %670 = vector.load %arg2[%c741, %c0_293] : memref<744x128xf32, #tpu.memory_space<vmem>>, vector<1x32xf32>
    %cst_294 = arith.constant dense<0.000000e+00> : vector<16xf32>
    %671 = vector.multi_reduction <add>, %668, %cst_294 [1] : vector<16x32xf32> to vector<16xf32>
    %672 = vector.shape_cast %671 : vector<16xf32> to vector<16x1xf32>
    %cst_295 = arith.constant 3.200000e+01 : f32
    %673 = vector.broadcast %cst_295 : f32 to vector<16x1xf32>
    %674 = arith.divf %672, %673 : vector<16x1xf32>
    %675 = vector.broadcast %674 : vector<16x1xf32> to vector<16x32xf32>
    %676 = arith.subf %668, %675 : vector<16x32xf32>
    %677 = arith.mulf %676, %676 : vector<16x32xf32>
    %cst_296 = arith.constant dense<0.000000e+00> : vector<16xf32>
    %678 = vector.multi_reduction <add>, %677, %cst_296 [1] : vector<16x32xf32> to vector<16xf32>
    %679 = vector.shape_cast %678 : vector<16xf32> to vector<16x1xf32>
    %cst_297 = arith.constant 3.200000e+01 : f32
    %680 = vector.broadcast %cst_297 : f32 to vector<16x1xf32>
    %681 = arith.divf %679, %680 : vector<16x1xf32>
    %682 = vector.broadcast %674 : vector<16x1xf32> to vector<16x32xf32>
    %683 = arith.subf %668, %682 : vector<16x32xf32>
    %cst_298 = arith.constant 9.99999974E-6 : f32
    %684 = vector.broadcast %cst_298 : f32 to vector<16x1xf32>
    %685 = arith.addf %681, %684 : vector<16x1xf32>
    %686 = math.rsqrt %685 : vector<16x1xf32>
    %687 = vector.broadcast %686 : vector<16x1xf32> to vector<16x32xf32>
    %688 = arith.mulf %683, %687 : vector<16x32xf32>
    %689 = vector.broadcast %669 : vector<1x32xf32> to vector<16x32xf32>
    %690 = arith.mulf %688, %689 : vector<16x32xf32>
    %691 = vector.broadcast %670 : vector<1x32xf32> to vector<16x32xf32>
    %692 = arith.addf %690, %691 : vector<16x32xf32>
    %c0_299 = arith.constant 0 : index
    %c0_300 = arith.constant 0 : index
    %693 = vector.load %arg3[%c0_299, %c0_300] : memref<16x32xf32, #tpu.memory_space<vmem>>, vector<16x32xf32>
    tpu.vector_store %arg3[%c0_299, %c0_300], %692 {strides = array<i32>} : memref<16x32xf32, #tpu.memory_space<vmem>>, vector<16x32xf32>,
    return
  }
  func.func @transform_0(%arg0: i32) -> (i32, i32) {
    %c0_i32 = arith.constant 0 : i32
    %c0_i32_0 = arith.constant 0 : i32
    %c0_i32_1 = arith.constant 0 : i32
    return %c0_i32, %c0_i32_0 : i32, i32
  }
  func.func @transform_1(%arg0: i32) -> (i32, i32) {
    %c0_i32 = arith.constant 0 : i32
    %c0_i32_0 = arith.constant 0 : i32
    %c0_i32_1 = arith.constant 0 : i32
    return %c0_i32, %c0_i32_0 : i32, i32
  }
  func.func @transform_2(%arg0: i32) -> (i32, i32) {
    %c0_i32 = arith.constant 0 : i32
    %c0_i32_0 = arith.constant 0 : i32
    %c0_i32_1 = arith.constant 0 : i32
    return %c0_i32, %c0_i32_0 : i32, i32
  }
  func.func @transform_3(%arg0: i32) -> (i32, i32, i32, i32) {
    %c0_i32 = arith.constant 0 : i32
    %c0_i32_0 = arith.constant 0 : i32
    %c0_i32_1 = arith.constant 0 : i32
    %c0_i32_2 = arith.constant 0 : i32
    %c0_i32_3 = arith.constant 0 : i32
    return %c0_i32, %c0_i32_0, %c0_i32_1, %c0_i32_2 : i32, i32, i32, i32
  }
}

</mosaic_0001>

<llo_original>
// kernel: tpu_custom_call.1
$region0: #{tpu_custom_call.1}
  #allocation0 [shape = 'u32[]', space=smem, size = 0x4, offset = 0x4, fixed_abs, tag = 'smem constant byte address 0x4 - core index']
  #allocation1 [shape = 'u32[72,128]{1,0:T(1,128)}', space=vmem, size = 0x9000, scoped, tag = 'internal scratch']
  %s0 = inlined_call_operand.vmem [shape: f32[128,32], index: 0, kind: input, shape index: {}]
  %s1 = inlined_call_operand.hbm [shape: f32[744,128], index: 1, kind: input, shape index: {}]
  %s2 = inlined_call_operand.hbm [shape: f32[16,32], index: 2, kind: output, shape index: {0}]
  %s3 = inlined_call_operand.hbm [shape: f32[2,2,8,16], index: 3, kind: output, shape index: {1}]
  %4 = xla_tuple %s2, %s3
  %s5 = sld [smem:[#allocation0]]
  $region30: #{tpu_custom_call.1} parent=0
    _
  %s7 = ssub.s32 1, %s5
  %s8 = scalar_select 0, %s7, %s5
  $region1: #{tpu_custom_call.1} parent=0
    #allocation2 [shape = 'u8[380928]{0}', space=vmem, size = 0x5d000, scoped, tag = 'input window, operand 1, single buffered']
    #allocation3 [shape = 's32[1]{0}', space=sflag, size = 0x4, scoped, tag = 'scoped memory for tpu_custom_call.1']
    #allocation4 [shape = 's32[1]{0}', space=sflag, size = 0x4, scoped, tag = 'scoped memory for tpu_custom_call.1']
    #allocation5 [shape = 'u8[8192]{0}', space=vmem, size = 0x2000, scoped, tag = 'output window, operand 0, single buffered']
    #allocation6 [shape = 'u8[16384]{0}', space=vmem, size = 0x4000, scoped, tag = 'output window, operand 1, single buffered']
    #allocation7 [shape = 's32[1]{0}', space=sflag, size = 0x4, scoped, tag = 'scoped memory for tpu_custom_call.1']
    %9 = vsyncpa [#allocation3], 0
    %10 = vsyncpa [#allocation4], 0
    %11 = vsyncpa [#allocation7], 0
    // Predicated region
    $region2: #{tpu_custom_call.1} parent=1 // pred_check
      _
    $region3: #{tpu_custom_call.1} parent=1 // pred_check_branch
      %13 = sbr.rel (0) target = $region5
    $region4: #{tpu_custom_call.1} parent=1 // pred_region
      _
    $region5: #{tpu_custom_call.1} parent=1 // pred_fallthru
      _
    // Predicated region
    $region6: #{tpu_custom_call.1} parent=1 // pred_check
      _
    $region7: #{tpu_custom_call.1} parent=1 // pred_check_branch
      %15 = sbr.rel (0) target = $region9
    $region8: #{tpu_custom_call.1} parent=1 // pred_region
      %17 = vsyncadd [#allocation3], 0
      %s18 = sshll.u32 %s1, 4
      %s19 = int_to_ptr.hbm [resolvable:$true] %s18
      %s20 = sshll.u32 [#allocation2], 4
      %s21 = int_to_ptr.vmem [resolvable:$true] %s20
      %26 = dma.hbm_to_vmem [thread:$0]  %s19, 11904, %s21, [#allocation3], 128, 128, 8
    $region9: #{tpu_custom_call.1} parent=1 // pred_fallthru
      _
    // Predicated region
    $region10: #{tpu_custom_call.1} parent=1 // pred_check
      _
    $region11: #{tpu_custom_call.1} parent=1 // pred_check_branch
      %28 = sbr.rel (0) target = $region13
    $region12: #{tpu_custom_call.1} parent=1 // pred_region
      %30 = dma.done [#allocation3], 11904
    $region13: #{tpu_custom_call.1} parent=1 // pred_fallthru
      _
    %v31 = vld [vmem:[%s0] sm:$0xff]
    %v32 = vld [vmem:[%s0 + $0x8] sm:$0xff]
    %v33 = vld [vmem:[%s0 + $0x10] sm:$0xff]
    %v34 = vld [vmem:[%s0 + $0x18] sm:$0xff]
    %v35 = vld [vmem:[%s0 + $0x20] sm:$0xff]
    %v36 = vld [vmem:[%s0 + $0x28] sm:$0xff]
    %v37 = vld [vmem:[%s0 + $0x30] sm:$0xff]
    %v38 = vld [vmem:[%s0 + $0x38] sm:$0xff]
    %v39 = vld [vmem:[%s0 + $0x40] sm:$0xff]
    %v40 = vld [vmem:[%s0 + $0x48] sm:$0xff]
    %v41 = vld [vmem:[%s0 + $0x50] sm:$0xff]
    %v42 = vld [vmem:[%s0 + $0x58] sm:$0xff]
    %v43 = vld [vmem:[%s0 + $0x60] sm:$0xff]
    %v44 = vld [vmem:[%s0 + $0x68] sm:$0xff]
    %v45 = vld [vmem:[%s0 + $0x70] sm:$0xff]
    %v46 = vld [vmem:[%s0 + $0x78] sm:$0xff]
    %v47 = vadd.f32 %v35, %v43
    %v48 = vadd.f32 %v36, %v44
    %v49 = vadd.f32 %v37, %v45
    %v50 = vadd.f32 %v38, %v46
    %v51 = vadd.f32 %v39, %v43
    %v52 = vadd.f32 %v40, %v44
    %v53 = vadd.f32 %v41, %v45
    %v54 = vadd.f32 %v42, %v46
    %v55 = vadd.f32 %v31, %v33
    %v56 = vadd.f32 %v32, %v34
    %v57 = vld [vmem:[#allocation2] sm:$0xff]
    %v58 = vld [vmem:[#allocation2 + $0x20] sm:$0xff]
    %v59 = vld [vmem:[#allocation2 + $0x40] sm:$0xff]
    %v60 = vld [vmem:[#allocation2 + $0x60] sm:$0xff]
    %v61 = vld [vmem:[#allocation2 + $0x2c0] sm:$0x1]
    %v62 = vperm.slane %v61, 0
    %vm63 = vcmask 261120
    %v65 = vsel %vm63, %v55, 0
    %v68 = vsel %vm63, %v56, 0
    %v71 = vsel %vm63, %v57, 0
    %73 = vmatpush.xpose.msra.mxu0 0.0
    %74 = vmatpush.xpose.msra.mxu0 0.0
    %75 = vmatpush.xpose.msra.mxu0 0.0
    %76 = vmatpush.xpose.msra.mxu0 0.0
    %77 = vmatpush.xpose.msra.mxu0 0.0
    %78 = vmatpush.xpose.msra.mxu0 0.0
    %79 = vmatpush.xpose.msra.mxu0 0.0
    %80 = vmatpush.xpose.msra.mxu0 0.0
    %81 = vmatpush.xpose.msra.mxu0 0.0
    %82 = vmatpush.xpose.msra.mxu0 0.0
    %83 = vmatpush.xpose.msra.mxu0 0.0
    %84 = vmatpush.xpose.msra.mxu0 0.0
    %85 = vmatpush.xpose.msra.mxu0 0.0
    %86 = vmatpush.xpose.msra.mxu0 0.0
    %87 = vmatpush.xpose.msra.mxu0 0.0
    %88 = vmatpush.xpose.msra.mxu0 %v71
    %89 = vmatmul.f32.gmra.mxu0 %v65
    %v90 = vpop.f32.mrf.mxu0
    %v91 = vadd.f32 %v62, %v90
    %92 = vmatmul.f32.gmra.mxu0 %v68
    %v93 = vpop.f32.mrf.mxu0
    %v94 = vadd.f32 %v62, %v93
    %95 = vdwg.mxu0
    %v97 = vsel %vm63, %v47, 0
    %v100 = vsel %vm63, %v48, 0
    %v103 = vsel %vm63, %v49, 0
    %v106 = vsel %vm63, %v50, 0
    %v109 = vsel %vm63, %v58, 0
    %111 = vmatpush.xpose.msra.mxu0 0.0
    %112 = vmatpush.xpose.msra.mxu0 0.0
    %113 = vmatpush.xpose.msra.mxu0 0.0
    %114 = vmatpush.xpose.msra.mxu0 0.0
    %115 = vmatpush.xpose.msra.mxu0 0.0
    %116 = vmatpush.xpose.msra.mxu0 0.0
    %117 = vmatpush.xpose.msra.mxu0 0.0
    %118 = vmatpush.xpose.msra.mxu0 0.0
    %119 = vmatpush.xpose.msra.mxu0 0.0
    %120 = vmatpush.xpose.msra.mxu0 0.0
    %121 = vmatpush.xpose.msra.mxu0 0.0
    %122 = vmatpush.xpose.msra.mxu0 0.0
    %123 = vmatpush.xpose.msra.mxu0 0.0
    %124 = vmatpush.xpose.msra.mxu0 0.0
    %125 = vmatpush.xpose.msra.mxu0 0.0
    %126 = vmatpush.xpose.msra.mxu0 %v109
    %127 = vmatmul.f32.gmra.mxu0 %v97
    %v128 = vpop.f32.mrf.mxu0
    %v129 = vadd.f32 0.0, %v128
    %130 = vmatmul.f32.gmra.mxu0 %v100
    %v131 = vpop.f32.mrf.mxu0
    %v132 = vadd.f32 0.0, %v131
    %133 = vmatmul.f32.gmra.mxu0 %v103
    %v134 = vpop.f32.mrf.mxu0
    %v135 = vadd.f32 0.0, %v134
    %136 = vmatmul.f32.gmra.mxu0 %v106
    %v137 = vpop.f32.mrf.mxu0
    %v138 = vadd.f32 0.0, %v137
    %139 = vdwg.mxu0
    %v141 = vsel %vm63, %v35, 0
    %v144 = vsel %vm63, %v36, 0
    %v147 = vsel %vm63, %v37, 0
    %v150 = vsel %vm63, %v38, 0
    %v153 = vsel %vm63, %v59, 0
    %155 = vmatpush.xpose.msra.mxu0 0.0
    %156 = vmatpush.xpose.msra.mxu0 0.0
    %157 = vmatpush.xpose.msra.mxu0 0.0
    %158 = vmatpush.xpose.msra.mxu0 0.0
    %159 = vmatpush.xpose.msra.mxu0 0.0
    %160 = vmatpush.xpose.msra.mxu0 0.0
    %161 = vmatpush.xpose.msra.mxu0 0.0
    %162 = vmatpush.xpose.msra.mxu0 0.0
    %163 = vmatpush.xpose.msra.mxu0 0.0
    %164 = vmatpush.xpose.msra.mxu0 0.0
    %165 = vmatpush.xpose.msra.mxu0 0.0
    %166 = vmatpush.xpose.msra.mxu0 0.0
    %167 = vmatpush.xpose.msra.mxu0 0.0
    %168 = vmatpush.xpose.msra.mxu0 0.0
    %169 = vmatpush.xpose.msra.mxu0 0.0
    %170 = vmatpush.xpose.msra.mxu0 %v153
    %171 = vmatmul.f32.gmra.mxu0 %v141
    %v172 = vpop.f32.mrf.mxu0
    %v173 = vadd.f32 0.0, %v172
    %174 = vmatmul.f32.gmra.mxu0 %v144
    %v175 = vpop.f32.mrf.mxu0
    %v176 = vadd.f32 0.0, %v175
    %177 = vmatmul.f32.gmra.mxu0 %v147
    %v178 = vpop.f32.mrf.mxu0
    %v179 = vadd.f32 0.0, %v178
    %180 = vmatmul.f32.gmra.mxu0 %v150
    %v181 = vpop.f32.mrf.mxu0
    %v182 = vadd.f32 0.0, %v181
    %183 = vdwg.mxu0
    %vm184 = vcmask 64512
    %v186 = vsel %vm184, %v91, 0
    %v189 = vsel %vm184, %v129, 0
    %v192 = vsel %vm184, %v132, 0
    %194 = vmatpush.xpose.msra.mxu0 0.0
    %195 = vmatpush.xpose.msra.mxu0 0.0
    %196 = vmatpush.xpose.msra.mxu0 0.0
    %197 = vmatpush.xpose.msra.mxu0 0.0
    %198 = vmatpush.xpose.msra.mxu0 0.0
    %199 = vmatpush.xpose.msra.mxu0 0.0
    %200 = vmatpush.xpose.msra.mxu0 0.0
    %201 = vmatpush.xpose.msra.mxu0 0.0
    %202 = vmatpush.xpose.msra.mxu0 0.0
    %203 = vmatpush.xpose.msra.mxu0 0.0
    %204 = vmatpush.xpose.msra.mxu0 0.0
    %205 = vmatpush.xpose.msra.mxu0 0.0
    %206 = vmatpush.xpose.msra.mxu0 0.0
    %207 = vmatpush.xpose.msra.mxu0 0.0
    %208 = vmatpush.xpose.msra.mxu0 %v192
    %209 = vmatpush.xpose.msra.mxu0 %v189
    %210 = vmatmul.f32.gmra.mxu0 %v186
    %v211 = vpop.f32.mrf.mxu0
    %v212 = vadd.f32 0.0, %v211
    %213 = vdwg.mxu0
    %v215 = vsel %vm184, %v94, 0
    %v218 = vsel %vm184, %v135, 0
    %v221 = vsel %vm184, %v138, 0
    %223 = vmatpush.xpose.msra.mxu0 0.0
    %224 = vmatpush.xpose.msra.mxu0 0.0
    %225 = vmatpush.xpose.msra.mxu0 0.0
    %226 = vmatpush.xpose.msra.mxu0 0.0
    %227 = vmatpush.xpose.msra.mxu0 0.0
    %228 = vmatpush.xpose.msra.mxu0 0.0
    %229 = vmatpush.xpose.msra.mxu0 0.0
    %230 = vmatpush.xpose.msra.mxu0 0.0
    %231 = vmatpush.xpose.msra.mxu0 0.0
    %232 = vmatpush.xpose.msra.mxu0 0.0
    %233 = vmatpush.xpose.msra.mxu0 0.0
    %234 = vmatpush.xpose.msra.mxu0 0.0
    %235 = vmatpush.xpose.msra.mxu0 0.0
    %236 = vmatpush.xpose.msra.mxu0 0.0
    %237 = vmatpush.xpose.msra.mxu0 %v221
    %238 = vmatpush.xpose.msra.mxu0 %v218
    %239 = vmatmul.f32.gmra.mxu0 %v215
    %v240 = vpop.f32.mrf.mxu0
    %v241 = vadd.f32 0.0, %v240
    %242 = vdwg.mxu0
    %vm243 = vcmask 130048
    %v244 = vsel %vm243, %v212, -inf
    %245 = vmax.xlane.f32.xlu0 %v244
    %v246 = vpop.xlane.xlu0 %245
    %v247 = vsel %vm243, %v241, -inf
    %248 = vmax.xlane.f32.xlu0 %v247
    %v249 = vpop.xlane.xlu0 %248
    %v250 = vsub.f32 %v212, %v246
    %v251 = vsub.f32 %v241, %v249
    %v252 = vmul.f32 %v250, 1.442695
    %v253 = vpow.pop %v252
    %v254 = vmul.f32 %v251, 1.442695
    %v255 = vpow.pop %v254
    %v256 = vsel %vm243, %v253, 0.0
    %257 = vadd.xlane.f32.xlu0 %v256
    %v258 = vpop.xlane.xlu0 %257
    %v259 = vsel %vm243, %v255, 0.0
    %260 = vadd.xlane.f32.xlu0 %v259
    %v261 = vpop.xlane.xlu0 %260
    %v262 = vrcp.pop %v258
    %v263 = vrcp.pop %v261
    %v264 = vmul.f32 %v253, %v262
    %v265 = vmul.f32 %v255, %v263
    %v266 = vadd.f32 %v264, 0.0
    %v267 = vadd.f32 %v265, 0.0
    %v269 = vsel %vm243, %v264, 0
    %271 = vmatpush.msra.mxu0 0.0
    %272 = vmatpush.msra.mxu0 0.0
    %273 = vmatpush.msra.mxu0 0.0
    %274 = vmatpush.msra.mxu0 0.0
    %275 = vmatpush.msra.mxu0 0.0
    %276 = vmatpush.msra.mxu0 0.0
    %277 = vmatpush.msra.mxu0 0.0
    %278 = vmatpush.msra.mxu0 0.0
    %279 = vmatpush.msra.mxu0 0.0
    %280 = vmatpush.msra.mxu0 0.0
    %281 = vmatpush.msra.mxu0 0.0
    %282 = vmatpush.msra.mxu0 0.0
    %283 = vmatpush.msra.mxu0 0.0
    %284 = vmatpush.msra.mxu0 0.0
    %285 = vmatpush.msra.mxu0 %v176
    %286 = vmatpush.msra.mxu0 %v173
    %287 = vmatmul.f32.gmra.mxu0 %v269
    %v288 = vpop.f32.mrf.mxu0
    %v289 = vadd.f32 0.0, %v288
    %290 = vdwg.mxu0
    %v292 = vsel %vm243, %v265, 0
    %294 = vmatpush.msra.mxu0 0.0
    %295 = vmatpush.msra.mxu0 0.0
    %296 = vmatpush.msra.mxu0 0.0
    %297 = vmatpush.msra.mxu0 0.0
    %298 = vmatpush.msra.mxu0 0.0
    %299 = vmatpush.msra.mxu0 0.0
    %300 = vmatpush.msra.mxu0 0.0
    %301 = vmatpush.msra.mxu0 0.0
    %302 = vmatpush.msra.mxu0 0.0
    %303 = vmatpush.msra.mxu0 0.0
    %304 = vmatpush.msra.mxu0 0.0
    %305 = vmatpush.msra.mxu0 0.0
    %306 = vmatpush.msra.mxu0 0.0
    %307 = vmatpush.msra.mxu0 0.0
    %308 = vmatpush.msra.mxu0 %v182
    %309 = vmatpush.msra.mxu0 %v179
    %310 = vmatmul.f32.gmra.mxu0 %v292
    %v311 = vpop.f32.mrf.mxu0
    %v312 = vadd.f32 0.0, %v311
    %313 = vdwg.mxu0
    %v314 = vld [vmem:[#allocation2 + $0x8] sm:$0xff]
    %v315 = vld [vmem:[#allocation2 + $0x28] sm:$0xff]
    %v316 = vld [vmem:[#allocation2 + $0x48] sm:$0xff]
    %v317 = vld [vmem:[#allocation2 + $0x68] sm:$0xff]
    %v318 = vld [vmem:[#allocation2 + $0x2c1] sm:$0x1]
    %v319 = vperm.slane %v318, 0
    %v321 = vsel %vm63, %v314, 0
    %323 = vmatpush.xpose.msra.mxu0 0.0
    %324 = vmatpush.xpose.msra.mxu0 0.0
    %325 = vmatpush.xpose.msra.mxu0 0.0
    %326 = vmatpush.xpose.msra.mxu0 0.0
    %327 = vmatpush.xpose.msra.mxu0 0.0
    %328 = vmatpush.xpose.msra.mxu0 0.0
    %329 = vmatpush.xpose.msra.mxu0 0.0
    %330 = vmatpush.xpose.msra.mxu0 0.0
    %331 = vmatpush.xpose.msra.mxu0 0.0
    %332 = vmatpush.xpose.msra.mxu0 0.0
    %333 = vmatpush.xpose.msra.mxu0 0.0
    %334 = vmatpush.xpose.msra.mxu0 0.0
    %335 = vmatpush.xpose.msra.mxu0 0.0
    %336 = vmatpush.xpose.msra.mxu0 0.0
    %337 = vmatpush.xpose.msra.mxu0 0.0
    %338 = vmatpush.xpose.msra.mxu0 %v321
    %339 = vmatmul.f32.gmra.mxu0 %v65
    %v340 = vpop.f32.mrf.mxu0
    %v341 = vadd.f32 %v319, %v340
    %342 = vmatmul.f32.gmra.mxu0 %v68
    %v343 = vpop.f32.mrf.mxu0
    %v344 = vadd.f32 %v319, %v343
    %345 = vdwg.mxu0
    %v347 = vsel %vm63, %v315, 0
    %349 = vmatpush.xpose.msra.mxu0 0.0
    %350 = vmatpush.xpose.msra.mxu0 0.0
    %351 = vmatpush.xpose.msra.mxu0 0.0
    %352 = vmatpush.xpose.msra.mxu0 0.0
    %353 = vmatpush.xpose.msra.mxu0 0.0
    %354 = vmatpush.xpose.msra.mxu0 0.0
    %355 = vmatpush.xpose.msra.mxu0 0.0
    %356 = vmatpush.xpose.msra.mxu0 0.0
    %357 = vmatpush.xpose.msra.mxu0 0.0
    %358 = vmatpush.xpose.msra.mxu0 0.0
    %359 = vmatpush.xpose.msra.mxu0 0.0
    %360 = vmatpush.xpose.msra.mxu0 0.0
    %361 = vmatpush.xpose.msra.mxu0 0.0
    %362 = vmatpush.xpose.msra.mxu0 0.0
    %363 = vmatpush.xpose.msra.mxu0 0.0
    %364 = vmatpush.xpose.msra.mxu0 %v347
    %365 = vmatmul.f32.gmra.mxu0 %v97
    %v366 = vpop.f32.mrf.mxu0
    %v367 = vadd.f32 0.0, %v366
    %368 = vmatmul.f32.gmra.mxu0 %v100
    %v369 = vpop.f32.mrf.mxu0
    %v370 = vadd.f32 0.0, %v369
    %371 = vmatmul.f32.gmra.mxu0 %v103
    %v372 = vpop.f32.mrf.mxu0
    %v373 = vadd.f32 0.0, %v372
    %374 = vmatmul.f32.gmra.mxu0 %v106
    %v375 = vpop.f32.mrf.mxu0
    %v376 = vadd.f32 0.0, %v375
    %377 = vdwg.mxu0
    %v379 = vsel %vm63, %v316, 0
    %381 = vmatpush.xpose.msra.mxu0 0.0
    %382 = vmatpush.xpose.msra.mxu0 0.0
    %383 = vmatpush.xpose.msra.mxu0 0.0
    %384 = vmatpush.xpose.msra.mxu0 0.0
    %385 = vmatpush.xpose.msra.mxu0 0.0
    %386 = vmatpush.xpose.msra.mxu0 0.0
    %387 = vmatpush.xpose.msra.mxu0 0.0
    %388 = vmatpush.xpose.msra.mxu0 0.0
    %389 = vmatpush.xpose.msra.mxu0 0.0
    %390 = vmatpush.xpose.msra.mxu0 0.0
    %391 = vmatpush.xpose.msra.mxu0 0.0
    %392 = vmatpush.xpose.msra.mxu0 0.0
    %393 = vmatpush.xpose.msra.mxu0 0.0
    %394 = vmatpush.xpose.msra.mxu0 0.0
    %395 = vmatpush.xpose.msra.mxu0 0.0
    %396 = vmatpush.xpose.msra.mxu0 %v379
    %397 = vmatmul.f32.gmra.mxu0 %v141
    %v398 = vpop.f32.mrf.mxu0
    %v399 = vadd.f32 0.0, %v398
    %400 = vmatmul.f32.gmra.mxu0 %v144
    %v401 = vpop.f32.mrf.mxu0
    %v402 = vadd.f32 0.0, %v401
    %403 = vmatmul.f32.gmra.mxu0 %v147
    %v404 = vpop.f32.mrf.mxu0
    %v405 = vadd.f32 0.0, %v404
    %406 = vmatmul.f32.gmra.mxu0 %v150
    %v407 = vpop.f32.mrf.mxu0
    %v408 = vadd.f32 0.0, %v407
    %409 = vdwg.mxu0
    %v411 = vsel %vm184, %v341, 0
    %v414 = vsel %vm184, %v367, 0
    %v417 = vsel %vm184, %v370, 0
    %419 = vmatpush.xpose.msra.mxu0 0.0
    %420 = vmatpush.xpose.msra.mxu0 0.0
    %421 = vmatpush.xpose.msra.mxu0 0.0
    %422 = vmatpush.xpose.msra.mxu0 0.0
    %423 = vmatpush.xpose.msra.mxu0 0.0
    %424 = vmatpush.xpose.msra.mxu0 0.0
    %425 = vmatpush.xpose.msra.mxu0 0.0
    %426 = vmatpush.xpose.msra.mxu0 0.0
    %427 = vmatpush.xpose.msra.mxu0 0.0
    %428 = vmatpush.xpose.msra.mxu0 0.0
    %429 = vmatpush.xpose.msra.mxu0 0.0
    %430 = vmatpush.xpose.msra.mxu0 0.0
    %431 = vmatpush.xpose.msra.mxu0 0.0
    %432 = vmatpush.xpose.msra.mxu0 0.0
    %433 = vmatpush.xpose.msra.mxu0 %v417
    %434 = vmatpush.xpose.msra.mxu0 %v414
    %435 = vmatmul.f32.gmra.mxu0 %v411
    %v436 = vpop.f32.mrf.mxu0
    %v437 = vadd.f32 0.0, %v436
    %438 = vdwg.mxu0
    %v440 = vsel %vm184, %v344, 0
    %v443 = vsel %vm184, %v373, 0
    %v446 = vsel %vm184, %v376, 0
    %448 = vmatpush.xpose.msra.mxu0 0.0
    %449 = vmatpush.xpose.msra.mxu0 0.0
    %450 = vmatpush.xpose.msra.mxu0 0.0
    %451 = vmatpush.xpose.msra.mxu0 0.0
    %452 = vmatpush.xpose.msra.mxu0 0.0
    %453 = vmatpush.xpose.msra.mxu0 0.0
    %454 = vmatpush.xpose.msra.mxu0 0.0
    %455 = vmatpush.xpose.msra.mxu0 0.0
    %456 = vmatpush.xpose.msra.mxu0 0.0
    %457 = vmatpush.xpose.msra.mxu0 0.0
    %458 = vmatpush.xpose.msra.mxu0 0.0
    %459 = vmatpush.xpose.msra.mxu0 0.0
    %460 = vmatpush.xpose.msra.mxu0 0.0
    %461 = vmatpush.xpose.msra.mxu0 0.0
    %462 = vmatpush.xpose.msra.mxu0 %v446
    %463 = vmatpush.xpose.msra.mxu0 %v443
    %464 = vmatmul.f32.gmra.mxu0 %v440
    %v465 = vpop.f32.mrf.mxu0
    %v466 = vadd.f32 0.0, %v465
    %467 = vdwg.mxu0
    %v468 = vsel %vm243, %v437, -inf
    %469 = vmax.xlane.f32.xlu0 %v468
    %v470 = vpop.xlane.xlu0 %469
    %v471 = vsel %vm243, %v466, -inf
    %472 = vmax.xlane.f32.xlu0 %v471
    %v473 = vpop.xlane.xlu0 %472
    %v474 = vsub.f32 %v437, %v470
    %v475 = vsub.f32 %v466, %v473
    %v476 = vmul.f32 %v474, 1.442695
    %v477 = vpow.pop %v476
    %v478 = vmul.f32 %v475, 1.442695
    %v479 = vpow.pop %v478
    %v480 = vsel %vm243, %v477, 0.0
    %481 = vadd.xlane.f32.xlu0 %v480
    %v482 = vpop.xlane.xlu0 %481
    %v483 = vsel %vm243, %v479, 0.0
    %484 = vadd.xlane.f32.xlu0 %v483
    %v485 = vpop.xlane.xlu0 %484
    %v486 = vrcp.pop %v482
    %v487 = vrcp.pop %v485
    %v488 = vmul.f32 %v477, %v486
    %v489 = vmul.f32 %v479, %v487
    %v490 = vadd.f32 %v266, %v488
    %v491 = vadd.f32 %v267, %v489
    %v493 = vsel %vm243, %v488, 0
    %495 = vmatpush.msra.mxu0 0.0
    %496 = vmatpush.msra.mxu0 0.0
    %497 = vmatpush.msra.mxu0 0.0
    %498 = vmatpush.msra.mxu0 0.0
    %499 = vmatpush.msra.mxu0 0.0
    %500 = vmatpush.msra.mxu0 0.0
    %501 = vmatpush.msra.mxu0 0.0
    %502 = vmatpush.msra.mxu0 0.0
    %503 = vmatpush.msra.mxu0 0.0
    %504 = vmatpush.msra.mxu0 0.0
    %505 = vmatpush.msra.mxu0 0.0
    %506 = vmatpush.msra.mxu0 0.0
    %507 = vmatpush.msra.mxu0 0.0
    %508 = vmatpush.msra.mxu0 0.0
    %509 = vmatpush.msra.mxu0 %v402
    %510 = vmatpush.msra.mxu0 %v399
    %511 = vmatmul.f32.gmra.mxu0 %v493
    %v512 = vpop.f32.mrf.mxu0
    %v513 = vadd.f32 0.0, %v512
    %514 = vdwg.mxu0
    %v516 = vsel %vm243, %v489, 0
    %518 = vmatpush.msra.mxu0 0.0
    %519 = vmatpush.msra.mxu0 0.0
    %520 = vmatpush.msra.mxu0 0.0
    %521 = vmatpush.msra.mxu0 0.0
    %522 = vmatpush.msra.mxu0 0.0
    %523 = vmatpush.msra.mxu0 0.0
    %524 = vmatpush.msra.mxu0 0.0
    %525 = vmatpush.msra.mxu0 0.0
    %526 = vmatpush.msra.mxu0 0.0
    %527 = vmatpush.msra.mxu0 0.0
    %528 = vmatpush.msra.mxu0 0.0
    %529 = vmatpush.msra.mxu0 0.0
    %530 = vmatpush.msra.mxu0 0.0
    %531 = vmatpush.msra.mxu0 0.0
    %532 = vmatpush.msra.mxu0 %v408
    %533 = vmatpush.msra.mxu0 %v405
    %534 = vmatmul.f32.gmra.mxu0 %v516
    %v535 = vpop.f32.mrf.mxu0
    %v536 = vadd.f32 0.0, %v535
    %537 = vdwg.mxu0
    %v539 = vsel %vm184, %v513, 0
    %v542 = vsel %vm184, %v536, 0
    %544 = vmatpush.msra.mxu0 0.0
    %545 = vmatpush.msra.mxu0 0.0
    %546 = vmatpush.msra.mxu0 0.0
    %547 = vmatpush.msra.mxu0 0.0
    %548 = vmatpush.msra.mxu0 0.0
    %549 = vmatpush.msra.mxu0 0.0
    %550 = vmatpush.msra.mxu0 0.0
    %551 = vmatpush.msra.mxu0 0.0
    %552 = vmatpush.msra.mxu0 0.0
    %553 = vmatpush.msra.mxu0 0.0
    %554 = vmatpush.msra.mxu0 0.0
    %555 = vmatpush.msra.mxu0 0.0
    %556 = vmatpush.msra.mxu0 0.0
    %557 = vmatpush.msra.mxu0 0.0
    %558 = vmatpush.msra.mxu0 0.0
    %559 = vmatpush.msra.mxu0 %v317
    %560 = vmatmul.f32.gmra.mxu0 %v539
    %v561 = vpop.f32.mrf.mxu0
    %v562 = vadd.f32 0.0, %v561
    %563 = vmatmul.f32.gmra.mxu0 %v542
    %v564 = vpop.f32.mrf.mxu0
    %v565 = vadd.f32 0.0, %v564
    %566 = vdwg.mxu0
    %v568 = vsel %vm184, %v289, 0
    %v571 = vsel %vm184, %v312, 0
    %573 = vmatpush.msra.mxu0 0.0
    %574 = vmatpush.msra.mxu0 0.0
    %575 = vmatpush.msra.mxu0 0.0
    %576 = vmatpush.msra.mxu0 0.0
    %577 = vmatpush.msra.mxu0 0.0
    %578 = vmatpush.msra.mxu0 0.0
    %579 = vmatpush.msra.mxu0 0.0
    %580 = vmatpush.msra.mxu0 0.0
    %581 = vmatpush.msra.mxu0 0.0
    %582 = vmatpush.msra.mxu0 0.0
    %583 = vmatpush.msra.mxu0 0.0
    %584 = vmatpush.msra.mxu0 0.0
    %585 = vmatpush.msra.mxu0 0.0
    %586 = vmatpush.msra.mxu0 0.0
    %587 = vmatpush.msra.mxu0 0.0
    %588 = vmatpush.msra.mxu0 %v60
    %589 = vmatmul.f32.gmra.mxu0 %v568
    %v590 = vpop.f32.mrf.mxu0
    %v591 = vadd.f32 %v562, %v590
    %592 = vmatmul.f32.gmra.mxu0 %v571
    %v593 = vpop.f32.mrf.mxu0
    %v594 = vadd.f32 %v565, %v593
    %595 = vdwg.mxu0
    %v596 = vld [vmem:[#allocation2 + $0x10] sm:$0xff]
    %v597 = vld [vmem:[#allocation2 + $0x30] sm:$0xff]
    %v598 = vld [vmem:[#allocation2 + $0x50] sm:$0xff]
    %v599 = vld [vmem:[#allocation2 + $0x70] sm:$0xff]
    %v600 = vld [vmem:[#allocation2 + $0x2c2] sm:$0x1]
    %v601 = vperm.slane %v600, 0
    %v603 = vsel %vm63, %v596, 0
    %605 = vmatpush.xpose.msra.mxu0 0.0
    %606 = vmatpush.xpose.msra.mxu0 0.0
    %607 = vmatpush.xpose.msra.mxu0 0.0
    %608 = vmatpush.xpose.msra.mxu0 0.0
    %609 = vmatpush.xpose.msra.mxu0 0.0
    %610 = vmatpush.xpose.msra.mxu0 0.0
    %611 = vmatpush.xpose.msra.mxu0 0.0
    %612 = vmatpush.xpose.msra.mxu0 0.0
    %613 = vmatpush.xpose.msra.mxu0 0.0
    %614 = vmatpush.xpose.msra.mxu0 0.0
    %615 = vmatpush.xpose.msra.mxu0 0.0
    %616 = vmatpush.xpose.msra.mxu0 0.0
    %617 = vmatpush.xpose.msra.mxu0 0.0
    %618 = vmatpush.xpose.msra.mxu0 0.0
    %619 = vmatpush.xpose.msra.mxu0 0.0
    %620 = vmatpush.xpose.msra.mxu0 %v603
    %621 = vmatmul.f32.gmra.mxu0 %v65
    %v622 = vpop.f32.mrf.mxu0
    %v623 = vadd.f32 %v601, %v622
    %624 = vmatmul.f32.gmra.mxu0 %v68
    %v625 = vpop.f32.mrf.mxu0
    %v626 = vadd.f32 %v601, %v625
    %627 = vdwg.mxu0
    %v629 = vsel %vm63, %v597, 0
    %631 = vmatpush.xpose.msra.mxu0 0.0
    %632 = vmatpush.xpose.msra.mxu0 0.0
    %633 = vmatpush.xpose.msra.mxu0 0.0
    %634 = vmatpush.xpose.msra.mxu0 0.0
    %635 = vmatpush.xpose.msra.mxu0 0.0
    %636 = vmatpush.xpose.msra.mxu0 0.0
    %637 = vmatpush.xpose.msra.mxu0 0.0
    %638 = vmatpush.xpose.msra.mxu0 0.0
    %639 = vmatpush.xpose.msra.mxu0 0.0
    %640 = vmatpush.xpose.msra.mxu0 0.0
    %641 = vmatpush.xpose.msra.mxu0 0.0
    %642 = vmatpush.xpose.msra.mxu0 0.0
    %643 = vmatpush.xpose.msra.mxu0 0.0
    %644 = vmatpush.xpose.msra.mxu0 0.0
    %645 = vmatpush.xpose.msra.mxu0 0.0
    %646 = vmatpush.xpose.msra.mxu0 %v629
    %647 = vmatmul.f32.gmra.mxu0 %v97
    %v648 = vpop.f32.mrf.mxu0
    %v649 = vadd.f32 0.0, %v648
    %650 = vmatmul.f32.gmra.mxu0 %v100
    %v651 = vpop.f32.mrf.mxu0
    %v652 = vadd.f32 0.0, %v651
    %653 = vmatmul.f32.gmra.mxu0 %v103
    %v654 = vpop.f32.mrf.mxu0
    %v655 = vadd.f32 0.0, %v654
    %656 = vmatmul.f32.gmra.mxu0 %v106
    %v657 = vpop.f32.mrf.mxu0
    %v658 = vadd.f32 0.0, %v657
    %659 = vdwg.mxu0
    %v661 = vsel %vm63, %v598, 0
    %663 = vmatpush.xpose.msra.mxu0 0.0
    %664 = vmatpush.xpose.msra.mxu0 0.0
    %665 = vmatpush.xpose.msra.mxu0 0.0
    %666 = vmatpush.xpose.msra.mxu0 0.0
    %667 = vmatpush.xpose.msra.mxu0 0.0
    %668 = vmatpush.xpose.msra.mxu0 0.0
    %669 = vmatpush.xpose.msra.mxu0 0.0
    %670 = vmatpush.xpose.msra.mxu0 0.0
    %671 = vmatpush.xpose.msra.mxu0 0.0
    %672 = vmatpush.xpose.msra.mxu0 0.0
    %673 = vmatpush.xpose.msra.mxu0 0.0
    %674 = vmatpush.xpose.msra.mxu0 0.0
    %675 = vmatpush.xpose.msra.mxu0 0.0
    %676 = vmatpush.xpose.msra.mxu0 0.0
    %677 = vmatpush.xpose.msra.mxu0 0.0
    %678 = vmatpush.xpose.msra.mxu0 %v661
    %679 = vmatmul.f32.gmra.mxu0 %v141
    %v680 = vpop.f32.mrf.mxu0
    %v681 = vadd.f32 0.0, %v680
    %682 = vmatmul.f32.gmra.mxu0 %v144
    %v683 = vpop.f32.mrf.mxu0
    %v684 = vadd.f32 0.0, %v683
    %685 = vmatmul.f32.gmra.mxu0 %v147
    %v686 = vpop.f32.mrf.mxu0
    %v687 = vadd.f32 0.0, %v686
    %688 = vmatmul.f32.gmra.mxu0 %v150
    %v689 = vpop.f32.mrf.mxu0
    %v690 = vadd.f32 0.0, %v689
    %691 = vdwg.mxu0
    %v693 = vsel %vm184, %v623, 0
    %v696 = vsel %vm184, %v649, 0
    %v699 = vsel %vm184, %v652, 0
    %701 = vmatpush.xpose.msra.mxu0 0.0
    %702 = vmatpush.xpose.msra.mxu0 0.0
    %703 = vmatpush.xpose.msra.mxu0 0.0
    %704 = vmatpush.xpose.msra.mxu0 0.0
    %705 = vmatpush.xpose.msra.mxu0 0.0
    %706 = vmatpush.xpose.msra.mxu0 0.0
    %707 = vmatpush.xpose.msra.mxu0 0.0
    %708 = vmatpush.xpose.msra.mxu0 0.0
    %709 = vmatpush.xpose.msra.mxu0 0.0
    %710 = vmatpush.xpose.msra.mxu0 0.0
    %711 = vmatpush.xpose.msra.mxu0 0.0
    %712 = vmatpush.xpose.msra.mxu0 0.0
    %713 = vmatpush.xpose.msra.mxu0 0.0
    %714 = vmatpush.xpose.msra.mxu0 0.0
    %715 = vmatpush.xpose.msra.mxu0 %v699
    %716 = vmatpush.xpose.msra.mxu0 %v696
    %717 = vmatmul.f32.gmra.mxu0 %v693
    %v718 = vpop.f32.mrf.mxu0
    %v719 = vadd.f32 0.0, %v718
    %720 = vdwg.mxu0
    %v722 = vsel %vm184, %v626, 0
    %v725 = vsel %vm184, %v655, 0
    %v728 = vsel %vm184, %v658, 0
    %730 = vmatpush.xpose.msra.mxu0 0.0
    %731 = vmatpush.xpose.msra.mxu0 0.0
    %732 = vmatpush.xpose.msra.mxu0 0.0
    %733 = vmatpush.xpose.msra.mxu0 0.0
    %734 = vmatpush.xpose.msra.mxu0 0.0
    %735 = vmatpush.xpose.msra.mxu0 0.0
    %736 = vmatpush.xpose.msra.mxu0 0.0
    %737 = vmatpush.xpose.msra.mxu0 0.0
    %738 = vmatpush.xpose.msra.mxu0 0.0
    %739 = vmatpush.xpose.msra.mxu0 0.0
    %740 = vmatpush.xpose.msra.mxu0 0.0
    %741 = vmatpush.xpose.msra.mxu0 0.0
    %742 = vmatpush.xpose.msra.mxu0 0.0
    %743 = vmatpush.xpose.msra.mxu0 0.0
    %744 = vmatpush.xpose.msra.mxu0 %v728
    %745 = vmatpush.xpose.msra.mxu0 %v725
    %746 = vmatmul.f32.gmra.mxu0 %v722
    %v747 = vpop.f32.mrf.mxu0
    %v748 = vadd.f32 0.0, %v747
    %749 = vdwg.mxu0
    %v750 = vsel %vm243, %v719, -inf
    %751 = vmax.xlane.f32.xlu0 %v750
    %v752 = vpop.xlane.xlu0 %751
    %v753 = vsel %vm243, %v748, -inf
    %754 = vmax.xlane.f32.xlu0 %v753
    %v755 = vpop.xlane.xlu0 %754
    %v756 = vsub.f32 %v719, %v752
    %v757 = vsub.f32 %v748, %v755
    %v758 = vmul.f32 %v756, 1.442695
    %v759 = vpow.pop %v758
    %v760 = vmul.f32 %v757, 1.442695
    %v761 = vpow.pop %v760
    %v762 = vsel %vm243, %v759, 0.0
    %763 = vadd.xlane.f32.xlu0 %v762
    %v764 = vpop.xlane.xlu0 %763
    %v765 = vsel %vm243, %v761, 0.0
    %766 = vadd.xlane.f32.xlu0 %v765
    %v767 = vpop.xlane.xlu0 %766
    %v768 = vrcp.pop %v764
    %v769 = vrcp.pop %v767
    %v770 = vmul.f32 %v759, %v768
    %v771 = vmul.f32 %v761, %v769
    %v772 = vadd.f32 %v490, %v770
    %v773 = vadd.f32 %v491, %v771
    %v775 = vsel %vm243, %v770, 0
    %777 = vmatpush.msra.mxu0 0.0
    %778 = vmatpush.msra.mxu0 0.0
    %779 = vmatpush.msra.mxu0 0.0
    %780 = vmatpush.msra.mxu0 0.0
    %781 = vmatpush.msra.mxu0 0.0
    %782 = vmatpush.msra.mxu0 0.0
    %783 = vmatpush.msra.mxu0 0.0
    %784 = vmatpush.msra.mxu0 0.0
    %785 = vmatpush.msra.mxu0 0.0
    %786 = vmatpush.msra.mxu0 0.0
    %787 = vmatpush.msra.mxu0 0.0
    %788 = vmatpush.msra.mxu0 0.0
    %789 = vmatpush.msra.mxu0 0.0
    %790 = vmatpush.msra.mxu0 0.0
    %791 = vmatpush.msra.mxu0 %v684
    %792 = vmatpush.msra.mxu0 %v681
    %793 = vmatmul.f32.gmra.mxu0 %v775
    %v794 = vpop.f32.mrf.mxu0
    %v795 = vadd.f32 0.0, %v794
    %796 = vdwg.mxu0
    %v798 = vsel %vm243, %v771, 0
    %800 = vmatpush.msra.mxu0 0.0
    %801 = vmatpush.msra.mxu0 0.0
    %802 = vmatpush.msra.mxu0 0.0
    %803 = vmatpush.msra.mxu0 0.0
    %804 = vmatpush.msra.mxu0 0.0
    %805 = vmatpush.msra.mxu0 0.0
    %806 = vmatpush.msra.mxu0 0.0
    %807 = vmatpush.msra.mxu0 0.0
    %808 = vmatpush.msra.mxu0 0.0
    %809 = vmatpush.msra.mxu0 0.0
    %810 = vmatpush.msra.mxu0 0.0
    %811 = vmatpush.msra.mxu0 0.0
    %812 = vmatpush.msra.mxu0 0.0
    %813 = vmatpush.msra.mxu0 0.0
    %814 = vmatpush.msra.mxu0 %v690
    %815 = vmatpush.msra.mxu0 %v687
    %816 = vmatmul.f32.gmra.mxu0 %v798
    %v817 = vpop.f32.mrf.mxu0
    %v818 = vadd.f32 0.0, %v817
    %819 = vdwg.mxu0
    %v821 = vsel %vm184, %v795, 0
    %v824 = vsel %vm184, %v818, 0
    %826 = vmatpush.msra.mxu0 0.0
    %827 = vmatpush.msra.mxu0 0.0
    %828 = vmatpush.msra.mxu0 0.0
    %829 = vmatpush.msra.mxu0 0.0
    %830 = vmatpush.msra.mxu0 0.0
    %831 = vmatpush.msra.mxu0 0.0
    %832 = vmatpush.msra.mxu0 0.0
    %833 = vmatpush.msra.mxu0 0.0
    %834 = vmatpush.msra.mxu0 0.0
    %835 = vmatpush.msra.mxu0 0.0
    %836 = vmatpush.msra.mxu0 0.0
    %837 = vmatpush.msra.mxu0 0.0
    %838 = vmatpush.msra.mxu0 0.0
    %839 = vmatpush.msra.mxu0 0.0
    %840 = vmatpush.msra.mxu0 0.0
    %841 = vmatpush.msra.mxu0 %v599
    %842 = vmatmul.f32.gmra.mxu0 %v821
    %v843 = vpop.f32.mrf.mxu0
    %v844 = vadd.f32 0.0, %v843
    %845 = vmatmul.f32.gmra.mxu0 %v824
    %v846 = vpop.f32.mrf.mxu0
    %v847 = vadd.f32 0.0, %v846
    %848 = vdwg.mxu0
    %v849 = vadd.f32 %v591, %v844
    %v850 = vadd.f32 %v594, %v847
    %v851 = vld [vmem:[#allocation2 + $0x18] sm:$0xff]
    %v852 = vld [vmem:[#allocation2 + $0x38] sm:$0xff]
    %v853 = vld [vmem:[#allocation2 + $0x58] sm:$0xff]
    %v854 = vld [vmem:[#allocation2 + $0x78] sm:$0xff]
    %v855 = vld [vmem:[#allocation2 + $0x2c3] sm:$0x1]
    %v856 = vperm.slane %v855, 0
    %v858 = vsel %vm63, %v851, 0
    %860 = vmatpush.xpose.msra.mxu0 0.0
    %861 = vmatpush.xpose.msra.mxu0 0.0
    %862 = vmatpush.xpose.msra.mxu0 0.0
    %863 = vmatpush.xpose.msra.mxu0 0.0
    %864 = vmatpush.xpose.msra.mxu0 0.0
    %865 = vmatpush.xpose.msra.mxu0 0.0
    %866 = vmatpush.xpose.msra.mxu0 0.0
    %867 = vmatpush.xpose.msra.mxu0 0.0
    %868 = vmatpush.xpose.msra.mxu0 0.0
    %869 = vmatpush.xpose.msra.mxu0 0.0
    %870 = vmatpush.xpose.msra.mxu0 0.0
    %871 = vmatpush.xpose.msra.mxu0 0.0
    %872 = vmatpush.xpose.msra.mxu0 0.0
    %873 = vmatpush.xpose.msra.mxu0 0.0
    %874 = vmatpush.xpose.msra.mxu0 0.0
    %875 = vmatpush.xpose.msra.mxu0 %v858
    %876 = vmatmul.f32.gmra.mxu0 %v65
    %v877 = vpop.f32.mrf.mxu0
    %v878 = vadd.f32 %v856, %v877
    %879 = vmatmul.f32.gmra.mxu0 %v68
    %v880 = vpop.f32.mrf.mxu0
    %v881 = vadd.f32 %v856, %v880
    %882 = vdwg.mxu0
    %v884 = vsel %vm63, %v852, 0
    %886 = vmatpush.xpose.msra.mxu0 0.0
    %887 = vmatpush.xpose.msra.mxu0 0.0
    %888 = vmatpush.xpose.msra.mxu0 0.0
    %889 = vmatpush.xpose.msra.mxu0 0.0
    %890 = vmatpush.xpose.msra.mxu0 0.0
    %891 = vmatpush.xpose.msra.mxu0 0.0
    %892 = vmatpush.xpose.msra.mxu0 0.0
    %893 = vmatpush.xpose.msra.mxu0 0.0
    %894 = vmatpush.xpose.msra.mxu0 0.0
    %895 = vmatpush.xpose.msra.mxu0 0.0
    %896 = vmatpush.xpose.msra.mxu0 0.0
    %897 = vmatpush.xpose.msra.mxu0 0.0
    %898 = vmatpush.xpose.msra.mxu0 0.0
    %899 = vmatpush.xpose.msra.mxu0 0.0
    %900 = vmatpush.xpose.msra.mxu0 0.0
    %901 = vmatpush.xpose.msra.mxu0 %v884
    %902 = vmatmul.f32.gmra.mxu0 %v97
    %v903 = vpop.f32.mrf.mxu0
    %v904 = vadd.f32 0.0, %v903
    %905 = vmatmul.f32.gmra.mxu0 %v100
    %v906 = vpop.f32.mrf.mxu0
    %v907 = vadd.f32 0.0, %v906
    %908 = vmatmul.f32.gmra.mxu0 %v103
    %v909 = vpop.f32.mrf.mxu0
    %v910 = vadd.f32 0.0, %v909
    %911 = vmatmul.f32.gmra.mxu0 %v106
    %v912 = vpop.f32.mrf.mxu0
    %v913 = vadd.f32 0.0, %v912
    %914 = vdwg.mxu0
    %v916 = vsel %vm63, %v853, 0
    %918 = vmatpush.xpose.msra.mxu0 0.0
    %919 = vmatpush.xpose.msra.mxu0 0.0
    %920 = vmatpush.xpose.msra.mxu0 0.0
    %921 = vmatpush.xpose.msra.mxu0 0.0
    %922 = vmatpush.xpose.msra.mxu0 0.0
    %923 = vmatpush.xpose.msra.mxu0 0.0
    %924 = vmatpush.xpose.msra.mxu0 0.0
    %925 = vmatpush.xpose.msra.mxu0 0.0
    %926 = vmatpush.xpose.msra.mxu0 0.0
    %927 = vmatpush.xpose.msra.mxu0 0.0
    %928 = vmatpush.xpose.msra.mxu0 0.0
    %929 = vmatpush.xpose.msra.mxu0 0.0
    %930 = vmatpush.xpose.msra.mxu0 0.0
    %931 = vmatpush.xpose.msra.mxu0 0.0
    %932 = vmatpush.xpose.msra.mxu0 0.0
    %933 = vmatpush.xpose.msra.mxu0 %v916
    %934 = vmatmul.f32.gmra.mxu0 %v141
    %v935 = vpop.f32.mrf.mxu0
    %v936 = vadd.f32 0.0, %v935
    %937 = vmatmul.f32.gmra.mxu0 %v144
    %v938 = vpop.f32.mrf.mxu0
    %v939 = vadd.f32 0.0, %v938
    %940 = vmatmul.f32.gmra.mxu0 %v147
    %v941 = vpop.f32.mrf.mxu0
    %v942 = vadd.f32 0.0, %v941
    %943 = vmatmul.f32.gmra.mxu0 %v150
    %v944 = vpop.f32.mrf.mxu0
    %v945 = vadd.f32 0.0, %v944
    %946 = vdwg.mxu0
    %v948 = vsel %vm184, %v878, 0
    %v951 = vsel %vm184, %v904, 0
    %v954 = vsel %vm184, %v907, 0
    %956 = vmatpush.xpose.msra.mxu0 0.0
    %957 = vmatpush.xpose.msra.mxu0 0.0
    %958 = vmatpush.xpose.msra.mxu0 0.0
    %959 = vmatpush.xpose.msra.mxu0 0.0
    %960 = vmatpush.xpose.msra.mxu0 0.0
    %961 = vmatpush.xpose.msra.mxu0 0.0
    %962 = vmatpush.xpose.msra.mxu0 0.0
    %963 = vmatpush.xpose.msra.mxu0 0.0
    %964 = vmatpush.xpose.msra.mxu0 0.0
    %965 = vmatpush.xpose.msra.mxu0 0.0
    %966 = vmatpush.xpose.msra.mxu0 0.0
    %967 = vmatpush.xpose.msra.mxu0 0.0
    %968 = vmatpush.xpose.msra.mxu0 0.0
    %969 = vmatpush.xpose.msra.mxu0 0.0
    %970 = vmatpush.xpose.msra.mxu0 %v954
    %971 = vmatpush.xpose.msra.mxu0 %v951
    %972 = vmatmul.f32.gmra.mxu0 %v948
    %v973 = vpop.f32.mrf.mxu0
    %v974 = vadd.f32 0.0, %v973
    %975 = vdwg.mxu0
    %v977 = vsel %vm184, %v881, 0
    %v980 = vsel %vm184, %v910, 0
    %v983 = vsel %vm184, %v913, 0
    %985 = vmatpush.xpose.msra.mxu0 0.0
    %986 = vmatpush.xpose.msra.mxu0 0.0
    %987 = vmatpush.xpose.msra.mxu0 0.0
    %988 = vmatpush.xpose.msra.mxu0 0.0
    %989 = vmatpush.xpose.msra.mxu0 0.0
    %990 = vmatpush.xpose.msra.mxu0 0.0
    %991 = vmatpush.xpose.msra.mxu0 0.0
    %992 = vmatpush.xpose.msra.mxu0 0.0
    %993 = vmatpush.xpose.msra.mxu0 0.0
    %994 = vmatpush.xpose.msra.mxu0 0.0
    %995 = vmatpush.xpose.msra.mxu0 0.0
    %996 = vmatpush.xpose.msra.mxu0 0.0
    %997 = vmatpush.xpose.msra.mxu0 0.0
    %998 = vmatpush.xpose.msra.mxu0 0.0
    %999 = vmatpush.xpose.msra.mxu0 %v983
    %1000 = vmatpush.xpose.msra.mxu0 %v980
    %1001 = vmatmul.f32.gmra.mxu0 %v977
    %v1002 = vpop.f32.mrf.mxu0
    %v1003 = vadd.f32 0.0, %v1002
    %1004 = vdwg.mxu0
    %v1005 = vsel %vm243, %v974, -inf
    %1006 = vmax.xlane.f32.xlu0 %v1005
    %v1007 = vpop.xlane.xlu0 %1006
    %v1008 = vsel %vm243, %v1003, -inf
    %1009 = vmax.xlane.f32.xlu0 %v1008
    %v1010 = vpop.xlane.xlu0 %1009
    %v1011 = vsub.f32 %v974, %v1007
    %v1012 = vsub.f32 %v1003, %v1010
    %v1013 = vmul.f32 %v1011, 1.442695
    %v1014 = vpow.pop %v1013
    %v1015 = vmul.f32 %v1012, 1.442695
    %v1016 = vpow.pop %v1015
    %v1017 = vsel %vm243, %v1014, 0.0
    %1018 = vadd.xlane.f32.xlu0 %v1017
    %v1019 = vpop.xlane.xlu0 %1018
    %v1020 = vsel %vm243, %v1016, 0.0
    %1021 = vadd.xlane.f32.xlu0 %v1020
    %v1022 = vpop.xlane.xlu0 %1021
    %v1023 = vrcp.pop %v1019
    %v1024 = vrcp.pop %v1022
    %v1025 = vmul.f32 %v1014, %v1023
    %v1026 = vmul.f32 %v1016, %v1024
    %v1027 = vadd.f32 %v772, %v1025
    %v1028 = vadd.f32 %v773, %v1026
    %v1030 = vsel %vm243, %v1025, 0
    %1032 = vmatpush.msra.mxu0 0.0
    %1033 = vmatpush.msra.mxu0 0.0
    %1034 = vmatpush.msra.mxu0 0.0
    %1035 = vmatpush.msra.mxu0 0.0
    %1036 = vmatpush.msra.mxu0 0.0
    %1037 = vmatpush.msra.mxu0 0.0
    %1038 = vmatpush.msra.mxu0 0.0
    %1039 = vmatpush.msra.mxu0 0.0
    %1040 = vmatpush.msra.mxu0 0.0
    %1041 = vmatpush.msra.mxu0 0.0
    %1042 = vmatpush.msra.mxu0 0.0
    %1043 = vmatpush.msra.mxu0 0.0
    %1044 = vmatpush.msra.mxu0 0.0
    %1045 = vmatpush.msra.mxu0 0.0
    %1046 = vmatpush.msra.mxu0 %v939
    %1047 = vmatpush.msra.mxu0 %v936
    %1048 = vmatmul.f32.gmra.mxu0 %v1030
    %v1049 = vpop.f32.mrf.mxu0
    %v1050 = vadd.f32 0.0, %v1049
    %1051 = vdwg.mxu0
    %v1053 = vsel %vm243, %v1026, 0
    %1055 = vmatpush.msra.mxu0 0.0
    %1056 = vmatpush.msra.mxu0 0.0
    %1057 = vmatpush.msra.mxu0 0.0
    %1058 = vmatpush.msra.mxu0 0.0
    %1059 = vmatpush.msra.mxu0 0.0
    %1060 = vmatpush.msra.mxu0 0.0
    %1061 = vmatpush.msra.mxu0 0.0
    %1062 = vmatpush.msra.mxu0 0.0
    %1063 = vmatpush.msra.mxu0 0.0
    %1064 = vmatpush.msra.mxu0 0.0
    %1065 = vmatpush.msra.mxu0 0.0
    %1066 = vmatpush.msra.mxu0 0.0
    %1067 = vmatpush.msra.mxu0 0.0
    %1068 = vmatpush.msra.mxu0 0.0
    %1069 = vmatpush.msra.mxu0 %v945
    %1070 = vmatpush.msra.mxu0 %v942
    %1071 = vmatmul.f32.gmra.mxu0 %v1053
    %v1072 = vpop.f32.mrf.mxu0
    %v1073 = vadd.f32 0.0, %v1072
    %1074 = vdwg.mxu0
    %v1076 = vsel %vm184, %v1050, 0
    %v1079 = vsel %vm184, %v1073, 0
    %1081 = vmatpush.msra.mxu0 0.0
    %1082 = vmatpush.msra.mxu0 0.0
    %1083 = vmatpush.msra.mxu0 0.0
    %1084 = vmatpush.msra.mxu0 0.0
    %1085 = vmatpush.msra.mxu0 0.0
    %1086 = vmatpush.msra.mxu0 0.0
    %1087 = vmatpush.msra.mxu0 0.0
    %1088 = vmatpush.msra.mxu0 0.0
    %1089 = vmatpush.msra.mxu0 0.0
    %1090 = vmatpush.msra.mxu0 0.0
    %1091 = vmatpush.msra.mxu0 0.0
    %1092 = vmatpush.msra.mxu0 0.0
    %1093 = vmatpush.msra.mxu0 0.0
    %1094 = vmatpush.msra.mxu0 0.0
    %1095 = vmatpush.msra.mxu0 0.0
    %1096 = vmatpush.msra.mxu0 %v854
    %1097 = vmatmul.f32.gmra.mxu0 %v1076
    %v1098 = vpop.f32.mrf.mxu0
    %v1099 = vadd.f32 0.0, %v1098
    %1100 = vmatmul.f32.gmra.mxu0 %v1079
    %v1101 = vpop.f32.mrf.mxu0
    %v1102 = vadd.f32 0.0, %v1101
    %1103 = vdwg.mxu0
    %v1104 = vadd.f32 %v849, %v1099
    %v1105 = vadd.f32 %v850, %v1102
    %v1106 = vld [vmem:[#allocation2 + $0x2c4] sm:$0x1]
    %v1107 = vperm.slane %v1106, 0
    %v1108 = vadd.f32 %v1104, %v1107
    %v1109 = vadd.f32 %v1105, %v1107
    %v1110 = vmul.f32 %v1027, 0.25
    %v1111 = vmul.f32 %v1028, 0.25
    %1112 = vst.msk [vmem:[#allocation6] sm:$0xff] %vm243, %v1110
    %1113 = vst.msk [vmem:[#allocation6 + $0x8] sm:$0xff] %vm243, %v1111
    %v1114 = vadd.f32 %v31, %v1108
    %v1115 = vadd.f32 %v32, %v1109
    %v1116 = vld [vmem:[#allocation2 + $0x2cc] sm:$0x1]
    %v1117 = vld [vmem:[#allocation2 + $0x2cd] sm:$0x1]
    %v1118 = vsel %vm63, %v1114, 0.0
    %1119 = vadd.xlane.f32.xlu0 %v1118
    %v1120 = vpop.xlane.xlu0 %1119
    %v1121 = vsel %vm63, %v1115, 0.0
    %1122 = vadd.xlane.f32.xlu0 %v1121
    %v1123 = vpop.xlane.xlu0 %1122
    %v1124 = vrcp.pop 32.0
    %v1125 = vmul.f32 32.0, %v1124
    %v1126 = vsub.f32 1.0, %v1125
    %v1127 = vmul.f32 %v1124, %v1126
    %v1128 = vadd.f32 %v1124, %v1127
    %vm1129 = vweird.f32 %v1124
    %v1130 = vsel %vm1129, %v1124, %v1128
    %v1131 = vmul.f32 %v1120, %v1130
    %v1132 = vmul.f32 %v1123, %v1130
    %v1133 = vsub.f32 %v1114, %v1131
    %v1134 = vsub.f32 %v1115, %v1132
    %v1135 = vmul.f32 %v1133, %v1133
    %v1136 = vmul.f32 %v1134, %v1134
    %v1137 = vsel %vm63, %v1135, 0.0
    %1138 = vadd.xlane.f32.xlu0 %v1137
    %v1139 = vpop.xlane.xlu0 %1138
    %v1140 = vsel %vm63, %v1136, 0.0
    %1141 = vadd.xlane.f32.xlu0 %v1140
    %v1142 = vpop.xlane.xlu0 %1141
    %v1143 = vmul.f32 %v1139, %v1130
    %v1144 = vmul.f32 %v1142, %v1130
    %v1145 = vadd.f32 %v1143, 1e-05
    %v1146 = vadd.f32 %v1144, 1e-05
    %v1147 = vrsqrt.pop %v1145
    %v1148 = vmul.f32 %v1147, %v1145
    %v1149 = vmul.f32 %v1148, %v1147
    %v1150 = vmul.f32 0.5, %v1149
    %v1151 = vsub.f32 1.5, %v1150
    %v1152 = vmul.f32 %v1147, %v1151
    %vm1153 = vweird.f32 %v1145
    %vm1154 = vweird.f32 %v1147
    %vm1155 = vmor %vm1153, %vm1154
    %v1156 = vsel %vm1155, %v1147, %v1152
    %v1157 = vrsqrt.pop %v1146
    %v1158 = vmul.f32 %v1157, %v1146
    %v1159 = vmul.f32 %v1158, %v1157
    %v1160 = vmul.f32 0.5, %v1159
    %v1161 = vsub.f32 1.5, %v1160
    %v1162 = vmul.f32 %v1157, %v1161
    %vm1163 = vweird.f32 %v1146
    %vm1164 = vweird.f32 %v1157
    %vm1165 = vmor %vm1163, %vm1164
    %v1166 = vsel %vm1165, %v1157, %v1162
    %v1167 = vmul.f32 %v1133, %v1156
    %v1168 = vmul.f32 %v1134, %v1166
    %v1169 = vperm.slane %v1116, 0
    %v1170 = vmul.f32 %v1167, %v1169
    %v1171 = vmul.f32 %v1168, %v1169
    %v1172 = vperm.slane %v1117, 0
    %v1173 = vadd.f32 %v1170, %v1172
    %v1174 = vadd.f32 %v1171, %v1172
    %v1175 = vadd.f32 %v1173, %v33
    %v1176 = vadd.f32 %v1174, %v34
    %v1177 = vld [vmem:[#allocation2 + $0x80] sm:$0xff]
    %v1178 = vld [vmem:[#allocation2 + $0xa0] sm:$0xff]
    %v1179 = vld [vmem:[#allocation2 + $0xc0] sm:$0xff]
    %v1180 = vld [vmem:[#allocation2 + $0xe0] sm:$0xff]
    %v1181 = vld [vmem:[#allocation2 + $0x2c5] sm:$0x1]
    %v1182 = vperm.slane %v1181, 0
    %v1184 = vsel %vm63, %v1175, 0
    %v1187 = vsel %vm63, %v1176, 0
    %v1190 = vsel %vm63, %v1177, 0
    %1192 = vmatpush.xpose.msra.mxu0 0.0
    %1193 = vmatpush.xpose.msra.mxu0 0.0
    %1194 = vmatpush.xpose.msra.mxu0 0.0
    %1195 = vmatpush.xpose.msra.mxu0 0.0
    %1196 = vmatpush.xpose.msra.mxu0 0.0
    %1197 = vmatpush.xpose.msra.mxu0 0.0
    %1198 = vmatpush.xpose.msra.mxu0 0.0
    %1199 = vmatpush.xpose.msra.mxu0 0.0
    %1200 = vmatpush.xpose.msra.mxu0 0.0
    %1201 = vmatpush.xpose.msra.mxu0 0.0
    %1202 = vmatpush.xpose.msra.mxu0 0.0
    %1203 = vmatpush.xpose.msra.mxu0 0.0
    %1204 = vmatpush.xpose.msra.mxu0 0.0
    %1205 = vmatpush.xpose.msra.mxu0 0.0
    %1206 = vmatpush.xpose.msra.mxu0 0.0
    %1207 = vmatpush.xpose.msra.mxu0 %v1190
    %1208 = vmatmul.f32.gmra.mxu0 %v1184
    %v1209 = vpop.f32.mrf.mxu0
    %v1210 = vadd.f32 %v1182, %v1209
    %1211 = vmatmul.f32.gmra.mxu0 %v1187
    %v1212 = vpop.f32.mrf.mxu0
    %v1213 = vadd.f32 %v1182, %v1212
    %1214 = vdwg.mxu0
    %v1216 = vsel %vm63, %v51, 0
    %v1219 = vsel %vm63, %v52, 0
    %v1222 = vsel %vm63, %v53, 0
    %v1225 = vsel %vm63, %v54, 0
    %v1228 = vsel %vm63, %v1178, 0
    %1230 = vmatpush.xpose.msra.mxu0 0.0
    %1231 = vmatpush.xpose.msra.mxu0 0.0
    %1232 = vmatpush.xpose.msra.mxu0 0.0
    %1233 = vmatpush.xpose.msra.mxu0 0.0
    %1234 = vmatpush.xpose.msra.mxu0 0.0
    %1235 = vmatpush.xpose.msra.mxu0 0.0
    %1236 = vmatpush.xpose.msra.mxu0 0.0
    %1237 = vmatpush.xpose.msra.mxu0 0.0
    %1238 = vmatpush.xpose.msra.mxu0 0.0
    %1239 = vmatpush.xpose.msra.mxu0 0.0
    %1240 = vmatpush.xpose.msra.mxu0 0.0
    %1241 = vmatpush.xpose.msra.mxu0 0.0
    %1242 = vmatpush.xpose.msra.mxu0 0.0
    %1243 = vmatpush.xpose.msra.mxu0 0.0
    %1244 = vmatpush.xpose.msra.mxu0 0.0
    %1245 = vmatpush.xpose.msra.mxu0 %v1228
    %1246 = vmatmul.f32.gmra.mxu0 %v1216
    %v1247 = vpop.f32.mrf.mxu0
    %v1248 = vadd.f32 0.0, %v1247
    %1249 = vmatmul.f32.gmra.mxu0 %v1219
    %v1250 = vpop.f32.mrf.mxu0
    %v1251 = vadd.f32 0.0, %v1250
    %1252 = vmatmul.f32.gmra.mxu0 %v1222
    %v1253 = vpop.f32.mrf.mxu0
    %v1254 = vadd.f32 0.0, %v1253
    %1255 = vmatmul.f32.gmra.mxu0 %v1225
    %v1256 = vpop.f32.mrf.mxu0
    %v1257 = vadd.f32 0.0, %v1256
    %1258 = vdwg.mxu0
    %v1260 = vsel %vm63, %v39, 0
    %v1263 = vsel %vm63, %v40, 0
    %v1266 = vsel %vm63, %v41, 0
    %v1269 = vsel %vm63, %v42, 0
    %v1272 = vsel %vm63, %v1179, 0
    %1274 = vmatpush.xpose.msra.mxu0 0.0
    %1275 = vmatpush.xpose.msra.mxu0 0.0
    %1276 = vmatpush.xpose.msra.mxu0 0.0
    %1277 = vmatpush.xpose.msra.mxu0 0.0
    %1278 = vmatpush.xpose.msra.mxu0 0.0
    %1279 = vmatpush.xpose.msra.mxu0 0.0
    %1280 = vmatpush.xpose.msra.mxu0 0.0
    %1281 = vmatpush.xpose.msra.mxu0 0.0
    %1282 = vmatpush.xpose.msra.mxu0 0.0
    %1283 = vmatpush.xpose.msra.mxu0 0.0
    %1284 = vmatpush.xpose.msra.mxu0 0.0
    %1285 = vmatpush.xpose.msra.mxu0 0.0
    %1286 = vmatpush.xpose.msra.mxu0 0.0
    %1287 = vmatpush.xpose.msra.mxu0 0.0
    %1288 = vmatpush.xpose.msra.mxu0 0.0
    %1289 = vmatpush.xpose.msra.mxu0 %v1272
    %1290 = vmatmul.f32.gmra.mxu0 %v1260
    %v1291 = vpop.f32.mrf.mxu0
    %v1292 = vadd.f32 0.0, %v1291
    %1293 = vmatmul.f32.gmra.mxu0 %v1263
    %v1294 = vpop.f32.mrf.mxu0
    %v1295 = vadd.f32 0.0, %v1294
    %1296 = vmatmul.f32.gmra.mxu0 %v1266
    %v1297 = vpop.f32.mrf.mxu0
    %v1298 = vadd.f32 0.0, %v1297
    %1299 = vmatmul.f32.gmra.mxu0 %v1269
    %v1300 = vpop.f32.mrf.mxu0
    %v1301 = vadd.f32 0.0, %v1300
    %1302 = vdwg.mxu0
    %v1304 = vsel %vm184, %v1210, 0
    %v1307 = vsel %vm184, %v1248, 0
    %v1310 = vsel %vm184, %v1251, 0
    %1312 = vmatpush.xpose.msra.mxu0 0.0
    %1313 = vmatpush.xpose.msra.mxu0 0.0
    %1314 = vmatpush.xpose.msra.mxu0 0.0
    %1315 = vmatpush.xpose.msra.mxu0 0.0
    %1316 = vmatpush.xpose.msra.mxu0 0.0
    %1317 = vmatpush.xpose.msra.mxu0 0.0
    %1318 = vmatpush.xpose.msra.mxu0 0.0
    %1319 = vmatpush.xpose.msra.mxu0 0.0
    %1320 = vmatpush.xpose.msra.mxu0 0.0
    %1321 = vmatpush.xpose.msra.mxu0 0.0
    %1322 = vmatpush.xpose.msra.mxu0 0.0
    %1323 = vmatpush.xpose.msra.mxu0 0.0
    %1324 = vmatpush.xpose.msra.mxu0 0.0
    %1325 = vmatpush.xpose.msra.mxu0 0.0
    %1326 = vmatpush.xpose.msra.mxu0 %v1310
    %1327 = vmatpush.xpose.msra.mxu0 %v1307
    %1328 = vmatmul.f32.gmra.mxu0 %v1304
    %v1329 = vpop.f32.mrf.mxu0
    %v1330 = vadd.f32 0.0, %v1329
    %1331 = vdwg.mxu0
    %v1333 = vsel %vm184, %v1213, 0
    %v1336 = vsel %vm184, %v1254, 0
    %v1339 = vsel %vm184, %v1257, 0
    %1341 = vmatpush.xpose.msra.mxu0 0.0
    %1342 = vmatpush.xpose.msra.mxu0 0.0
    %1343 = vmatpush.xpose.msra.mxu0 0.0
    %1344 = vmatpush.xpose.msra.mxu0 0.0
    %1345 = vmatpush.xpose.msra.mxu0 0.0
    %1346 = vmatpush.xpose.msra.mxu0 0.0
    %1347 = vmatpush.xpose.msra.mxu0 0.0
    %1348 = vmatpush.xpose.msra.mxu0 0.0
    %1349 = vmatpush.xpose.msra.mxu0 0.0
    %1350 = vmatpush.xpose.msra.mxu0 0.0
    %1351 = vmatpush.xpose.msra.mxu0 0.0
    %1352 = vmatpush.xpose.msra.mxu0 0.0
    %1353 = vmatpush.xpose.msra.mxu0 0.0
    %1354 = vmatpush.xpose.msra.mxu0 0.0
    %1355 = vmatpush.xpose.msra.mxu0 %v1339
    %1356 = vmatpush.xpose.msra.mxu0 %v1336
    %1357 = vmatmul.f32.gmra.mxu0 %v1333
    %v1358 = vpop.f32.mrf.mxu0
    %v1359 = vadd.f32 0.0, %v1358
    %1360 = vdwg.mxu0
    %v1361 = vsel %vm243, %v1330, -inf
    %1362 = vmax.xlane.f32.xlu0 %v1361
    %v1363 = vpop.xlane.xlu0 %1362
    %v1364 = vsel %vm243, %v1359, -inf
    %1365 = vmax.xlane.f32.xlu0 %v1364
    %v1366 = vpop.xlane.xlu0 %1365
    %v1367 = vsub.f32 %v1330, %v1363
    %v1368 = vsub.f32 %v1359, %v1366
    %v1369 = vmul.f32 %v1367, 1.442695
    %v1370 = vpow.pop %v1369
    %v1371 = vmul.f32 %v1368, 1.442695
    %v1372 = vpow.pop %v1371
    %v1373 = vsel %vm243, %v1370, 0.0
    %1374 = vadd.xlane.f32.xlu0 %v1373
    %v1375 = vpop.xlane.xlu0 %1374
    %v1376 = vsel %vm243, %v1372, 0.0
    %1377 = vadd.xlane.f32.xlu0 %v1376
    %v1378 = vpop.xlane.xlu0 %1377
    %v1379 = vrcp.pop %v1375
    %v1380 = vrcp.pop %v1378
    %v1381 = vmul.f32 %v1370, %v1379
    %v1382 = vmul.f32 %v1372, %v1380
    %v1384 = vsel %vm243, %v1381, 0
    %1386 = vmatpush.msra.mxu0 0.0
    %1387 = vmatpush.msra.mxu0 0.0
    %1388 = vmatpush.msra.mxu0 0.0
    %1389 = vmatpush.msra.mxu0 0.0
    %1390 = vmatpush.msra.mxu0 0.0
    %1391 = vmatpush.msra.mxu0 0.0
    %1392 = vmatpush.msra.mxu0 0.0
    %1393 = vmatpush.msra.mxu0 0.0
    %1394 = vmatpush.msra.mxu0 0.0
    %1395 = vmatpush.msra.mxu0 0.0
    %1396 = vmatpush.msra.mxu0 0.0
    %1397 = vmatpush.msra.mxu0 0.0
    %1398 = vmatpush.msra.mxu0 0.0
    %1399 = vmatpush.msra.mxu0 0.0
    %1400 = vmatpush.msra.mxu0 %v1295
    %1401 = vmatpush.msra.mxu0 %v1292
    %1402 = vmatmul.f32.gmra.mxu0 %v1384
    %v1403 = vpop.f32.mrf.mxu0
    %v1404 = vadd.f32 0.0, %v1403
    %1405 = vdwg.mxu0
    %v1407 = vsel %vm243, %v1382, 0
    %1409 = vmatpush.msra.mxu0 0.0
    %1410 = vmatpush.msra.mxu0 0.0
    %1411 = vmatpush.msra.mxu0 0.0
    %1412 = vmatpush.msra.mxu0 0.0
    %1413 = vmatpush.msra.mxu0 0.0
    %1414 = vmatpush.msra.mxu0 0.0
    %1415 = vmatpush.msra.mxu0 0.0
    %1416 = vmatpush.msra.mxu0 0.0
    %1417 = vmatpush.msra.mxu0 0.0
    %1418 = vmatpush.msra.mxu0 0.0
    %1419 = vmatpush.msra.mxu0 0.0
    %1420 = vmatpush.msra.mxu0 0.0
    %1421 = vmatpush.msra.mxu0 0.0
    %1422 = vmatpush.msra.mxu0 0.0
    %1423 = vmatpush.msra.mxu0 %v1301
    %1424 = vmatpush.msra.mxu0 %v1298
    %1425 = vmatmul.f32.gmra.mxu0 %v1407
    %v1426 = vpop.f32.mrf.mxu0
    %v1427 = vadd.f32 0.0, %v1426
    %1428 = vdwg.mxu0
    %v1429 = vld [vmem:[#allocation2 + $0x88] sm:$0xff]
    %v1430 = vld [vmem:[#allocation2 + $0xa8] sm:$0xff]
    %v1431 = vld [vmem:[#allocation2 + $0xc8] sm:$0xff]
    %v1432 = vld [vmem:[#allocation2 + $0xe8] sm:$0xff]
    %v1433 = vld [vmem:[#allocation2 + $0x2c6] sm:$0x1]
    %v1434 = vperm.slane %v1433, 0
    %v1436 = vsel %vm63, %v1429, 0
    %1438 = vmatpush.xpose.msra.mxu0 0.0
    %1439 = vmatpush.xpose.msra.mxu0 0.0
    %1440 = vmatpush.xpose.msra.mxu0 0.0
    %1441 = vmatpush.xpose.msra.mxu0 0.0
    %1442 = vmatpush.xpose.msra.mxu0 0.0
    %1443 = vmatpush.xpose.msra.mxu0 0.0
    %1444 = vmatpush.xpose.msra.mxu0 0.0
    %1445 = vmatpush.xpose.msra.mxu0 0.0
    %1446 = vmatpush.xpose.msra.mxu0 0.0
    %1447 = vmatpush.xpose.msra.mxu0 0.0
    %1448 = vmatpush.xpose.msra.mxu0 0.0
    %1449 = vmatpush.xpose.msra.mxu0 0.0
    %1450 = vmatpush.xpose.msra.mxu0 0.0
    %1451 = vmatpush.xpose.msra.mxu0 0.0
    %1452 = vmatpush.xpose.msra.mxu0 0.0
    %1453 = vmatpush.xpose.msra.mxu0 %v1436
    %1454 = vmatmul.f32.gmra.mxu0 %v1184
    %v1455 = vpop.f32.mrf.mxu0
    %v1456 = vadd.f32 %v1434, %v1455
    %1457 = vmatmul.f32.gmra.mxu0 %v1187
    %v1458 = vpop.f32.mrf.mxu0
    %v1459 = vadd.f32 %v1434, %v1458
    %1460 = vdwg.mxu0
    %v1462 = vsel %vm63, %v1430, 0
    %1464 = vmatpush.xpose.msra.mxu0 0.0
    %1465 = vmatpush.xpose.msra.mxu0 0.0
    %1466 = vmatpush.xpose.msra.mxu0 0.0
    %1467 = vmatpush.xpose.msra.mxu0 0.0
    %1468 = vmatpush.xpose.msra.mxu0 0.0
    %1469 = vmatpush.xpose.msra.mxu0 0.0
    %1470 = vmatpush.xpose.msra.mxu0 0.0
    %1471 = vmatpush.xpose.msra.mxu0 0.0
    %1472 = vmatpush.xpose.msra.mxu0 0.0
    %1473 = vmatpush.xpose.msra.mxu0 0.0
    %1474 = vmatpush.xpose.msra.mxu0 0.0
    %1475 = vmatpush.xpose.msra.mxu0 0.0
    %1476 = vmatpush.xpose.msra.mxu0 0.0
    %1477 = vmatpush.xpose.msra.mxu0 0.0
    %1478 = vmatpush.xpose.msra.mxu0 0.0
    %1479 = vmatpush.xpose.msra.mxu0 %v1462
    %1480 = vmatmul.f32.gmra.mxu0 %v1216
    %v1481 = vpop.f32.mrf.mxu0
    %v1482 = vadd.f32 0.0, %v1481
    %1483 = vmatmul.f32.gmra.mxu0 %v1219
    %v1484 = vpop.f32.mrf.mxu0
    %v1485 = vadd.f32 0.0, %v1484
    %1486 = vmatmul.f32.gmra.mxu0 %v1222
    %v1487 = vpop.f32.mrf.mxu0
    %v1488 = vadd.f32 0.0, %v1487
    %1489 = vmatmul.f32.gmra.mxu0 %v1225
    %v1490 = vpop.f32.mrf.mxu0
    %v1491 = vadd.f32 0.0, %v1490
    %1492 = vdwg.mxu0
    %v1494 = vsel %vm63, %v1431, 0
    %1496 = vmatpush.xpose.msra.mxu0 0.0
    %1497 = vmatpush.xpose.msra.mxu0 0.0
    %1498 = vmatpush.xpose.msra.mxu0 0.0
    %1499 = vmatpush.xpose.msra.mxu0 0.0
    %1500 = vmatpush.xpose.msra.mxu0 0.0
    %1501 = vmatpush.xpose.msra.mxu0 0.0
    %1502 = vmatpush.xpose.msra.mxu0 0.0
    %1503 = vmatpush.xpose.msra.mxu0 0.0
    %1504 = vmatpush.xpose.msra.mxu0 0.0
    %1505 = vmatpush.xpose.msra.mxu0 0.0
    %1506 = vmatpush.xpose.msra.mxu0 0.0
    %1507 = vmatpush.xpose.msra.mxu0 0.0
    %1508 = vmatpush.xpose.msra.mxu0 0.0
    %1509 = vmatpush.xpose.msra.mxu0 0.0
    %1510 = vmatpush.xpose.msra.mxu0 0.0
    %1511 = vmatpush.xpose.msra.mxu0 %v1494
    %1512 = vmatmul.f32.gmra.mxu0 %v1260
    %v1513 = vpop.f32.mrf.mxu0
    %v1514 = vadd.f32 0.0, %v1513
    %1515 = vmatmul.f32.gmra.mxu0 %v1263
    %v1516 = vpop.f32.mrf.mxu0
    %v1517 = vadd.f32 0.0, %v1516
    %1518 = vmatmul.f32.gmra.mxu0 %v1266
    %v1519 = vpop.f32.mrf.mxu0
    %v1520 = vadd.f32 0.0, %v1519
    %1521 = vmatmul.f32.gmra.mxu0 %v1269
    %v1522 = vpop.f32.mrf.mxu0
    %v1523 = vadd.f32 0.0, %v1522
    %1524 = vdwg.mxu0
    %v1526 = vsel %vm184, %v1456, 0
    %v1529 = vsel %vm184, %v1482, 0
    %v1532 = vsel %vm184, %v1485, 0
    %1534 = vmatpush.xpose.msra.mxu0 0.0
    %1535 = vmatpush.xpose.msra.mxu0 0.0
    %1536 = vmatpush.xpose.msra.mxu0 0.0
    %1537 = vmatpush.xpose.msra.mxu0 0.0
    %1538 = vmatpush.xpose.msra.mxu0 0.0
    %1539 = vmatpush.xpose.msra.mxu0 0.0
    %1540 = vmatpush.xpose.msra.mxu0 0.0
    %1541 = vmatpush.xpose.msra.mxu0 0.0
    %1542 = vmatpush.xpose.msra.mxu0 0.0
    %1543 = vmatpush.xpose.msra.mxu0 0.0
    %1544 = vmatpush.xpose.msra.mxu0 0.0
    %1545 = vmatpush.xpose.msra.mxu0 0.0
    %1546 = vmatpush.xpose.msra.mxu0 0.0
    %1547 = vmatpush.xpose.msra.mxu0 0.0
    %1548 = vmatpush.xpose.msra.mxu0 %v1532
    %1549 = vmatpush.xpose.msra.mxu0 %v1529
    %1550 = vmatmul.f32.gmra.mxu0 %v1526
    %v1551 = vpop.f32.mrf.mxu0
    %v1552 = vadd.f32 0.0, %v1551
    %1553 = vdwg.mxu0
    %v1555 = vsel %vm184, %v1459, 0
    %v1558 = vsel %vm184, %v1488, 0
    %v1561 = vsel %vm184, %v1491, 0
    %1563 = vmatpush.xpose.msra.mxu0 0.0
    %1564 = vmatpush.xpose.msra.mxu0 0.0
    %1565 = vmatpush.xpose.msra.mxu0 0.0
    %1566 = vmatpush.xpose.msra.mxu0 0.0
    %1567 = vmatpush.xpose.msra.mxu0 0.0
    %1568 = vmatpush.xpose.msra.mxu0 0.0
    %1569 = vmatpush.xpose.msra.mxu0 0.0
    %1570 = vmatpush.xpose.msra.mxu0 0.0
    %1571 = vmatpush.xpose.msra.mxu0 0.0
    %1572 = vmatpush.xpose.msra.mxu0 0.0
    %1573 = vmatpush.xpose.msra.mxu0 0.0
    %1574 = vmatpush.xpose.msra.mxu0 0.0
    %1575 = vmatpush.xpose.msra.mxu0 0.0
    %1576 = vmatpush.xpose.msra.mxu0 0.0
    %1577 = vmatpush.xpose.msra.mxu0 %v1561
    %1578 = vmatpush.xpose.msra.mxu0 %v1558
    %1579 = vmatmul.f32.gmra.mxu0 %v1555
    %v1580 = vpop.f32.mrf.mxu0
    %v1581 = vadd.f32 0.0, %v1580
    %1582 = vdwg.mxu0
    %v1583 = vsel %vm243, %v1552, -inf
    %1584 = vmax.xlane.f32.xlu0 %v1583
    %v1585 = vpop.xlane.xlu0 %1584
    %v1586 = vsel %vm243, %v1581, -inf
    %1587 = vmax.xlane.f32.xlu0 %v1586
    %v1588 = vpop.xlane.xlu0 %1587
    %v1589 = vsub.f32 %v1552, %v1585
    %v1590 = vsub.f32 %v1581, %v1588
    %v1591 = vmul.f32 %v1589, 1.442695
    %v1592 = vpow.pop %v1591
    %v1593 = vmul.f32 %v1590, 1.442695
    %v1594 = vpow.pop %v1593
    %v1595 = vsel %vm243, %v1592, 0.0
    %1596 = vadd.xlane.f32.xlu0 %v1595
    %v1597 = vpop.xlane.xlu0 %1596
    %v1598 = vsel %vm243, %v1594, 0.0
    %1599 = vadd.xlane.f32.xlu0 %v1598
    %v1600 = vpop.xlane.xlu0 %1599
    %v1601 = vrcp.pop %v1597
    %v1602 = vrcp.pop %v1600
    %v1603 = vmul.f32 %v1592, %v1601
    %v1604 = vmul.f32 %v1594, %v1602
    %v1606 = vsel %vm243, %v1603, 0
    %1608 = vmatpush.msra.mxu0 0.0
    %1609 = vmatpush.msra.mxu0 0.0
    %1610 = vmatpush.msra.mxu0 0.0
    %1611 = vmatpush.msra.mxu0 0.0
    %1612 = vmatpush.msra.mxu0 0.0
    %1613 = vmatpush.msra.mxu0 0.0
    %1614 = vmatpush.msra.mxu0 0.0
    %1615 = vmatpush.msra.mxu0 0.0
    %1616 = vmatpush.msra.mxu0 0.0
    %1617 = vmatpush.msra.mxu0 0.0
    %1618 = vmatpush.msra.mxu0 0.0
    %1619 = vmatpush.msra.mxu0 0.0
    %1620 = vmatpush.msra.mxu0 0.0
    %1621 = vmatpush.msra.mxu0 0.0
    %1622 = vmatpush.msra.mxu0 %v1517
    %1623 = vmatpush.msra.mxu0 %v1514
    %1624 = vmatmul.f32.gmra.mxu0 %v1606
    %v1625 = vpop.f32.mrf.mxu0
    %v1626 = vadd.f32 0.0, %v1625
    %1627 = vdwg.mxu0
    %v1629 = vsel %vm243, %v1604, 0
    %1631 = vmatpush.msra.mxu0 0.0
    %1632 = vmatpush.msra.mxu0 0.0
    %1633 = vmatpush.msra.mxu0 0.0
    %1634 = vmatpush.msra.mxu0 0.0
    %1635 = vmatpush.msra.mxu0 0.0
    %1636 = vmatpush.msra.mxu0 0.0
    %1637 = vmatpush.msra.mxu0 0.0
    %1638 = vmatpush.msra.mxu0 0.0
    %1639 = vmatpush.msra.mxu0 0.0
    %1640 = vmatpush.msra.mxu0 0.0
    %1641 = vmatpush.msra.mxu0 0.0
    %1642 = vmatpush.msra.mxu0 0.0
    %1643 = vmatpush.msra.mxu0 0.0
    %1644 = vmatpush.msra.mxu0 0.0
    %1645 = vmatpush.msra.mxu0 %v1523
    %1646 = vmatpush.msra.mxu0 %v1520
    %1647 = vmatmul.f32.gmra.mxu0 %v1629
    %v1648 = vpop.f32.mrf.mxu0
    %v1649 = vadd.f32 0.0, %v1648
    %1650 = vdwg.mxu0
    %v1652 = vsel %vm184, %v1626, 0
    %v1655 = vsel %vm184, %v1649, 0
    %1657 = vmatpush.msra.mxu0 0.0
    %1658 = vmatpush.msra.mxu0 0.0
    %1659 = vmatpush.msra.mxu0 0.0
    %1660 = vmatpush.msra.mxu0 0.0
    %1661 = vmatpush.msra.mxu0 0.0
    %1662 = vmatpush.msra.mxu0 0.0
    %1663 = vmatpush.msra.mxu0 0.0
    %1664 = vmatpush.msra.mxu0 0.0
    %1665 = vmatpush.msra.mxu0 0.0
    %1666 = vmatpush.msra.mxu0 0.0
    %1667 = vmatpush.msra.mxu0 0.0
    %1668 = vmatpush.msra.mxu0 0.0
    %1669 = vmatpush.msra.mxu0 0.0
    %1670 = vmatpush.msra.mxu0 0.0
    %1671 = vmatpush.msra.mxu0 0.0
    %1672 = vmatpush.msra.mxu0 %v1432
    %1673 = vmatmul.f32.gmra.mxu0 %v1652
    %v1674 = vpop.f32.mrf.mxu0
    %v1675 = vadd.f32 0.0, %v1674
    %1676 = vmatmul.f32.gmra.mxu0 %v1655
    %v1677 = vpop.f32.mrf.mxu0
    %v1678 = vadd.f32 0.0, %v1677
    %1679 = vdwg.mxu0
    %v1681 = vsel %vm184, %v1404, 0
    %v1684 = vsel %vm184, %v1427, 0
    %1686 = vmatpush.msra.mxu0 0.0
    %1687 = vmatpush.msra.mxu0 0.0
    %1688 = vmatpush.msra.mxu0 0.0
    %1689 = vmatpush.msra.mxu0 0.0
    %1690 = vmatpush.msra.mxu0 0.0
    %1691 = vmatpush.msra.mxu0 0.0
    %1692 = vmatpush.msra.mxu0 0.0
    %1693 = vmatpush.msra.mxu0 0.0
    %1694 = vmatpush.msra.mxu0 0.0
    %1695 = vmatpush.msra.mxu0 0.0
    %1696 = vmatpush.msra.mxu0 0.0
    %1697 = vmatpush.msra.mxu0 0.0
    %1698 = vmatpush.msra.mxu0 0.0
    %1699 = vmatpush.msra.mxu0 0.0
    %1700 = vmatpush.msra.mxu0 0.0
    %1701 = vmatpush.msra.mxu0 %v1180
    %1702 = vmatmul.f32.gmra.mxu0 %v1681
    %v1703 = vpop.f32.mrf.mxu0
    %v1704 = vadd.f32 %v1675, %v1703
    %1705 = vmatmul.f32.gmra.mxu0 %v1684
    %v1706 = vpop.f32.mrf.mxu0
    %v1707 = vadd.f32 %v1678, %v1706
    %1708 = vdwg.mxu0
    %v1709 = vld [vmem:[#allocation2 + $0x90] sm:$0xff]
    %v1710 = vld [vmem:[#allocation2 + $0xb0] sm:$0xff]
    %v1711 = vld [vmem:[#allocation2 + $0xd0] sm:$0xff]
    %v1712 = vld [vmem:[#allocation2 + $0xf0] sm:$0xff]
    %v1713 = vld [vmem:[#allocation2 + $0x2c7] sm:$0x1]
    %v1714 = vperm.slane %v1713, 0
    %v1716 = vsel %vm63, %v1709, 0
    %1718 = vmatpush.xpose.msra.mxu0 0.0
    %1719 = vmatpush.xpose.msra.mxu0 0.0
    %1720 = vmatpush.xpose.msra.mxu0 0.0
    %1721 = vmatpush.xpose.msra.mxu0 0.0
    %1722 = vmatpush.xpose.msra.mxu0 0.0
    %1723 = vmatpush.xpose.msra.mxu0 0.0
    %1724 = vmatpush.xpose.msra.mxu0 0.0
    %1725 = vmatpush.xpose.msra.mxu0 0.0
    %1726 = vmatpush.xpose.msra.mxu0 0.0
    %1727 = vmatpush.xpose.msra.mxu0 0.0
    %1728 = vmatpush.xpose.msra.mxu0 0.0
    %1729 = vmatpush.xpose.msra.mxu0 0.0
    %1730 = vmatpush.xpose.msra.mxu0 0.0
    %1731 = vmatpush.xpose.msra.mxu0 0.0
    %1732 = vmatpush.xpose.msra.mxu0 0.0
    %1733 = vmatpush.xpose.msra.mxu0 %v1716
    %1734 = vmatmul.f32.gmra.mxu0 %v1184
    %v1735 = vpop.f32.mrf.mxu0
    %v1736 = vadd.f32 %v1714, %v1735
    %1737 = vmatmul.f32.gmra.mxu0 %v1187
    %v1738 = vpop.f32.mrf.mxu0
    %v1739 = vadd.f32 %v1714, %v1738
    %1740 = vdwg.mxu0
    %v1742 = vsel %vm63, %v1710, 0
    %1744 = vmatpush.xpose.msra.mxu0 0.0
    %1745 = vmatpush.xpose.msra.mxu0 0.0
    %1746 = vmatpush.xpose.msra.mxu0 0.0
    %1747 = vmatpush.xpose.msra.mxu0 0.0
    %1748 = vmatpush.xpose.msra.mxu0 0.0
    %1749 = vmatpush.xpose.msra.mxu0 0.0
    %1750 = vmatpush.xpose.msra.mxu0 0.0
    %1751 = vmatpush.xpose.msra.mxu0 0.0
    %1752 = vmatpush.xpose.msra.mxu0 0.0
    %1753 = vmatpush.xpose.msra.mxu0 0.0
    %1754 = vmatpush.xpose.msra.mxu0 0.0
    %1755 = vmatpush.xpose.msra.mxu0 0.0
    %1756 = vmatpush.xpose.msra.mxu0 0.0
    %1757 = vmatpush.xpose.msra.mxu0 0.0
    %1758 = vmatpush.xpose.msra.mxu0 0.0
    %1759 = vmatpush.xpose.msra.mxu0 %v1742
    %1760 = vmatmul.f32.gmra.mxu0 %v1216
    %v1761 = vpop.f32.mrf.mxu0
    %v1762 = vadd.f32 0.0, %v1761
    %1763 = vmatmul.f32.gmra.mxu0 %v1219
    %v1764 = vpop.f32.mrf.mxu0
    %v1765 = vadd.f32 0.0, %v1764
    %1766 = vmatmul.f32.gmra.mxu0 %v1222
    %v1767 = vpop.f32.mrf.mxu0
    %v1768 = vadd.f32 0.0, %v1767
    %1769 = vmatmul.f32.gmra.mxu0 %v1225
    %v1770 = vpop.f32.mrf.mxu0
    %v1771 = vadd.f32 0.0, %v1770
    %1772 = vdwg.mxu0
    %v1774 = vsel %vm63, %v1711, 0
    %1776 = vmatpush.xpose.msra.mxu0 0.0
    %1777 = vmatpush.xpose.msra.mxu0 0.0
    %1778 = vmatpush.xpose.msra.mxu0 0.0
    %1779 = vmatpush.xpose.msra.mxu0 0.0
    %1780 = vmatpush.xpose.msra.mxu0 0.0
    %1781 = vmatpush.xpose.msra.mxu0 0.0
    %1782 = vmatpush.xpose.msra.mxu0 0.0
    %1783 = vmatpush.xpose.msra.mxu0 0.0
    %1784 = vmatpush.xpose.msra.mxu0 0.0
    %1785 = vmatpush.xpose.msra.mxu0 0.0
    %1786 = vmatpush.xpose.msra.mxu0 0.0
    %1787 = vmatpush.xpose.msra.mxu0 0.0
    %1788 = vmatpush.xpose.msra.mxu0 0.0
    %1789 = vmatpush.xpose.msra.mxu0 0.0
    %1790 = vmatpush.xpose.msra.mxu0 0.0
    %1791 = vmatpush.xpose.msra.mxu0 %v1774
    %1792 = vmatmul.f32.gmra.mxu0 %v1260
    %v1793 = vpop.f32.mrf.mxu0
    %v1794 = vadd.f32 0.0, %v1793
    %1795 = vmatmul.f32.gmra.mxu0 %v1263
    %v1796 = vpop.f32.mrf.mxu0
    %v1797 = vadd.f32 0.0, %v1796
    %1798 = vmatmul.f32.gmra.mxu0 %v1266
    %v1799 = vpop.f32.mrf.mxu0
    %v1800 = vadd.f32 0.0, %v1799
    %1801 = vmatmul.f32.gmra.mxu0 %v1269
    %v1802 = vpop.f32.mrf.mxu0
    %v1803 = vadd.f32 0.0, %v1802
    %1804 = vdwg.mxu0
    %v1806 = vsel %vm184, %v1736, 0
    %v1809 = vsel %vm184, %v1762, 0
    %v1812 = vsel %vm184, %v1765, 0
    %1814 = vmatpush.xpose.msra.mxu0 0.0
    %1815 = vmatpush.xpose.msra.mxu0 0.0
    %1816 = vmatpush.xpose.msra.mxu0 0.0
    %1817 = vmatpush.xpose.msra.mxu0 0.0
    %1818 = vmatpush.xpose.msra.mxu0 0.0
    %1819 = vmatpush.xpose.msra.mxu0 0.0
    %1820 = vmatpush.xpose.msra.mxu0 0.0
    %1821 = vmatpush.xpose.msra.mxu0 0.0
    %1822 = vmatpush.xpose.msra.mxu0 0.0
    %1823 = vmatpush.xpose.msra.mxu0 0.0
    %1824 = vmatpush.xpose.msra.mxu0 0.0
    %1825 = vmatpush.xpose.msra.mxu0 0.0
    %1826 = vmatpush.xpose.msra.mxu0 0.0
    %1827 = vmatpush.xpose.msra.mxu0 0.0
    %1828 = vmatpush.xpose.msra.mxu0 %v1812
    %1829 = vmatpush.xpose.msra.mxu0 %v1809
    %1830 = vmatmul.f32.gmra.mxu0 %v1806
    %v1831 = vpop.f32.mrf.mxu0
    %v1832 = vadd.f32 0.0, %v1831
    %1833 = vdwg.mxu0
    %v1835 = vsel %vm184, %v1739, 0
    %v1838 = vsel %vm184, %v1768, 0
    %v1841 = vsel %vm184, %v1771, 0
    %1843 = vmatpush.xpose.msra.mxu0 0.0
    %1844 = vmatpush.xpose.msra.mxu0 0.0
    %1845 = vmatpush.xpose.msra.mxu0 0.0
    %1846 = vmatpush.xpose.msra.mxu0 0.0
    %1847 = vmatpush.xpose.msra.mxu0 0.0
    %1848 = vmatpush.xpose.msra.mxu0 0.0
    %1849 = vmatpush.xpose.msra.mxu0 0.0
    %1850 = vmatpush.xpose.msra.mxu0 0.0
    %1851 = vmatpush.xpose.msra.mxu0 0.0
    %1852 = vmatpush.xpose.msra.mxu0 0.0
    %1853 = vmatpush.xpose.msra.mxu0 0.0
    %1854 = vmatpush.xpose.msra.mxu0 0.0
    %1855 = vmatpush.xpose.msra.mxu0 0.0
    %1856 = vmatpush.xpose.msra.mxu0 0.0
    %1857 = vmatpush.xpose.msra.mxu0 %v1841
    %1858 = vmatpush.xpose.msra.mxu0 %v1838
    %1859 = vmatmul.f32.gmra.mxu0 %v1835
    %v1860 = vpop.f32.mrf.mxu0
    %v1861 = vadd.f32 0.0, %v1860
    %1862 = vdwg.mxu0
    %v1863 = vsel %vm243, %v1832, -inf
    %1864 = vmax.xlane.f32.xlu0 %v1863
    %v1865 = vpop.xlane.xlu0 %1864
    %v1866 = vsel %vm243, %v1861, -inf
    %1867 = vmax.xlane.f32.xlu0 %v1866
    %v1868 = vpop.xlane.xlu0 %1867
    %v1869 = vsub.f32 %v1832, %v1865
    %v1870 = vsub.f32 %v1861, %v1868
    %v1871 = vmul.f32 %v1869, 1.442695
    %v1872 = vpow.pop %v1871
    %v1873 = vmul.f32 %v1870, 1.442695
    %v1874 = vpow.pop %v1873
    %v1875 = vsel %vm243, %v1872, 0.0
    %1876 = vadd.xlane.f32.xlu0 %v1875
    %v1877 = vpop.xlane.xlu0 %1876
    %v1878 = vsel %vm243, %v1874, 0.0
    %1879 = vadd.xlane.f32.xlu0 %v1878
    %v1880 = vpop.xlane.xlu0 %1879
    %v1881 = vrcp.pop %v1877
    %v1882 = vrcp.pop %v1880
    %v1883 = vmul.f32 %v1872, %v1881
    %v1884 = vmul.f32 %v1874, %v1882
    %v1886 = vsel %vm243, %v1883, 0
    %1888 = vmatpush.msra.mxu0 0.0
    %1889 = vmatpush.msra.mxu0 0.0
    %1890 = vmatpush.msra.mxu0 0.0
    %1891 = vmatpush.msra.mxu0 0.0
    %1892 = vmatpush.msra.mxu0 0.0
    %1893 = vmatpush.msra.mxu0 0.0
    %1894 = vmatpush.msra.mxu0 0.0
    %1895 = vmatpush.msra.mxu0 0.0
    %1896 = vmatpush.msra.mxu0 0.0
    %1897 = vmatpush.msra.mxu0 0.0
    %1898 = vmatpush.msra.mxu0 0.0
    %1899 = vmatpush.msra.mxu0 0.0
    %1900 = vmatpush.msra.mxu0 0.0
    %1901 = vmatpush.msra.mxu0 0.0
    %1902 = vmatpush.msra.mxu0 %v1797
    %1903 = vmatpush.msra.mxu0 %v1794
    %1904 = vmatmul.f32.gmra.mxu0 %v1886
    %v1905 = vpop.f32.mrf.mxu0
    %v1906 = vadd.f32 0.0, %v1905
    %1907 = vdwg.mxu0
    %v1909 = vsel %vm243, %v1884, 0
    %1911 = vmatpush.msra.mxu0 0.0
    %1912 = vmatpush.msra.mxu0 0.0
    %1913 = vmatpush.msra.mxu0 0.0
    %1914 = vmatpush.msra.mxu0 0.0
    %1915 = vmatpush.msra.mxu0 0.0
    %1916 = vmatpush.msra.mxu0 0.0
    %1917 = vmatpush.msra.mxu0 0.0
    %1918 = vmatpush.msra.mxu0 0.0
    %1919 = vmatpush.msra.mxu0 0.0
    %1920 = vmatpush.msra.mxu0 0.0
    %1921 = vmatpush.msra.mxu0 0.0
    %1922 = vmatpush.msra.mxu0 0.0
    %1923 = vmatpush.msra.mxu0 0.0
    %1924 = vmatpush.msra.mxu0 0.0
    %1925 = vmatpush.msra.mxu0 %v1803
    %1926 = vmatpush.msra.mxu0 %v1800
    %1927 = vmatmul.f32.gmra.mxu0 %v1909
    %v1928 = vpop.f32.mrf.mxu0
    %v1929 = vadd.f32 0.0, %v1928
    %1930 = vdwg.mxu0
    %v1932 = vsel %vm184, %v1906, 0
    %v1935 = vsel %vm184, %v1929, 0
    %1937 = vmatpush.msra.mxu0 0.0
    %1938 = vmatpush.msra.mxu0 0.0
    %1939 = vmatpush.msra.mxu0 0.0
    %1940 = vmatpush.msra.mxu0 0.0
    %1941 = vmatpush.msra.mxu0 0.0
    %1942 = vmatpush.msra.mxu0 0.0
    %1943 = vmatpush.msra.mxu0 0.0
    %1944 = vmatpush.msra.mxu0 0.0
    %1945 = vmatpush.msra.mxu0 0.0
    %1946 = vmatpush.msra.mxu0 0.0
    %1947 = vmatpush.msra.mxu0 0.0
    %1948 = vmatpush.msra.mxu0 0.0
    %1949 = vmatpush.msra.mxu0 0.0
    %1950 = vmatpush.msra.mxu0 0.0
    %1951 = vmatpush.msra.mxu0 0.0
    %1952 = vmatpush.msra.mxu0 %v1712
    %1953 = vmatmul.f32.gmra.mxu0 %v1932
    %v1954 = vpop.f32.mrf.mxu0
    %v1955 = vadd.f32 0.0, %v1954
    %1956 = vmatmul.f32.gmra.mxu0 %v1935
    %v1957 = vpop.f32.mrf.mxu0
    %v1958 = vadd.f32 0.0, %v1957
    %1959 = vdwg.mxu0
    %v1960 = vadd.f32 %v1704, %v1955
    %v1961 = vadd.f32 %v1707, %v1958
    %v1962 = vld [vmem:[#allocation2 + $0x98] sm:$0xff]
    %v1963 = vld [vmem:[#allocation2 + $0xb8] sm:$0xff]
    %v1964 = vld [vmem:[#allocation2 + $0xd8] sm:$0xff]
    %v1965 = vld [vmem:[#allocation2 + $0xf8] sm:$0xff]
    %v1966 = vld [vmem:[#allocation2 + $0x2c8] sm:$0x1]
    %v1967 = vperm.slane %v1966, 0
    %v1969 = vsel %vm63, %v1962, 0
    %1971 = vmatpush.xpose.msra.mxu0 0.0
    %1972 = vmatpush.xpose.msra.mxu0 0.0
    %1973 = vmatpush.xpose.msra.mxu0 0.0
    %1974 = vmatpush.xpose.msra.mxu0 0.0
    %1975 = vmatpush.xpose.msra.mxu0 0.0
    %1976 = vmatpush.xpose.msra.mxu0 0.0
    %1977 = vmatpush.xpose.msra.mxu0 0.0
    %1978 = vmatpush.xpose.msra.mxu0 0.0
    %1979 = vmatpush.xpose.msra.mxu0 0.0
    %1980 = vmatpush.xpose.msra.mxu0 0.0
    %1981 = vmatpush.xpose.msra.mxu0 0.0
    %1982 = vmatpush.xpose.msra.mxu0 0.0
    %1983 = vmatpush.xpose.msra.mxu0 0.0
    %1984 = vmatpush.xpose.msra.mxu0 0.0
    %1985 = vmatpush.xpose.msra.mxu0 0.0
    %1986 = vmatpush.xpose.msra.mxu0 %v1969
    %1987 = vmatmul.f32.gmra.mxu0 %v1184
    %v1988 = vpop.f32.mrf.mxu0
    %v1989 = vadd.f32 %v1967, %v1988
    %1990 = vmatmul.f32.gmra.mxu0 %v1187
    %v1991 = vpop.f32.mrf.mxu0
    %v1992 = vadd.f32 %v1967, %v1991
    %1993 = vdwg.mxu0
    %v1995 = vsel %vm63, %v1963, 0
    %1997 = vmatpush.xpose.msra.mxu0 0.0
    %1998 = vmatpush.xpose.msra.mxu0 0.0
    %1999 = vmatpush.xpose.msra.mxu0 0.0
    %2000 = vmatpush.xpose.msra.mxu0 0.0
    %2001 = vmatpush.xpose.msra.mxu0 0.0
    %2002 = vmatpush.xpose.msra.mxu0 0.0
    %2003 = vmatpush.xpose.msra.mxu0 0.0
    %2004 = vmatpush.xpose.msra.mxu0 0.0
    %2005 = vmatpush.xpose.msra.mxu0 0.0
    %2006 = vmatpush.xpose.msra.mxu0 0.0
    %2007 = vmatpush.xpose.msra.mxu0 0.0
    %2008 = vmatpush.xpose.msra.mxu0 0.0
    %2009 = vmatpush.xpose.msra.mxu0 0.0
    %2010 = vmatpush.xpose.msra.mxu0 0.0
    %2011 = vmatpush.xpose.msra.mxu0 0.0
    %2012 = vmatpush.xpose.msra.mxu0 %v1995
    %2013 = vmatmul.f32.gmra.mxu0 %v1216
    %v2014 = vpop.f32.mrf.mxu0
    %v2015 = vadd.f32 0.0, %v2014
    %2016 = vmatmul.f32.gmra.mxu0 %v1219
    %v2017 = vpop.f32.mrf.mxu0
    %v2018 = vadd.f32 0.0, %v2017
    %2019 = vmatmul.f32.gmra.mxu0 %v1222
    %v2020 = vpop.f32.mrf.mxu0
    %v2021 = vadd.f32 0.0, %v2020
    %2022 = vmatmul.f32.gmra.mxu0 %v1225
    %v2023 = vpop.f32.mrf.mxu0
    %v2024 = vadd.f32 0.0, %v2023
    %2025 = vdwg.mxu0
    %v2027 = vsel %vm63, %v1964, 0
    %2029 = vmatpush.xpose.msra.mxu0 0.0
    %2030 = vmatpush.xpose.msra.mxu0 0.0
    %2031 = vmatpush.xpose.msra.mxu0 0.0
    %2032 = vmatpush.xpose.msra.mxu0 0.0
    %2033 = vmatpush.xpose.msra.mxu0 0.0
    %2034 = vmatpush.xpose.msra.mxu0 0.0
    %2035 = vmatpush.xpose.msra.mxu0 0.0
    %2036 = vmatpush.xpose.msra.mxu0 0.0
    %2037 = vmatpush.xpose.msra.mxu0 0.0
    %2038 = vmatpush.xpose.msra.mxu0 0.0
    %2039 = vmatpush.xpose.msra.mxu0 0.0
    %2040 = vmatpush.xpose.msra.mxu0 0.0
    %2041 = vmatpush.xpose.msra.mxu0 0.0
    %2042 = vmatpush.xpose.msra.mxu0 0.0
    %2043 = vmatpush.xpose.msra.mxu0 0.0
    %2044 = vmatpush.xpose.msra.mxu0 %v2027
    %2045 = vmatmul.f32.gmra.mxu0 %v1260
    %v2046 = vpop.f32.mrf.mxu0
    %v2047 = vadd.f32 0.0, %v2046
    %2048 = vmatmul.f32.gmra.mxu0 %v1263
    %v2049 = vpop.f32.mrf.mxu0
    %v2050 = vadd.f32 0.0, %v2049
    %2051 = vmatmul.f32.gmra.mxu0 %v1266
    %v2052 = vpop.f32.mrf.mxu0
    %v2053 = vadd.f32 0.0, %v2052
    %2054 = vmatmul.f32.gmra.mxu0 %v1269
    %v2055 = vpop.f32.mrf.mxu0
    %v2056 = vadd.f32 0.0, %v2055
    %2057 = vdwg.mxu0
    %v2059 = vsel %vm184, %v1989, 0
    %v2062 = vsel %vm184, %v2015, 0
    %v2065 = vsel %vm184, %v2018, 0
    %2067 = vmatpush.xpose.msra.mxu0 0.0
    %2068 = vmatpush.xpose.msra.mxu0 0.0
    %2069 = vmatpush.xpose.msra.mxu0 0.0
    %2070 = vmatpush.xpose.msra.mxu0 0.0
    %2071 = vmatpush.xpose.msra.mxu0 0.0
    %2072 = vmatpush.xpose.msra.mxu0 0.0
    %2073 = vmatpush.xpose.msra.mxu0 0.0
    %2074 = vmatpush.xpose.msra.mxu0 0.0
    %2075 = vmatpush.xpose.msra.mxu0 0.0
    %2076 = vmatpush.xpose.msra.mxu0 0.0
    %2077 = vmatpush.xpose.msra.mxu0 0.0
    %2078 = vmatpush.xpose.msra.mxu0 0.0
    %2079 = vmatpush.xpose.msra.mxu0 0.0
    %2080 = vmatpush.xpose.msra.mxu0 0.0
    %2081 = vmatpush.xpose.msra.mxu0 %v2065
    %2082 = vmatpush.xpose.msra.mxu0 %v2062
    %2083 = vmatmul.f32.gmra.mxu0 %v2059
    %v2084 = vpop.f32.mrf.mxu0
    %v2085 = vadd.f32 0.0, %v2084
    %2086 = vdwg.mxu0
    %v2088 = vsel %vm184, %v1992, 0
    %v2091 = vsel %vm184, %v2021, 0
    %v2094 = vsel %vm184, %v2024, 0
    %2096 = vmatpush.xpose.msra.mxu0 0.0
    %2097 = vmatpush.xpose.msra.mxu0 0.0
    %2098 = vmatpush.xpose.msra.mxu0 0.0
    %2099 = vmatpush.xpose.msra.mxu0 0.0
    %2100 = vmatpush.xpose.msra.mxu0 0.0
    %2101 = vmatpush.xpose.msra.mxu0 0.0
    %2102 = vmatpush.xpose.msra.mxu0 0.0
    %2103 = vmatpush.xpose.msra.mxu0 0.0
    %2104 = vmatpush.xpose.msra.mxu0 0.0
    %2105 = vmatpush.xpose.msra.mxu0 0.0
    %2106 = vmatpush.xpose.msra.mxu0 0.0
    %2107 = vmatpush.xpose.msra.mxu0 0.0
    %2108 = vmatpush.xpose.msra.mxu0 0.0
    %2109 = vmatpush.xpose.msra.mxu0 0.0
    %2110 = vmatpush.xpose.msra.mxu0 %v2094
    %2111 = vmatpush.xpose.msra.mxu0 %v2091
    %2112 = vmatmul.f32.gmra.mxu0 %v2088
    %v2113 = vpop.f32.mrf.mxu0
    %v2114 = vadd.f32 0.0, %v2113
    %2115 = vdwg.mxu0
    %v2116 = vsel %vm243, %v2085, -inf
    %2117 = vmax.xlane.f32.xlu0 %v2116
    %v2118 = vpop.xlane.xlu0 %2117
    %v2119 = vsel %vm243, %v2114, -inf
    %2120 = vmax.xlane.f32.xlu0 %v2119
    %v2121 = vpop.xlane.xlu0 %2120
    %v2122 = vsub.f32 %v2085, %v2118
    %v2123 = vsub.f32 %v2114, %v2121
    %v2124 = vmul.f32 %v2122, 1.442695
    %v2125 = vpow.pop %v2124
    %v2126 = vmul.f32 %v2123, 1.442695
    %v2127 = vpow.pop %v2126
    %v2128 = vsel %vm243, %v2125, 0.0
    %2129 = vadd.xlane.f32.xlu0 %v2128
    %v2130 = vpop.xlane.xlu0 %2129
    %v2131 = vsel %vm243, %v2127, 0.0
    %2132 = vadd.xlane.f32.xlu0 %v2131
    %v2133 = vpop.xlane.xlu0 %2132
    %v2134 = vrcp.pop %v2130
    %v2135 = vrcp.pop %v2133
    %v2136 = vmul.f32 %v2125, %v2134
    %v2137 = vmul.f32 %v2127, %v2135
    %v2139 = vsel %vm243, %v2136, 0
    %2141 = vmatpush.msra.mxu0 0.0
    %2142 = vmatpush.msra.mxu0 0.0
    %2143 = vmatpush.msra.mxu0 0.0
    %2144 = vmatpush.msra.mxu0 0.0
    %2145 = vmatpush.msra.mxu0 0.0
    %2146 = vmatpush.msra.mxu0 0.0
    %2147 = vmatpush.msra.mxu0 0.0
    %2148 = vmatpush.msra.mxu0 0.0
    %2149 = vmatpush.msra.mxu0 0.0
    %2150 = vmatpush.msra.mxu0 0.0
    %2151 = vmatpush.msra.mxu0 0.0
    %2152 = vmatpush.msra.mxu0 0.0
    %2153 = vmatpush.msra.mxu0 0.0
    %2154 = vmatpush.msra.mxu0 0.0
    %2155 = vmatpush.msra.mxu0 %v2050
    %2156 = vmatpush.msra.mxu0 %v2047
    %2157 = vmatmul.f32.gmra.mxu0 %v2139
    %v2158 = vpop.f32.mrf.mxu0
    %v2159 = vadd.f32 0.0, %v2158
    %2160 = vdwg.mxu0
    %v2162 = vsel %vm243, %v2137, 0
    %2164 = vmatpush.msra.mxu0 0.0
    %2165 = vmatpush.msra.mxu0 0.0
    %2166 = vmatpush.msra.mxu0 0.0
    %2167 = vmatpush.msra.mxu0 0.0
    %2168 = vmatpush.msra.mxu0 0.0
    %2169 = vmatpush.msra.mxu0 0.0
    %2170 = vmatpush.msra.mxu0 0.0
    %2171 = vmatpush.msra.mxu0 0.0
    %2172 = vmatpush.msra.mxu0 0.0
    %2173 = vmatpush.msra.mxu0 0.0
    %2174 = vmatpush.msra.mxu0 0.0
    %2175 = vmatpush.msra.mxu0 0.0
    %2176 = vmatpush.msra.mxu0 0.0
    %2177 = vmatpush.msra.mxu0 0.0
    %2178 = vmatpush.msra.mxu0 %v2056
    %2179 = vmatpush.msra.mxu0 %v2053
    %2180 = vmatmul.f32.gmra.mxu0 %v2162
    %v2181 = vpop.f32.mrf.mxu0
    %v2182 = vadd.f32 0.0, %v2181
    %2183 = vdwg.mxu0
    %v2185 = vsel %vm184, %v2159, 0
    %v2188 = vsel %vm184, %v2182, 0
    %2190 = vmatpush.msra.mxu0 0.0
    %2191 = vmatpush.msra.mxu0 0.0
    %2192 = vmatpush.msra.mxu0 0.0
    %2193 = vmatpush.msra.mxu0 0.0
    %2194 = vmatpush.msra.mxu0 0.0
    %2195 = vmatpush.msra.mxu0 0.0
    %2196 = vmatpush.msra.mxu0 0.0
    %2197 = vmatpush.msra.mxu0 0.0
    %2198 = vmatpush.msra.mxu0 0.0
    %2199 = vmatpush.msra.mxu0 0.0
    %2200 = vmatpush.msra.mxu0 0.0
    %2201 = vmatpush.msra.mxu0 0.0
    %2202 = vmatpush.msra.mxu0 0.0
    %2203 = vmatpush.msra.mxu0 0.0
    %2204 = vmatpush.msra.mxu0 0.0
    %2205 = vmatpush.msra.mxu0 %v1965
    %2206 = vmatmul.f32.gmra.mxu0 %v2185
    %v2207 = vpop.f32.mrf.mxu0
    %v2208 = vadd.f32 0.0, %v2207
    %2209 = vmatmul.f32.gmra.mxu0 %v2188
    %v2210 = vpop.f32.mrf.mxu0
    %v2211 = vadd.f32 0.0, %v2210
    %2212 = vdwg.mxu0
    %v2213 = vadd.f32 %v1960, %v2208
    %v2214 = vadd.f32 %v1961, %v2211
    %v2215 = vld [vmem:[#allocation2 + $0x2c9] sm:$0x1]
    %v2216 = vperm.slane %v2215, 0
    %v2217 = vadd.f32 %v2213, %v2216
    %v2218 = vadd.f32 %v2214, %v2216
    %v2219 = vadd.f32 %v1173, %v2217
    %v2220 = vadd.f32 %v1174, %v2218
    %v2221 = vld [vmem:[#allocation2 + $0x2ce] sm:$0x1]
    %v2222 = vld [vmem:[#allocation2 + $0x2cf] sm:$0x1]
    %v2223 = vsel %vm63, %v2219, 0.0
    %2224 = vadd.xlane.f32.xlu0 %v2223
    %v2225 = vpop.xlane.xlu0 %2224
    %v2226 = vsel %vm63, %v2220, 0.0
    %2227 = vadd.xlane.f32.xlu0 %v2226
    %v2228 = vpop.xlane.xlu0 %2227
    %v2229 = vmul.f32 %v2225, %v1130
    %v2230 = vmul.f32 %v2228, %v1130
    %v2231 = vsub.f32 %v2219, %v2229
    %v2232 = vsub.f32 %v2220, %v2230
    %v2233 = vmul.f32 %v2231, %v2231
    %v2234 = vmul.f32 %v2232, %v2232
    %v2235 = vsel %vm63, %v2233, 0.0
    %2236 = vadd.xlane.f32.xlu0 %v2235
    %v2237 = vpop.xlane.xlu0 %2236
    %v2238 = vsel %vm63, %v2234, 0.0
    %2239 = vadd.xlane.f32.xlu0 %v2238
    %v2240 = vpop.xlane.xlu0 %2239
    %v2241 = vmul.f32 %v2237, %v1130
    %v2242 = vmul.f32 %v2240, %v1130
    %v2243 = vadd.f32 %v2241, 1e-05
    %v2244 = vadd.f32 %v2242, 1e-05
    %v2245 = vrsqrt.pop %v2243
    %v2246 = vmul.f32 %v2245, %v2243
    %v2247 = vmul.f32 %v2246, %v2245
    %v2248 = vmul.f32 0.5, %v2247
    %v2249 = vsub.f32 1.5, %v2248
    %v2250 = vmul.f32 %v2245, %v2249
    %vm2251 = vweird.f32 %v2243
    %vm2252 = vweird.f32 %v2245
    %vm2253 = vmor %vm2251, %vm2252
    %v2254 = vsel %vm2253, %v2245, %v2250
    %v2255 = vrsqrt.pop %v2244
    %v2256 = vmul.f32 %v2255, %v2244
    %v2257 = vmul.f32 %v2256, %v2255
    %v2258 = vmul.f32 0.5, %v2257
    %v2259 = vsub.f32 1.5, %v2258
    %v2260 = vmul.f32 %v2255, %v2259
    %vm2261 = vweird.f32 %v2244
    %vm2262 = vweird.f32 %v2255
    %vm2263 = vmor %vm2261, %vm2262
    %v2264 = vsel %vm2263, %v2255, %v2260
    %v2265 = vmul.f32 %v2231, %v2254
    %v2266 = vmul.f32 %v2232, %v2264
    %v2267 = vperm.slane %v2221, 0
    %v2268 = vmul.f32 %v2265, %v2267
    %v2269 = vmul.f32 %v2266, %v2267
    %v2270 = vperm.slane %v2222, 0
    %v2271 = vadd.f32 %v2268, %v2270
    %v2272 = vadd.f32 %v2269, %v2270
    %v2273 = vld [vmem:[#allocation2 + $0x100] sm:$0xff]
    %v2274 = vld [vmem:[#allocation2 + $0x108] sm:$0xff]
    %v2275 = vld [vmem:[#allocation2 + $0x110] sm:$0xff]
    %v2276 = vld [vmem:[#allocation2 + $0x118] sm:$0xff]
    %v2277 = vld [vmem:[#allocation2 + $0x2ca] sm:$0x1]
    %v2278 = vperm.slane %v2277, 0
    %v2280 = vsel %vm63, %v2271, 0
    %v2283 = vsel %vm63, %v2272, 0
    %2285 = vmatpush.msra.mxu0 0.0
    %2286 = vmatpush.msra.mxu0 0.0
    %2287 = vmatpush.msra.mxu0 0.0
    %2288 = vmatpush.msra.mxu0 0.0
    %2289 = vmatpush.msra.mxu0 0.0
    %2290 = vmatpush.msra.mxu0 0.0
    %2291 = vmatpush.msra.mxu0 0.0
    %2292 = vmatpush.msra.mxu0 0.0
    %2293 = vmatpush.msra.mxu0 0.0
    %2294 = vmatpush.msra.mxu0 0.0
    %2295 = vmatpush.msra.mxu0 0.0
    %2296 = vmatpush.msra.mxu0 0.0
    %2297 = vmatpush.msra.mxu0 %v2276
    %2298 = vmatpush.msra.mxu0 %v2275
    %2299 = vmatpush.msra.mxu0 %v2274
    %2300 = vmatpush.msra.mxu0 %v2273
    %2301 = vmatmul.f32.gmra.mxu0 %v2280
    %v2302 = vpop.f32.mrf.mxu0
    %v2303 = vadd.f32 %v2278, %v2302
    %2304 = vmatmul.f32.gmra.mxu0 %v2283
    %v2305 = vpop.f32.mrf.mxu0
    %v2306 = vadd.f32 %v2278, %v2305
    %2307 = vdwg.mxu0
    %v2308 = vmax.f32 %v2303, 0.0
    %v2309 = vmax.f32 %v2306, 0.0
    %v2310 = vld [vmem:[#allocation2 + $0x120] sm:$0xff]
    %v2311 = vld [vmem:[#allocation2 + $0x128] sm:$0xff]
    %v2312 = vld [vmem:[#allocation2 + $0x130] sm:$0xff]
    %v2313 = vld [vmem:[#allocation2 + $0x138] sm:$0xff]
    %v2314 = vld [vmem:[#allocation2 + $0x140] sm:$0xff]
    %v2315 = vld [vmem:[#allocation2 + $0x148] sm:$0xff]
    %v2316 = vld [vmem:[#allocation2 + $0x150] sm:$0xff]
    %v2317 = vld [vmem:[#allocation2 + $0x158] sm:$0xff]
    %v2318 = vld [vmem:[#allocation2 + $0x2cb] sm:$0x1]
    %v2319 = vperm.slane %v2318, 0
    %vm2320 = vcmask 523264
    %v2322 = vsel %vm2320, %v2308, 0
    %v2325 = vsel %vm2320, %v2309, 0
    %2327 = vmatpush.msra.mxu0 0.0
    %2328 = vmatpush.msra.mxu0 0.0
    %2329 = vmatpush.msra.mxu0 0.0
    %2330 = vmatpush.msra.mxu0 0.0
    %2331 = vmatpush.msra.mxu0 0.0
    %2332 = vmatpush.msra.mxu0 0.0
    %2333 = vmatpush.msra.mxu0 0.0
    %2334 = vmatpush.msra.mxu0 0.0
    %2335 = vmatpush.msra.mxu0 %v2317
    %2336 = vmatpush.msra.mxu0 %v2316
    %2337 = vmatpush.msra.mxu0 %v2315
    %2338 = vmatpush.msra.mxu0 %v2314
    %2339 = vmatpush.msra.mxu0 %v2313
    %2340 = vmatpush.msra.mxu0 %v2312
    %2341 = vmatpush.msra.mxu0 %v2311
    %2342 = vmatpush.msra.mxu0 %v2310
    %2343 = vmatmul.f32.gmra.mxu0 %v2322
    %v2344 = vpop.f32.mrf.mxu0
    %v2345 = vadd.f32 %v2319, %v2344
    %2346 = vmatmul.f32.gmra.mxu0 %v2325
    %v2347 = vpop.f32.mrf.mxu0
    %v2348 = vadd.f32 %v2319, %v2347
    %2349 = vdwg.mxu0
    %v2350 = vadd.f32 %v2271, %v2345
    %v2351 = vadd.f32 %v2272, %v2348
    %v2352 = vld [vmem:[#allocation2 + $0x2d0] sm:$0x1]
    %v2353 = vld [vmem:[#allocation2 + $0x2d1] sm:$0x1]
    %v2354 = vsel %vm63, %v2350, 0.0
    %2355 = vadd.xlane.f32.xlu0 %v2354
    %v2356 = vpop.xlane.xlu0 %2355
    %v2357 = vsel %vm63, %v2351, 0.0
    %2358 = vadd.xlane.f32.xlu0 %v2357
    %v2359 = vpop.xlane.xlu0 %2358
    %v2360 = vmul.f32 %v2356, %v1130
    %v2361 = vmul.f32 %v2359, %v1130
    %v2362 = vsub.f32 %v2350, %v2360
    %v2363 = vsub.f32 %v2351, %v2361
    %v2364 = vmul.f32 %v2362, %v2362
    %v2365 = vmul.f32 %v2363, %v2363
    %v2366 = vsel %vm63, %v2364, 0.0
    %2367 = vadd.xlane.f32.xlu0 %v2366
    %v2368 = vpop.xlane.xlu0 %2367
    %v2369 = vsel %vm63, %v2365, 0.0
    %2370 = vadd.xlane.f32.xlu0 %v2369
    %v2371 = vpop.xlane.xlu0 %2370
    %v2372 = vmul.f32 %v2368, %v1130
    %v2373 = vmul.f32 %v2371, %v1130
    %v2374 = vadd.f32 %v2372, 1e-05
    %v2375 = vadd.f32 %v2373, 1e-05
    %v2376 = vrsqrt.pop %v2374
    %v2377 = vmul.f32 %v2376, %v2374
    %v2378 = vmul.f32 %v2377, %v2376
    %v2379 = vmul.f32 0.5, %v2378
    %v2380 = vsub.f32 1.5, %v2379
    %v2381 = vmul.f32 %v2376, %v2380
    %vm2382 = vweird.f32 %v2374
    %vm2383 = vweird.f32 %v2376
    %vm2384 = vmor %vm2382, %vm2383
    %v2385 = vsel %vm2384, %v2376, %v2381
    %v2386 = vrsqrt.pop %v2375
    %v2387 = vmul.f32 %v2386, %v2375
    %v2388 = vmul.f32 %v2387, %v2386
    %v2389 = vmul.f32 0.5, %v2388
    %v2390 = vsub.f32 1.5, %v2389
    %v2391 = vmul.f32 %v2386, %v2390
    %vm2392 = vweird.f32 %v2375
    %vm2393 = vweird.f32 %v2386
    %vm2394 = vmor %vm2392, %vm2393
    %v2395 = vsel %vm2394, %v2386, %v2391
    %v2396 = vmul.f32 %v2362, %v2385
    %v2397 = vmul.f32 %v2363, %v2395
    %v2398 = vperm.slane %v2352, 0
    %v2399 = vmul.f32 %v2396, %v2398
    %v2400 = vmul.f32 %v2397, %v2398
    %v2401 = vperm.slane %v2353, 0
    %v2402 = vadd.f32 %v2399, %v2401
    %v2403 = vadd.f32 %v2400, %v2401
    %v2404 = vadd.f32 %v2402, %v33
    %v2405 = vadd.f32 %v2403, %v34
    %v2406 = vld [vmem:[#allocation2 + $0x160] sm:$0xff]
    %v2407 = vld [vmem:[#allocation2 + $0x180] sm:$0xff]
    %v2408 = vld [vmem:[#allocation2 + $0x1a0] sm:$0xff]
    %v2409 = vld [vmem:[#allocation2 + $0x1c0] sm:$0xff]
    %v2410 = vld [vmem:[#allocation2 + $0x2d2] sm:$0x1]
    %v2411 = vperm.slane %v2410, 0
    %v2413 = vsel %vm63, %v2404, 0
    %v2416 = vsel %vm63, %v2405, 0
    %v2419 = vsel %vm63, %v2406, 0
    %2421 = vmatpush.xpose.msra.mxu0 0.0
    %2422 = vmatpush.xpose.msra.mxu0 0.0
    %2423 = vmatpush.xpose.msra.mxu0 0.0
    %2424 = vmatpush.xpose.msra.mxu0 0.0
    %2425 = vmatpush.xpose.msra.mxu0 0.0
    %2426 = vmatpush.xpose.msra.mxu0 0.0
    %2427 = vmatpush.xpose.msra.mxu0 0.0
    %2428 = vmatpush.xpose.msra.mxu0 0.0
    %2429 = vmatpush.xpose.msra.mxu0 0.0
    %2430 = vmatpush.xpose.msra.mxu0 0.0
    %2431 = vmatpush.xpose.msra.mxu0 0.0
    %2432 = vmatpush.xpose.msra.mxu0 0.0
    %2433 = vmatpush.xpose.msra.mxu0 0.0
    %2434 = vmatpush.xpose.msra.mxu0 0.0
    %2435 = vmatpush.xpose.msra.mxu0 0.0
    %2436 = vmatpush.xpose.msra.mxu0 %v2419
    %2437 = vmatmul.f32.gmra.mxu0 %v2413
    %v2438 = vpop.f32.mrf.mxu0
    %v2439 = vadd.f32 %v2411, %v2438
    %2440 = vmatmul.f32.gmra.mxu0 %v2416
    %v2441 = vpop.f32.mrf.mxu0
    %v2442 = vadd.f32 %v2411, %v2441
    %2443 = vdwg.mxu0
    %v2445 = vsel %vm63, %v2407, 0
    %2447 = vmatpush.xpose.msra.mxu0 0.0
    %2448 = vmatpush.xpose.msra.mxu0 0.0
    %2449 = vmatpush.xpose.msra.mxu0 0.0
    %2450 = vmatpush.xpose.msra.mxu0 0.0
    %2451 = vmatpush.xpose.msra.mxu0 0.0
    %2452 = vmatpush.xpose.msra.mxu0 0.0
    %2453 = vmatpush.xpose.msra.mxu0 0.0
    %2454 = vmatpush.xpose.msra.mxu0 0.0
    %2455 = vmatpush.xpose.msra.mxu0 0.0
    %2456 = vmatpush.xpose.msra.mxu0 0.0
    %2457 = vmatpush.xpose.msra.mxu0 0.0
    %2458 = vmatpush.xpose.msra.mxu0 0.0
    %2459 = vmatpush.xpose.msra.mxu0 0.0
    %2460 = vmatpush.xpose.msra.mxu0 0.0
    %2461 = vmatpush.xpose.msra.mxu0 0.0
    %2462 = vmatpush.xpose.msra.mxu0 %v2445
    %2463 = vmatmul.f32.gmra.mxu0 %v97
    %v2464 = vpop.f32.mrf.mxu0
    %v2465 = vadd.f32 0.0, %v2464
    %2466 = vmatmul.f32.gmra.mxu0 %v100
    %v2467 = vpop.f32.mrf.mxu0
    %v2468 = vadd.f32 0.0, %v2467
    %2469 = vmatmul.f32.gmra.mxu0 %v103
    %v2470 = vpop.f32.mrf.mxu0
    %v2471 = vadd.f32 0.0, %v2470
    %2472 = vmatmul.f32.gmra.mxu0 %v106
    %v2473 = vpop.f32.mrf.mxu0
    %v2474 = vadd.f32 0.0, %v2473
    %2475 = vdwg.mxu0
    %v2477 = vsel %vm63, %v2408, 0
    %2479 = vmatpush.xpose.msra.mxu0 0.0
    %2480 = vmatpush.xpose.msra.mxu0 0.0
    %2481 = vmatpush.xpose.msra.mxu0 0.0
    %2482 = vmatpush.xpose.msra.mxu0 0.0
    %2483 = vmatpush.xpose.msra.mxu0 0.0
    %2484 = vmatpush.xpose.msra.mxu0 0.0
    %2485 = vmatpush.xpose.msra.mxu0 0.0
    %2486 = vmatpush.xpose.msra.mxu0 0.0
    %2487 = vmatpush.xpose.msra.mxu0 0.0
    %2488 = vmatpush.xpose.msra.mxu0 0.0
    %2489 = vmatpush.xpose.msra.mxu0 0.0
    %2490 = vmatpush.xpose.msra.mxu0 0.0
    %2491 = vmatpush.xpose.msra.mxu0 0.0
    %2492 = vmatpush.xpose.msra.mxu0 0.0
    %2493 = vmatpush.xpose.msra.mxu0 0.0
    %2494 = vmatpush.xpose.msra.mxu0 %v2477
    %2495 = vmatmul.f32.gmra.mxu0 %v141
    %v2496 = vpop.f32.mrf.mxu0
    %v2497 = vadd.f32 0.0, %v2496
    %2498 = vmatmul.f32.gmra.mxu0 %v144
    %v2499 = vpop.f32.mrf.mxu0
    %v2500 = vadd.f32 0.0, %v2499
    %2501 = vmatmul.f32.gmra.mxu0 %v147
    %v2502 = vpop.f32.mrf.mxu0
    %v2503 = vadd.f32 0.0, %v2502
    %2504 = vmatmul.f32.gmra.mxu0 %v150
    %v2505 = vpop.f32.mrf.mxu0
    %v2506 = vadd.f32 0.0, %v2505
    %2507 = vdwg.mxu0
    %v2509 = vsel %vm184, %v2439, 0
    %v2512 = vsel %vm184, %v2465, 0
    %v2515 = vsel %vm184, %v2468, 0
    %2517 = vmatpush.xpose.msra.mxu0 0.0
    %2518 = vmatpush.xpose.msra.mxu0 0.0
    %2519 = vmatpush.xpose.msra.mxu0 0.0
    %2520 = vmatpush.xpose.msra.mxu0 0.0
    %2521 = vmatpush.xpose.msra.mxu0 0.0
    %2522 = vmatpush.xpose.msra.mxu0 0.0
    %2523 = vmatpush.xpose.msra.mxu0 0.0
    %2524 = vmatpush.xpose.msra.mxu0 0.0
    %2525 = vmatpush.xpose.msra.mxu0 0.0
    %2526 = vmatpush.xpose.msra.mxu0 0.0
    %2527 = vmatpush.xpose.msra.mxu0 0.0
    %2528 = vmatpush.xpose.msra.mxu0 0.0
    %2529 = vmatpush.xpose.msra.mxu0 0.0
    %2530 = vmatpush.xpose.msra.mxu0 0.0
    %2531 = vmatpush.xpose.msra.mxu0 %v2515
    %2532 = vmatpush.xpose.msra.mxu0 %v2512
    %2533 = vmatmul.f32.gmra.mxu0 %v2509
    %v2534 = vpop.f32.mrf.mxu0
    %v2535 = vadd.f32 0.0, %v2534
    %2536 = vdwg.mxu0
    %v2538 = vsel %vm184, %v2442, 0
    %v2541 = vsel %vm184, %v2471, 0
    %v2544 = vsel %vm184, %v2474, 0
    %2546 = vmatpush.xpose.msra.mxu0 0.0
    %2547 = vmatpush.xpose.msra.mxu0 0.0
    %2548 = vmatpush.xpose.msra.mxu0 0.0
    %2549 = vmatpush.xpose.msra.mxu0 0.0
    %2550 = vmatpush.xpose.msra.mxu0 0.0
    %2551 = vmatpush.xpose.msra.mxu0 0.0
    %2552 = vmatpush.xpose.msra.mxu0 0.0
    %2553 = vmatpush.xpose.msra.mxu0 0.0
    %2554 = vmatpush.xpose.msra.mxu0 0.0
    %2555 = vmatpush.xpose.msra.mxu0 0.0
    %2556 = vmatpush.xpose.msra.mxu0 0.0
    %2557 = vmatpush.xpose.msra.mxu0 0.0
    %2558 = vmatpush.xpose.msra.mxu0 0.0
    %2559 = vmatpush.xpose.msra.mxu0 0.0
    %2560 = vmatpush.xpose.msra.mxu0 %v2544
    %2561 = vmatpush.xpose.msra.mxu0 %v2541
    %2562 = vmatmul.f32.gmra.mxu0 %v2538
    %v2563 = vpop.f32.mrf.mxu0
    %v2564 = vadd.f32 0.0, %v2563
    %2565 = vdwg.mxu0
    %v2566 = vsel %vm243, %v2535, -inf
    %2567 = vmax.xlane.f32.xlu0 %v2566
    %v2568 = vpop.xlane.xlu0 %2567
    %v2569 = vsel %vm243, %v2564, -inf
    %2570 = vmax.xlane.f32.xlu0 %v2569
    %v2571 = vpop.xlane.xlu0 %2570
    %v2572 = vsub.f32 %v2535, %v2568
    %v2573 = vsub.f32 %v2564, %v2571
    %v2574 = vmul.f32 %v2572, 1.442695
    %v2575 = vpow.pop %v2574
    %v2576 = vmul.f32 %v2573, 1.442695
    %v2577 = vpow.pop %v2576
    %v2578 = vsel %vm243, %v2575, 0.0
    %2579 = vadd.xlane.f32.xlu0 %v2578
    %v2580 = vpop.xlane.xlu0 %2579
    %v2581 = vsel %vm243, %v2577, 0.0
    %2582 = vadd.xlane.f32.xlu0 %v2581
    %v2583 = vpop.xlane.xlu0 %2582
    %v2584 = vrcp.pop %v2580
    %v2585 = vrcp.pop %v2583
    %v2586 = vmul.f32 %v2575, %v2584
    %v2587 = vmul.f32 %v2577, %v2585
    %v2588 = vadd.f32 %v2586, 0.0
    %v2589 = vadd.f32 %v2587, 0.0
    %v2591 = vsel %vm243, %v2586, 0
    %2593 = vmatpush.msra.mxu0 0.0
    %2594 = vmatpush.msra.mxu0 0.0
    %2595 = vmatpush.msra.mxu0 0.0
    %2596 = vmatpush.msra.mxu0 0.0
    %2597 = vmatpush.msra.mxu0 0.0
    %2598 = vmatpush.msra.mxu0 0.0
    %2599 = vmatpush.msra.mxu0 0.0
    %2600 = vmatpush.msra.mxu0 0.0
    %2601 = vmatpush.msra.mxu0 0.0
    %2602 = vmatpush.msra.mxu0 0.0
    %2603 = vmatpush.msra.mxu0 0.0
    %2604 = vmatpush.msra.mxu0 0.0
    %2605 = vmatpush.msra.mxu0 0.0
    %2606 = vmatpush.msra.mxu0 0.0
    %2607 = vmatpush.msra.mxu0 %v2500
    %2608 = vmatpush.msra.mxu0 %v2497
    %2609 = vmatmul.f32.gmra.mxu0 %v2591
    %v2610 = vpop.f32.mrf.mxu0
    %v2611 = vadd.f32 0.0, %v2610
    %2612 = vdwg.mxu0
    %v2614 = vsel %vm243, %v2587, 0
    %2616 = vmatpush.msra.mxu0 0.0
    %2617 = vmatpush.msra.mxu0 0.0
    %2618 = vmatpush.msra.mxu0 0.0
    %2619 = vmatpush.msra.mxu0 0.0
    %2620 = vmatpush.msra.mxu0 0.0
    %2621 = vmatpush.msra.mxu0 0.0
    %2622 = vmatpush.msra.mxu0 0.0
    %2623 = vmatpush.msra.mxu0 0.0
    %2624 = vmatpush.msra.mxu0 0.0
    %2625 = vmatpush.msra.mxu0 0.0
    %2626 = vmatpush.msra.mxu0 0.0
    %2627 = vmatpush.msra.mxu0 0.0
    %2628 = vmatpush.msra.mxu0 0.0
    %2629 = vmatpush.msra.mxu0 0.0
    %2630 = vmatpush.msra.mxu0 %v2506
    %2631 = vmatpush.msra.mxu0 %v2503
    %2632 = vmatmul.f32.gmra.mxu0 %v2614
    %v2633 = vpop.f32.mrf.mxu0
    %v2634 = vadd.f32 0.0, %v2633
    %2635 = vdwg.mxu0
    %v2636 = vld [vmem:[#allocation2 + $0x168] sm:$0xff]
    %v2637 = vld [vmem:[#allocation2 + $0x188] sm:$0xff]
    %v2638 = vld [vmem:[#allocation2 + $0x1a8] sm:$0xff]
    %v2639 = vld [vmem:[#allocation2 + $0x1c8] sm:$0xff]
    %v2640 = vld [vmem:[#allocation2 + $0x2d3] sm:$0x1]
    %v2641 = vperm.slane %v2640, 0
    %v2643 = vsel %vm63, %v2636, 0
    %2645 = vmatpush.xpose.msra.mxu0 0.0
    %2646 = vmatpush.xpose.msra.mxu0 0.0
    %2647 = vmatpush.xpose.msra.mxu0 0.0
    %2648 = vmatpush.xpose.msra.mxu0 0.0
    %2649 = vmatpush.xpose.msra.mxu0 0.0
    %2650 = vmatpush.xpose.msra.mxu0 0.0
    %2651 = vmatpush.xpose.msra.mxu0 0.0
    %2652 = vmatpush.xpose.msra.mxu0 0.0
    %2653 = vmatpush.xpose.msra.mxu0 0.0
    %2654 = vmatpush.xpose.msra.mxu0 0.0
    %2655 = vmatpush.xpose.msra.mxu0 0.0
    %2656 = vmatpush.xpose.msra.mxu0 0.0
    %2657 = vmatpush.xpose.msra.mxu0 0.0
    %2658 = vmatpush.xpose.msra.mxu0 0.0
    %2659 = vmatpush.xpose.msra.mxu0 0.0
    %2660 = vmatpush.xpose.msra.mxu0 %v2643
    %2661 = vmatmul.f32.gmra.mxu0 %v2413
    %v2662 = vpop.f32.mrf.mxu0
    %v2663 = vadd.f32 %v2641, %v2662
    %2664 = vmatmul.f32.gmra.mxu0 %v2416
    %v2665 = vpop.f32.mrf.mxu0
    %v2666 = vadd.f32 %v2641, %v2665
    %2667 = vdwg.mxu0
    %v2669 = vsel %vm63, %v2637, 0
    %2671 = vmatpush.xpose.msra.mxu0 0.0
    %2672 = vmatpush.xpose.msra.mxu0 0.0
    %2673 = vmatpush.xpose.msra.mxu0 0.0
    %2674 = vmatpush.xpose.msra.mxu0 0.0
    %2675 = vmatpush.xpose.msra.mxu0 0.0
    %2676 = vmatpush.xpose.msra.mxu0 0.0
    %2677 = vmatpush.xpose.msra.mxu0 0.0
    %2678 = vmatpush.xpose.msra.mxu0 0.0
    %2679 = vmatpush.xpose.msra.mxu0 0.0
    %2680 = vmatpush.xpose.msra.mxu0 0.0
    %2681 = vmatpush.xpose.msra.mxu0 0.0
    %2682 = vmatpush.xpose.msra.mxu0 0.0
    %2683 = vmatpush.xpose.msra.mxu0 0.0
    %2684 = vmatpush.xpose.msra.mxu0 0.0
    %2685 = vmatpush.xpose.msra.mxu0 0.0
    %2686 = vmatpush.xpose.msra.mxu0 %v2669
    %2687 = vmatmul.f32.gmra.mxu0 %v97
    %v2688 = vpop.f32.mrf.mxu0
    %v2689 = vadd.f32 0.0, %v2688
    %2690 = vmatmul.f32.gmra.mxu0 %v100
    %v2691 = vpop.f32.mrf.mxu0
    %v2692 = vadd.f32 0.0, %v2691
    %2693 = vmatmul.f32.gmra.mxu0 %v103
    %v2694 = vpop.f32.mrf.mxu0
    %v2695 = vadd.f32 0.0, %v2694
    %2696 = vmatmul.f32.gmra.mxu0 %v106
    %v2697 = vpop.f32.mrf.mxu0
    %v2698 = vadd.f32 0.0, %v2697
    %2699 = vdwg.mxu0
    %v2701 = vsel %vm63, %v2638, 0
    %2703 = vmatpush.xpose.msra.mxu0 0.0
    %2704 = vmatpush.xpose.msra.mxu0 0.0
    %2705 = vmatpush.xpose.msra.mxu0 0.0
    %2706 = vmatpush.xpose.msra.mxu0 0.0
    %2707 = vmatpush.xpose.msra.mxu0 0.0
    %2708 = vmatpush.xpose.msra.mxu0 0.0
    %2709 = vmatpush.xpose.msra.mxu0 0.0
    %2710 = vmatpush.xpose.msra.mxu0 0.0
    %2711 = vmatpush.xpose.msra.mxu0 0.0
    %2712 = vmatpush.xpose.msra.mxu0 0.0
    %2713 = vmatpush.xpose.msra.mxu0 0.0
    %2714 = vmatpush.xpose.msra.mxu0 0.0
    %2715 = vmatpush.xpose.msra.mxu0 0.0
    %2716 = vmatpush.xpose.msra.mxu0 0.0
    %2717 = vmatpush.xpose.msra.mxu0 0.0
    %2718 = vmatpush.xpose.msra.mxu0 %v2701
    %2719 = vmatmul.f32.gmra.mxu0 %v141
    %v2720 = vpop.f32.mrf.mxu0
    %v2721 = vadd.f32 0.0, %v2720
    %2722 = vmatmul.f32.gmra.mxu0 %v144
    %v2723 = vpop.f32.mrf.mxu0
    %v2724 = vadd.f32 0.0, %v2723
    %2725 = vmatmul.f32.gmra.mxu0 %v147
    %v2726 = vpop.f32.mrf.mxu0
    %v2727 = vadd.f32 0.0, %v2726
    %2728 = vmatmul.f32.gmra.mxu0 %v150
    %v2729 = vpop.f32.mrf.mxu0
    %v2730 = vadd.f32 0.0, %v2729
    %2731 = vdwg.mxu0
    %v2733 = vsel %vm184, %v2663, 0
    %v2736 = vsel %vm184, %v2689, 0
    %v2739 = vsel %vm184, %v2692, 0
    %2741 = vmatpush.xpose.msra.mxu0 0.0
    %2742 = vmatpush.xpose.msra.mxu0 0.0
    %2743 = vmatpush.xpose.msra.mxu0 0.0
    %2744 = vmatpush.xpose.msra.mxu0 0.0
    %2745 = vmatpush.xpose.msra.mxu0 0.0
    %2746 = vmatpush.xpose.msra.mxu0 0.0
    %2747 = vmatpush.xpose.msra.mxu0 0.0
    %2748 = vmatpush.xpose.msra.mxu0 0.0
    %2749 = vmatpush.xpose.msra.mxu0 0.0
    %2750 = vmatpush.xpose.msra.mxu0 0.0
    %2751 = vmatpush.xpose.msra.mxu0 0.0
    %2752 = vmatpush.xpose.msra.mxu0 0.0
    %2753 = vmatpush.xpose.msra.mxu0 0.0
    %2754 = vmatpush.xpose.msra.mxu0 0.0
    %2755 = vmatpush.xpose.msra.mxu0 %v2739
    %2756 = vmatpush.xpose.msra.mxu0 %v2736
    %2757 = vmatmul.f32.gmra.mxu0 %v2733
    %v2758 = vpop.f32.mrf.mxu0
    %v2759 = vadd.f32 0.0, %v2758
    %2760 = vdwg.mxu0
    %v2762 = vsel %vm184, %v2666, 0
    %v2765 = vsel %vm184, %v2695, 0
    %v2768 = vsel %vm184, %v2698, 0
    %2770 = vmatpush.xpose.msra.mxu0 0.0
    %2771 = vmatpush.xpose.msra.mxu0 0.0
    %2772 = vmatpush.xpose.msra.mxu0 0.0
    %2773 = vmatpush.xpose.msra.mxu0 0.0
    %2774 = vmatpush.xpose.msra.mxu0 0.0
    %2775 = vmatpush.xpose.msra.mxu0 0.0
    %2776 = vmatpush.xpose.msra.mxu0 0.0
    %2777 = vmatpush.xpose.msra.mxu0 0.0
    %2778 = vmatpush.xpose.msra.mxu0 0.0
    %2779 = vmatpush.xpose.msra.mxu0 0.0
    %2780 = vmatpush.xpose.msra.mxu0 0.0
    %2781 = vmatpush.xpose.msra.mxu0 0.0
    %2782 = vmatpush.xpose.msra.mxu0 0.0
    %2783 = vmatpush.xpose.msra.mxu0 0.0
    %2784 = vmatpush.xpose.msra.mxu0 %v2768
    %2785 = vmatpush.xpose.msra.mxu0 %v2765
    %2786 = vmatmul.f32.gmra.mxu0 %v2762
    %v2787 = vpop.f32.mrf.mxu0
    %v2788 = vadd.f32 0.0, %v2787
    %2789 = vdwg.mxu0
    %v2790 = vsel %vm243, %v2759, -inf
    %2791 = vmax.xlane.f32.xlu0 %v2790
    %v2792 = vpop.xlane.xlu0 %2791
    %v2793 = vsel %vm243, %v2788, -inf
    %2794 = vmax.xlane.f32.xlu0 %v2793
    %v2795 = vpop.xlane.xlu0 %2794
    %v2796 = vsub.f32 %v2759, %v2792
    %v2797 = vsub.f32 %v2788, %v2795
    %v2798 = vmul.f32 %v2796, 1.442695
    %v2799 = vpow.pop %v2798
    %v2800 = vmul.f32 %v2797, 1.442695
    %v2801 = vpow.pop %v2800
    %v2802 = vsel %vm243, %v2799, 0.0
    %2803 = vadd.xlane.f32.xlu0 %v2802
    %v2804 = vpop.xlane.xlu0 %2803
    %v2805 = vsel %vm243, %v2801, 0.0
    %2806 = vadd.xlane.f32.xlu0 %v2805
    %v2807 = vpop.xlane.xlu0 %2806
    %v2808 = vrcp.pop %v2804
    %v2809 = vrcp.pop %v2807
    %v2810 = vmul.f32 %v2799, %v2808
    %v2811 = vmul.f32 %v2801, %v2809
    %v2812 = vadd.f32 %v2588, %v2810
    %v2813 = vadd.f32 %v2589, %v2811
    %v2815 = vsel %vm243, %v2810, 0
    %2817 = vmatpush.msra.mxu0 0.0
    %2818 = vmatpush.msra.mxu0 0.0
    %2819 = vmatpush.msra.mxu0 0.0
    %2820 = vmatpush.msra.mxu0 0.0
    %2821 = vmatpush.msra.mxu0 0.0
    %2822 = vmatpush.msra.mxu0 0.0
    %2823 = vmatpush.msra.mxu0 0.0
    %2824 = vmatpush.msra.mxu0 0.0
    %2825 = vmatpush.msra.mxu0 0.0
    %2826 = vmatpush.msra.mxu0 0.0
    %2827 = vmatpush.msra.mxu0 0.0
    %2828 = vmatpush.msra.mxu0 0.0
    %2829 = vmatpush.msra.mxu0 0.0
    %2830 = vmatpush.msra.mxu0 0.0
    %2831 = vmatpush.msra.mxu0 %v2724
    %2832 = vmatpush.msra.mxu0 %v2721
    %2833 = vmatmul.f32.gmra.mxu0 %v2815
    %v2834 = vpop.f32.mrf.mxu0
    %v2835 = vadd.f32 0.0, %v2834
    %2836 = vdwg.mxu0
    %v2838 = vsel %vm243, %v2811, 0
    %2840 = vmatpush.msra.mxu0 0.0
    %2841 = vmatpush.msra.mxu0 0.0
    %2842 = vmatpush.msra.mxu0 0.0
    %2843 = vmatpush.msra.mxu0 0.0
    %2844 = vmatpush.msra.mxu0 0.0
    %2845 = vmatpush.msra.mxu0 0.0
    %2846 = vmatpush.msra.mxu0 0.0
    %2847 = vmatpush.msra.mxu0 0.0
    %2848 = vmatpush.msra.mxu0 0.0
    %2849 = vmatpush.msra.mxu0 0.0
    %2850 = vmatpush.msra.mxu0 0.0
    %2851 = vmatpush.msra.mxu0 0.0
    %2852 = vmatpush.msra.mxu0 0.0
    %2853 = vmatpush.msra.mxu0 0.0
    %2854 = vmatpush.msra.mxu0 %v2730
    %2855 = vmatpush.msra.mxu0 %v2727
    %2856 = vmatmul.f32.gmra.mxu0 %v2838
    %v2857 = vpop.f32.mrf.mxu0
    %v2858 = vadd.f32 0.0, %v2857
    %2859 = vdwg.mxu0
    %v2861 = vsel %vm184, %v2835, 0
    %v2864 = vsel %vm184, %v2858, 0
    %2866 = vmatpush.msra.mxu0 0.0
    %2867 = vmatpush.msra.mxu0 0.0
    %2868 = vmatpush.msra.mxu0 0.0
    %2869 = vmatpush.msra.mxu0 0.0
    %2870 = vmatpush.msra.mxu0 0.0
    %2871 = vmatpush.msra.mxu0 0.0
    %2872 = vmatpush.msra.mxu0 0.0
    %2873 = vmatpush.msra.mxu0 0.0
    %2874 = vmatpush.msra.mxu0 0.0
    %2875 = vmatpush.msra.mxu0 0.0
    %2876 = vmatpush.msra.mxu0 0.0
    %2877 = vmatpush.msra.mxu0 0.0
    %2878 = vmatpush.msra.mxu0 0.0
    %2879 = vmatpush.msra.mxu0 0.0
    %2880 = vmatpush.msra.mxu0 0.0
    %2881 = vmatpush.msra.mxu0 %v2639
    %2882 = vmatmul.f32.gmra.mxu0 %v2861
    %v2883 = vpop.f32.mrf.mxu0
    %v2884 = vadd.f32 0.0, %v2883
    %2885 = vmatmul.f32.gmra.mxu0 %v2864
    %v2886 = vpop.f32.mrf.mxu0
    %v2887 = vadd.f32 0.0, %v2886
    %2888 = vdwg.mxu0
    %v2890 = vsel %vm184, %v2611, 0
    %v2893 = vsel %vm184, %v2634, 0
    %2895 = vmatpush.msra.mxu0 0.0
    %2896 = vmatpush.msra.mxu0 0.0
    %2897 = vmatpush.msra.mxu0 0.0
    %2898 = vmatpush.msra.mxu0 0.0
    %2899 = vmatpush.msra.mxu0 0.0
    %2900 = vmatpush.msra.mxu0 0.0
    %2901 = vmatpush.msra.mxu0 0.0
    %2902 = vmatpush.msra.mxu0 0.0
    %2903 = vmatpush.msra.mxu0 0.0
    %2904 = vmatpush.msra.mxu0 0.0
    %2905 = vmatpush.msra.mxu0 0.0
    %2906 = vmatpush.msra.mxu0 0.0
    %2907 = vmatpush.msra.mxu0 0.0
    %2908 = vmatpush.msra.mxu0 0.0
    %2909 = vmatpush.msra.mxu0 0.0
    %2910 = vmatpush.msra.mxu0 %v2409
    %2911 = vmatmul.f32.gmra.mxu0 %v2890
    %v2912 = vpop.f32.mrf.mxu0
    %v2913 = vadd.f32 %v2884, %v2912
    %2914 = vmatmul.f32.gmra.mxu0 %v2893
    %v2915 = vpop.f32.mrf.mxu0
    %v2916 = vadd.f32 %v2887, %v2915
    %2917 = vdwg.mxu0
    %v2918 = vld [vmem:[#allocation2 + $0x170] sm:$0xff]
    %v2919 = vld [vmem:[#allocation2 + $0x190] sm:$0xff]
    %v2920 = vld [vmem:[#allocation2 + $0x1b0] sm:$0xff]
    %v2921 = vld [vmem:[#allocation2 + $0x1d0] sm:$0xff]
    %v2922 = vld [vmem:[#allocation2 + $0x2d4] sm:$0x1]
    %v2923 = vperm.slane %v2922, 0
    %v2925 = vsel %vm63, %v2918, 0
    %2927 = vmatpush.xpose.msra.mxu0 0.0
    %2928 = vmatpush.xpose.msra.mxu0 0.0
    %2929 = vmatpush.xpose.msra.mxu0 0.0
    %2930 = vmatpush.xpose.msra.mxu0 0.0
    %2931 = vmatpush.xpose.msra.mxu0 0.0
    %2932 = vmatpush.xpose.msra.mxu0 0.0
    %2933 = vmatpush.xpose.msra.mxu0 0.0
    %2934 = vmatpush.xpose.msra.mxu0 0.0
    %2935 = vmatpush.xpose.msra.mxu0 0.0
    %2936 = vmatpush.xpose.msra.mxu0 0.0
    %2937 = vmatpush.xpose.msra.mxu0 0.0
    %2938 = vmatpush.xpose.msra.mxu0 0.0
    %2939 = vmatpush.xpose.msra.mxu0 0.0
    %2940 = vmatpush.xpose.msra.mxu0 0.0
    %2941 = vmatpush.xpose.msra.mxu0 0.0
    %2942 = vmatpush.xpose.msra.mxu0 %v2925
    %2943 = vmatmul.f32.gmra.mxu0 %v2413
    %v2944 = vpop.f32.mrf.mxu0
    %v2945 = vadd.f32 %v2923, %v2944
    %2946 = vmatmul.f32.gmra.mxu0 %v2416
    %v2947 = vpop.f32.mrf.mxu0
    %v2948 = vadd.f32 %v2923, %v2947
    %2949 = vdwg.mxu0
    %v2951 = vsel %vm63, %v2919, 0
    %2953 = vmatpush.xpose.msra.mxu0 0.0
    %2954 = vmatpush.xpose.msra.mxu0 0.0
    %2955 = vmatpush.xpose.msra.mxu0 0.0
    %2956 = vmatpush.xpose.msra.mxu0 0.0
    %2957 = vmatpush.xpose.msra.mxu0 0.0
    %2958 = vmatpush.xpose.msra.mxu0 0.0
    %2959 = vmatpush.xpose.msra.mxu0 0.0
    %2960 = vmatpush.xpose.msra.mxu0 0.0
    %2961 = vmatpush.xpose.msra.mxu0 0.0
    %2962 = vmatpush.xpose.msra.mxu0 0.0
    %2963 = vmatpush.xpose.msra.mxu0 0.0
    %2964 = vmatpush.xpose.msra.mxu0 0.0
    %2965 = vmatpush.xpose.msra.mxu0 0.0
    %2966 = vmatpush.xpose.msra.mxu0 0.0
    %2967 = vmatpush.xpose.msra.mxu0 0.0
    %2968 = vmatpush.xpose.msra.mxu0 %v2951
    %2969 = vmatmul.f32.gmra.mxu0 %v97
    %v2970 = vpop.f32.mrf.mxu0
    %v2971 = vadd.f32 0.0, %v2970
    %2972 = vmatmul.f32.gmra.mxu0 %v100
    %v2973 = vpop.f32.mrf.mxu0
    %v2974 = vadd.f32 0.0, %v2973
    %2975 = vmatmul.f32.gmra.mxu0 %v103
    %v2976 = vpop.f32.mrf.mxu0
    %v2977 = vadd.f32 0.0, %v2976
    %2978 = vmatmul.f32.gmra.mxu0 %v106
    %v2979 = vpop.f32.mrf.mxu0
    %v2980 = vadd.f32 0.0, %v2979
    %2981 = vdwg.mxu0
    %v2983 = vsel %vm63, %v2920, 0
    %2985 = vmatpush.xpose.msra.mxu0 0.0
    %2986 = vmatpush.xpose.msra.mxu0 0.0
    %2987 = vmatpush.xpose.msra.mxu0 0.0
    %2988 = vmatpush.xpose.msra.mxu0 0.0
    %2989 = vmatpush.xpose.msra.mxu0 0.0
    %2990 = vmatpush.xpose.msra.mxu0 0.0
    %2991 = vmatpush.xpose.msra.mxu0 0.0
    %2992 = vmatpush.xpose.msra.mxu0 0.0
    %2993 = vmatpush.xpose.msra.mxu0 0.0
    %2994 = vmatpush.xpose.msra.mxu0 0.0
    %2995 = vmatpush.xpose.msra.mxu0 0.0
    %2996 = vmatpush.xpose.msra.mxu0 0.0
    %2997 = vmatpush.xpose.msra.mxu0 0.0
    %2998 = vmatpush.xpose.msra.mxu0 0.0
    %2999 = vmatpush.xpose.msra.mxu0 0.0
    %3000 = vmatpush.xpose.msra.mxu0 %v2983
    %3001 = vmatmul.f32.gmra.mxu0 %v141
    %v3002 = vpop.f32.mrf.mxu0
    %v3003 = vadd.f32 0.0, %v3002
    %3004 = vmatmul.f32.gmra.mxu0 %v144
    %v3005 = vpop.f32.mrf.mxu0
    %v3006 = vadd.f32 0.0, %v3005
    %3007 = vmatmul.f32.gmra.mxu0 %v147
    %v3008 = vpop.f32.mrf.mxu0
    %v3009 = vadd.f32 0.0, %v3008
    %3010 = vmatmul.f32.gmra.mxu0 %v150
    %v3011 = vpop.f32.mrf.mxu0
    %v3012 = vadd.f32 0.0, %v3011
    %3013 = vdwg.mxu0
    %v3015 = vsel %vm184, %v2945, 0
    %v3018 = vsel %vm184, %v2971, 0
    %v3021 = vsel %vm184, %v2974, 0
    %3023 = vmatpush.xpose.msra.mxu0 0.0
    %3024 = vmatpush.xpose.msra.mxu0 0.0
    %3025 = vmatpush.xpose.msra.mxu0 0.0
    %3026 = vmatpush.xpose.msra.mxu0 0.0
    %3027 = vmatpush.xpose.msra.mxu0 0.0
    %3028 = vmatpush.xpose.msra.mxu0 0.0
    %3029 = vmatpush.xpose.msra.mxu0 0.0
    %3030 = vmatpush.xpose.msra.mxu0 0.0
    %3031 = vmatpush.xpose.msra.mxu0 0.0
    %3032 = vmatpush.xpose.msra.mxu0 0.0
    %3033 = vmatpush.xpose.msra.mxu0 0.0
    %3034 = vmatpush.xpose.msra.mxu0 0.0
    %3035 = vmatpush.xpose.msra.mxu0 0.0
    %3036 = vmatpush.xpose.msra.mxu0 0.0
    %3037 = vmatpush.xpose.msra.mxu0 %v3021
    %3038 = vmatpush.xpose.msra.mxu0 %v3018
    %3039 = vmatmul.f32.gmra.mxu0 %v3015
    %v3040 = vpop.f32.mrf.mxu0
    %v3041 = vadd.f32 0.0, %v3040
    %3042 = vdwg.mxu0
    %v3044 = vsel %vm184, %v2948, 0
    %v3047 = vsel %vm184, %v2977, 0
    %v3050 = vsel %vm184, %v2980, 0
    %3052 = vmatpush.xpose.msra.mxu0 0.0
    %3053 = vmatpush.xpose.msra.mxu0 0.0
    %3054 = vmatpush.xpose.msra.mxu0 0.0
    %3055 = vmatpush.xpose.msra.mxu0 0.0
    %3056 = vmatpush.xpose.msra.mxu0 0.0
    %3057 = vmatpush.xpose.msra.mxu0 0.0
    %3058 = vmatpush.xpose.msra.mxu0 0.0
    %3059 = vmatpush.xpose.msra.mxu0 0.0
    %3060 = vmatpush.xpose.msra.mxu0 0.0
    %3061 = vmatpush.xpose.msra.mxu0 0.0
    %3062 = vmatpush.xpose.msra.mxu0 0.0
    %3063 = vmatpush.xpose.msra.mxu0 0.0
    %3064 = vmatpush.xpose.msra.mxu0 0.0
    %3065 = vmatpush.xpose.msra.mxu0 0.0
    %3066 = vmatpush.xpose.msra.mxu0 %v3050
    %3067 = vmatpush.xpose.msra.mxu0 %v3047
    %3068 = vmatmul.f32.gmra.mxu0 %v3044
    %v3069 = vpop.f32.mrf.mxu0
    %v3070 = vadd.f32 0.0, %v3069
    %3071 = vdwg.mxu0
    %v3072 = vsel %vm243, %v3041, -inf
    %3073 = vmax.xlane.f32.xlu0 %v3072
    %v3074 = vpop.xlane.xlu0 %3073
    %v3075 = vsel %vm243, %v3070, -inf
    %3076 = vmax.xlane.f32.xlu0 %v3075
    %v3077 = vpop.xlane.xlu0 %3076
    %v3078 = vsub.f32 %v3041, %v3074
    %v3079 = vsub.f32 %v3070, %v3077
    %v3080 = vmul.f32 %v3078, 1.442695
    %v3081 = vpow.pop %v3080
    %v3082 = vmul.f32 %v3079, 1.442695
    %v3083 = vpow.pop %v3082
    %v3084 = vsel %vm243, %v3081, 0.0
    %3085 = vadd.xlane.f32.xlu0 %v3084
    %v3086 = vpop.xlane.xlu0 %3085
    %v3087 = vsel %vm243, %v3083, 0.0
    %3088 = vadd.xlane.f32.xlu0 %v3087
    %v3089 = vpop.xlane.xlu0 %3088
    %v3090 = vrcp.pop %v3086
    %v3091 = vrcp.pop %v3089
    %v3092 = vmul.f32 %v3081, %v3090
    %v3093 = vmul.f32 %v3083, %v3091
    %v3094 = vadd.f32 %v2812, %v3092
    %v3095 = vadd.f32 %v2813, %v3093
    %v3097 = vsel %vm243, %v3092, 0
    %3099 = vmatpush.msra.mxu0 0.0
    %3100 = vmatpush.msra.mxu0 0.0
    %3101 = vmatpush.msra.mxu0 0.0
    %3102 = vmatpush.msra.mxu0 0.0
    %3103 = vmatpush.msra.mxu0 0.0
    %3104 = vmatpush.msra.mxu0 0.0
    %3105 = vmatpush.msra.mxu0 0.0
    %3106 = vmatpush.msra.mxu0 0.0
    %3107 = vmatpush.msra.mxu0 0.0
    %3108 = vmatpush.msra.mxu0 0.0
    %3109 = vmatpush.msra.mxu0 0.0
    %3110 = vmatpush.msra.mxu0 0.0
    %3111 = vmatpush.msra.mxu0 0.0
    %3112 = vmatpush.msra.mxu0 0.0
    %3113 = vmatpush.msra.mxu0 %v3006
    %3114 = vmatpush.msra.mxu0 %v3003
    %3115 = vmatmul.f32.gmra.mxu0 %v3097
    %v3116 = vpop.f32.mrf.mxu0
    %v3117 = vadd.f32 0.0, %v3116
    %3118 = vdwg.mxu0
    %v3120 = vsel %vm243, %v3093, 0
    %3122 = vmatpush.msra.mxu0 0.0
    %3123 = vmatpush.msra.mxu0 0.0
    %3124 = vmatpush.msra.mxu0 0.0
    %3125 = vmatpush.msra.mxu0 0.0
    %3126 = vmatpush.msra.mxu0 0.0
    %3127 = vmatpush.msra.mxu0 0.0
    %3128 = vmatpush.msra.mxu0 0.0
    %3129 = vmatpush.msra.mxu0 0.0
    %3130 = vmatpush.msra.mxu0 0.0
    %3131 = vmatpush.msra.mxu0 0.0
    %3132 = vmatpush.msra.mxu0 0.0
    %3133 = vmatpush.msra.mxu0 0.0
    %3134 = vmatpush.msra.mxu0 0.0
    %3135 = vmatpush.msra.mxu0 0.0
    %3136 = vmatpush.msra.mxu0 %v3012
    %3137 = vmatpush.msra.mxu0 %v3009
    %3138 = vmatmul.f32.gmra.mxu0 %v3120
    %v3139 = vpop.f32.mrf.mxu0
    %v3140 = vadd.f32 0.0, %v3139
    %3141 = vdwg.mxu0
    %v3143 = vsel %vm184, %v3117, 0
    %v3146 = vsel %vm184, %v3140, 0
    %3148 = vmatpush.msra.mxu0 0.0
    %3149 = vmatpush.msra.mxu0 0.0
    %3150 = vmatpush.msra.mxu0 0.0
    %3151 = vmatpush.msra.mxu0 0.0
    %3152 = vmatpush.msra.mxu0 0.0
    %3153 = vmatpush.msra.mxu0 0.0
    %3154 = vmatpush.msra.mxu0 0.0
    %3155 = vmatpush.msra.mxu0 0.0
    %3156 = vmatpush.msra.mxu0 0.0
    %3157 = vmatpush.msra.mxu0 0.0
    %3158 = vmatpush.msra.mxu0 0.0
    %3159 = vmatpush.msra.mxu0 0.0
    %3160 = vmatpush.msra.mxu0 0.0
    %3161 = vmatpush.msra.mxu0 0.0
    %3162 = vmatpush.msra.mxu0 0.0
    %3163 = vmatpush.msra.mxu0 %v2921
    %3164 = vmatmul.f32.gmra.mxu0 %v3143
    %v3165 = vpop.f32.mrf.mxu0
    %v3166 = vadd.f32 0.0, %v3165
    %3167 = vmatmul.f32.gmra.mxu0 %v3146
    %v3168 = vpop.f32.mrf.mxu0
    %v3169 = vadd.f32 0.0, %v3168
    %3170 = vdwg.mxu0
    %v3171 = vadd.f32 %v2913, %v3166
    %v3172 = vadd.f32 %v2916, %v3169
    %v3173 = vld [vmem:[#allocation2 + $0x178] sm:$0xff]
    %v3174 = vld [vmem:[#allocation2 + $0x198] sm:$0xff]
    %v3175 = vld [vmem:[#allocation2 + $0x1b8] sm:$0xff]
    %v3176 = vld [vmem:[#allocation2 + $0x1d8] sm:$0xff]
    %v3177 = vld [vmem:[#allocation2 + $0x2d5] sm:$0x1]
    %v3178 = vperm.slane %v3177, 0
    %v3180 = vsel %vm63, %v3173, 0
    %3182 = vmatpush.xpose.msra.mxu0 0.0
    %3183 = vmatpush.xpose.msra.mxu0 0.0
    %3184 = vmatpush.xpose.msra.mxu0 0.0
    %3185 = vmatpush.xpose.msra.mxu0 0.0
    %3186 = vmatpush.xpose.msra.mxu0 0.0
    %3187 = vmatpush.xpose.msra.mxu0 0.0
    %3188 = vmatpush.xpose.msra.mxu0 0.0
    %3189 = vmatpush.xpose.msra.mxu0 0.0
    %3190 = vmatpush.xpose.msra.mxu0 0.0
    %3191 = vmatpush.xpose.msra.mxu0 0.0
    %3192 = vmatpush.xpose.msra.mxu0 0.0
    %3193 = vmatpush.xpose.msra.mxu0 0.0
    %3194 = vmatpush.xpose.msra.mxu0 0.0
    %3195 = vmatpush.xpose.msra.mxu0 0.0
    %3196 = vmatpush.xpose.msra.mxu0 0.0
    %3197 = vmatpush.xpose.msra.mxu0 %v3180
    %3198 = vmatmul.f32.gmra.mxu0 %v2413
    %v3199 = vpop.f32.mrf.mxu0
    %v3200 = vadd.f32 %v3178, %v3199
    %3201 = vmatmul.f32.gmra.mxu0 %v2416
    %v3202 = vpop.f32.mrf.mxu0
    %v3203 = vadd.f32 %v3178, %v3202
    %3204 = vdwg.mxu0
    %v3206 = vsel %vm63, %v3174, 0
    %3208 = vmatpush.xpose.msra.mxu0 0.0
    %3209 = vmatpush.xpose.msra.mxu0 0.0
    %3210 = vmatpush.xpose.msra.mxu0 0.0
    %3211 = vmatpush.xpose.msra.mxu0 0.0
    %3212 = vmatpush.xpose.msra.mxu0 0.0
    %3213 = vmatpush.xpose.msra.mxu0 0.0
    %3214 = vmatpush.xpose.msra.mxu0 0.0
    %3215 = vmatpush.xpose.msra.mxu0 0.0
    %3216 = vmatpush.xpose.msra.mxu0 0.0
    %3217 = vmatpush.xpose.msra.mxu0 0.0
    %3218 = vmatpush.xpose.msra.mxu0 0.0
    %3219 = vmatpush.xpose.msra.mxu0 0.0
    %3220 = vmatpush.xpose.msra.mxu0 0.0
    %3221 = vmatpush.xpose.msra.mxu0 0.0
    %3222 = vmatpush.xpose.msra.mxu0 0.0
    %3223 = vmatpush.xpose.msra.mxu0 %v3206
    %3224 = vmatmul.f32.gmra.mxu0 %v97
    %v3225 = vpop.f32.mrf.mxu0
    %v3226 = vadd.f32 0.0, %v3225
    %3227 = vmatmul.f32.gmra.mxu0 %v100
    %v3228 = vpop.f32.mrf.mxu0
    %v3229 = vadd.f32 0.0, %v3228
    %3230 = vmatmul.f32.gmra.mxu0 %v103
    %v3231 = vpop.f32.mrf.mxu0
    %v3232 = vadd.f32 0.0, %v3231
    %3233 = vmatmul.f32.gmra.mxu0 %v106
    %v3234 = vpop.f32.mrf.mxu0
    %v3235 = vadd.f32 0.0, %v3234
    %3236 = vdwg.mxu0
    %v3238 = vsel %vm63, %v3175, 0
    %3240 = vmatpush.xpose.msra.mxu0 0.0
    %3241 = vmatpush.xpose.msra.mxu0 0.0
    %3242 = vmatpush.xpose.msra.mxu0 0.0
    %3243 = vmatpush.xpose.msra.mxu0 0.0
    %3244 = vmatpush.xpose.msra.mxu0 0.0
    %3245 = vmatpush.xpose.msra.mxu0 0.0
    %3246 = vmatpush.xpose.msra.mxu0 0.0
    %3247 = vmatpush.xpose.msra.mxu0 0.0
    %3248 = vmatpush.xpose.msra.mxu0 0.0
    %3249 = vmatpush.xpose.msra.mxu0 0.0
    %3250 = vmatpush.xpose.msra.mxu0 0.0
    %3251 = vmatpush.xpose.msra.mxu0 0.0
    %3252 = vmatpush.xpose.msra.mxu0 0.0
    %3253 = vmatpush.xpose.msra.mxu0 0.0
    %3254 = vmatpush.xpose.msra.mxu0 0.0
    %3255 = vmatpush.xpose.msra.mxu0 %v3238
    %3256 = vmatmul.f32.gmra.mxu0 %v141
    %v3257 = vpop.f32.mrf.mxu0
    %v3258 = vadd.f32 0.0, %v3257
    %3259 = vmatmul.f32.gmra.mxu0 %v144
    %v3260 = vpop.f32.mrf.mxu0
    %v3261 = vadd.f32 0.0, %v3260
    %3262 = vmatmul.f32.gmra.mxu0 %v147
    %v3263 = vpop.f32.mrf.mxu0
    %v3264 = vadd.f32 0.0, %v3263
    %3265 = vmatmul.f32.gmra.mxu0 %v150
    %v3266 = vpop.f32.mrf.mxu0
    %v3267 = vadd.f32 0.0, %v3266
    %3268 = vdwg.mxu0
    %v3270 = vsel %vm184, %v3200, 0
    %v3273 = vsel %vm184, %v3226, 0
    %v3276 = vsel %vm184, %v3229, 0
    %3278 = vmatpush.xpose.msra.mxu0 0.0
    %3279 = vmatpush.xpose.msra.mxu0 0.0
    %3280 = vmatpush.xpose.msra.mxu0 0.0
    %3281 = vmatpush.xpose.msra.mxu0 0.0
    %3282 = vmatpush.xpose.msra.mxu0 0.0
    %3283 = vmatpush.xpose.msra.mxu0 0.0
    %3284 = vmatpush.xpose.msra.mxu0 0.0
    %3285 = vmatpush.xpose.msra.mxu0 0.0
    %3286 = vmatpush.xpose.msra.mxu0 0.0
    %3287 = vmatpush.xpose.msra.mxu0 0.0
    %3288 = vmatpush.xpose.msra.mxu0 0.0
    %3289 = vmatpush.xpose.msra.mxu0 0.0
    %3290 = vmatpush.xpose.msra.mxu0 0.0
    %3291 = vmatpush.xpose.msra.mxu0 0.0
    %3292 = vmatpush.xpose.msra.mxu0 %v3276
    %3293 = vmatpush.xpose.msra.mxu0 %v3273
    %3294 = vmatmul.f32.gmra.mxu0 %v3270
    %v3295 = vpop.f32.mrf.mxu0
    %v3296 = vadd.f32 0.0, %v3295
    %3297 = vdwg.mxu0
    %v3299 = vsel %vm184, %v3203, 0
    %v3302 = vsel %vm184, %v3232, 0
    %v3305 = vsel %vm184, %v3235, 0
    %3307 = vmatpush.xpose.msra.mxu0 0.0
    %3308 = vmatpush.xpose.msra.mxu0 0.0
    %3309 = vmatpush.xpose.msra.mxu0 0.0
    %3310 = vmatpush.xpose.msra.mxu0 0.0
    %3311 = vmatpush.xpose.msra.mxu0 0.0
    %3312 = vmatpush.xpose.msra.mxu0 0.0
    %3313 = vmatpush.xpose.msra.mxu0 0.0
    %3314 = vmatpush.xpose.msra.mxu0 0.0
    %3315 = vmatpush.xpose.msra.mxu0 0.0
    %3316 = vmatpush.xpose.msra.mxu0 0.0
    %3317 = vmatpush.xpose.msra.mxu0 0.0
    %3318 = vmatpush.xpose.msra.mxu0 0.0
    %3319 = vmatpush.xpose.msra.mxu0 0.0
    %3320 = vmatpush.xpose.msra.mxu0 0.0
    %3321 = vmatpush.xpose.msra.mxu0 %v3305
    %3322 = vmatpush.xpose.msra.mxu0 %v3302
    %3323 = vmatmul.f32.gmra.mxu0 %v3299
    %v3324 = vpop.f32.mrf.mxu0
    %v3325 = vadd.f32 0.0, %v3324
    %3326 = vdwg.mxu0
    %v3327 = vsel %vm243, %v3296, -inf
    %3328 = vmax.xlane.f32.xlu0 %v3327
    %v3329 = vpop.xlane.xlu0 %3328
    %v3330 = vsel %vm243, %v3325, -inf
    %3331 = vmax.xlane.f32.xlu0 %v3330
    %v3332 = vpop.xlane.xlu0 %3331
    %v3333 = vsub.f32 %v3296, %v3329
    %v3334 = vsub.f32 %v3325, %v3332
    %v3335 = vmul.f32 %v3333, 1.442695
    %v3336 = vpow.pop %v3335
    %v3337 = vmul.f32 %v3334, 1.442695
    %v3338 = vpow.pop %v3337
    %v3339 = vsel %vm243, %v3336, 0.0
    %3340 = vadd.xlane.f32.xlu0 %v3339
    %v3341 = vpop.xlane.xlu0 %3340
    %v3342 = vsel %vm243, %v3338, 0.0
    %3343 = vadd.xlane.f32.xlu0 %v3342
    %v3344 = vpop.xlane.xlu0 %3343
    %v3345 = vrcp.pop %v3341
    %v3346 = vrcp.pop %v3344
    %v3347 = vmul.f32 %v3336, %v3345
    %v3348 = vmul.f32 %v3338, %v3346
    %v3349 = vadd.f32 %v3094, %v3347
    %v3350 = vadd.f32 %v3095, %v3348
    %v3352 = vsel %vm243, %v3347, 0
    %3354 = vmatpush.msra.mxu0 0.0
    %3355 = vmatpush.msra.mxu0 0.0
    %3356 = vmatpush.msra.mxu0 0.0
    %3357 = vmatpush.msra.mxu0 0.0
    %3358 = vmatpush.msra.mxu0 0.0
    %3359 = vmatpush.msra.mxu0 0.0
    %3360 = vmatpush.msra.mxu0 0.0
    %3361 = vmatpush.msra.mxu0 0.0
    %3362 = vmatpush.msra.mxu0 0.0
    %3363 = vmatpush.msra.mxu0 0.0
    %3364 = vmatpush.msra.mxu0 0.0
    %3365 = vmatpush.msra.mxu0 0.0
    %3366 = vmatpush.msra.mxu0 0.0
    %3367 = vmatpush.msra.mxu0 0.0
    %3368 = vmatpush.msra.mxu0 %v3261
    %3369 = vmatpush.msra.mxu0 %v3258
    %3370 = vmatmul.f32.gmra.mxu0 %v3352
    %v3371 = vpop.f32.mrf.mxu0
    %v3372 = vadd.f32 0.0, %v3371
    %3373 = vdwg.mxu0
    %v3375 = vsel %vm243, %v3348, 0
    %3377 = vmatpush.msra.mxu0 0.0
    %3378 = vmatpush.msra.mxu0 0.0
    %3379 = vmatpush.msra.mxu0 0.0
    %3380 = vmatpush.msra.mxu0 0.0
    %3381 = vmatpush.msra.mxu0 0.0
    %3382 = vmatpush.msra.mxu0 0.0
    %3383 = vmatpush.msra.mxu0 0.0
    %3384 = vmatpush.msra.mxu0 0.0
    %3385 = vmatpush.msra.mxu0 0.0
    %3386 = vmatpush.msra.mxu0 0.0
    %3387 = vmatpush.msra.mxu0 0.0
    %3388 = vmatpush.msra.mxu0 0.0
    %3389 = vmatpush.msra.mxu0 0.0
    %3390 = vmatpush.msra.mxu0 0.0
    %3391 = vmatpush.msra.mxu0 %v3267
    %3392 = vmatpush.msra.mxu0 %v3264
    %3393 = vmatmul.f32.gmra.mxu0 %v3375
    %v3394 = vpop.f32.mrf.mxu0
    %v3395 = vadd.f32 0.0, %v3394
    %3396 = vdwg.mxu0
    %v3398 = vsel %vm184, %v3372, 0
    %v3401 = vsel %vm184, %v3395, 0
    %3403 = vmatpush.msra.mxu0 0.0
    %3404 = vmatpush.msra.mxu0 0.0
    %3405 = vmatpush.msra.mxu0 0.0
    %3406 = vmatpush.msra.mxu0 0.0
    %3407 = vmatpush.msra.mxu0 0.0
    %3408 = vmatpush.msra.mxu0 0.0
    %3409 = vmatpush.msra.mxu0 0.0
    %3410 = vmatpush.msra.mxu0 0.0
    %3411 = vmatpush.msra.mxu0 0.0
    %3412 = vmatpush.msra.mxu0 0.0
    %3413 = vmatpush.msra.mxu0 0.0
    %3414 = vmatpush.msra.mxu0 0.0
    %3415 = vmatpush.msra.mxu0 0.0
    %3416 = vmatpush.msra.mxu0 0.0
    %3417 = vmatpush.msra.mxu0 0.0
    %3418 = vmatpush.msra.mxu0 %v3176
    %3419 = vmatmul.f32.gmra.mxu0 %v3398
    %v3420 = vpop.f32.mrf.mxu0
    %v3421 = vadd.f32 0.0, %v3420
    %3422 = vmatmul.f32.gmra.mxu0 %v3401
    %v3423 = vpop.f32.mrf.mxu0
    %v3424 = vadd.f32 0.0, %v3423
    %3425 = vdwg.mxu0
    %v3426 = vadd.f32 %v3171, %v3421
    %v3427 = vadd.f32 %v3172, %v3424
    %v3428 = vld [vmem:[#allocation2 + $0x2d6] sm:$0x1]
    %v3429 = vperm.slane %v3428, 0
    %v3430 = vadd.f32 %v3426, %v3429
    %v3431 = vadd.f32 %v3427, %v3429
    %v3432 = vmul.f32 %v3349, 0.25
    %v3433 = vmul.f32 %v3350, 0.25
    %s3434 = scalar_lea.vmem [#allocation6], 16
    %3435 = vst.msk [vmem:[%s3434] sm:$0xff] %vm243, %v3432
    %3436 = vst.msk [vmem:[%s3434 + $0x8] sm:$0xff] %vm243, %v3433
    %v3437 = vadd.f32 %v2402, %v3430
    %v3438 = vadd.f32 %v2403, %v3431
    %v3439 = vld [vmem:[#allocation2 + $0x2de] sm:$0x1]
    %v3440 = vld [vmem:[#allocation2 + $0x2df] sm:$0x1]
    %v3441 = vsel %vm63, %v3437, 0.0
    %3442 = vadd.xlane.f32.xlu0 %v3441
    %v3443 = vpop.xlane.xlu0 %3442
    %v3444 = vsel %vm63, %v3438, 0.0
    %3445 = vadd.xlane.f32.xlu0 %v3444
    %v3446 = vpop.xlane.xlu0 %3445
    %v3447 = vmul.f32 %v3443, %v1130
    %v3448 = vmul.f32 %v3446, %v1130
    %v3449 = vsub.f32 %v3437, %v3447
    %v3450 = vsub.f32 %v3438, %v3448
    %v3451 = vmul.f32 %v3449, %v3449
    %v3452 = vmul.f32 %v3450, %v3450
    %v3453 = vsel %vm63, %v3451, 0.0
    %3454 = vadd.xlane.f32.xlu0 %v3453
    %v3455 = vpop.xlane.xlu0 %3454
    %v3456 = vsel %vm63, %v3452, 0.0
    %3457 = vadd.xlane.f32.xlu0 %v3456
    %v3458 = vpop.xlane.xlu0 %3457
    %v3459 = vmul.f32 %v3455, %v1130
    %v3460 = vmul.f32 %v3458, %v1130
    %v3461 = vadd.f32 %v3459, 1e-05
    %v3462 = vadd.f32 %v3460, 1e-05
    %v3463 = vrsqrt.pop %v3461
    %v3464 = vmul.f32 %v3463, %v3461
    %v3465 = vmul.f32 %v3464, %v3463
    %v3466 = vmul.f32 0.5, %v3465
    %v3467 = vsub.f32 1.5, %v3466
    %v3468 = vmul.f32 %v3463, %v3467
    %vm3469 = vweird.f32 %v3461
    %vm3470 = vweird.f32 %v3463
    %vm3471 = vmor %vm3469, %vm3470
    %v3472 = vsel %vm3471, %v3463, %v3468
    %v3473 = vrsqrt.pop %v3462
    %v3474 = vmul.f32 %v3473, %v3462
    %v3475 = vmul.f32 %v3474, %v3473
    %v3476 = vmul.f32 0.5, %v3475
    %v3477 = vsub.f32 1.5, %v3476
    %v3478 = vmul.f32 %v3473, %v3477
    %vm3479 = vweird.f32 %v3462
    %vm3480 = vweird.f32 %v3473
    %vm3481 = vmor %vm3479, %vm3480
    %v3482 = vsel %vm3481, %v3473, %v3478
    %v3483 = vmul.f32 %v3449, %v3472
    %v3484 = vmul.f32 %v3450, %v3482
    %v3485 = vperm.slane %v3439, 0
    %v3486 = vmul.f32 %v3483, %v3485
    %v3487 = vmul.f32 %v3484, %v3485
    %v3488 = vperm.slane %v3440, 0
    %v3489 = vadd.f32 %v3486, %v3488
    %v3490 = vadd.f32 %v3487, %v3488
    %v3491 = vadd.f32 %v3489, %v33
    %v3492 = vadd.f32 %v3490, %v34
    %v3493 = vld [vmem:[#allocation2 + $0x1e0] sm:$0xff]
    %v3494 = vld [vmem:[#allocation2 + $0x200] sm:$0xff]
    %v3495 = vld [vmem:[#allocation2 + $0x220] sm:$0xff]
    %v3496 = vld [vmem:[#allocation2 + $0x240] sm:$0xff]
    %v3497 = vld [vmem:[#allocation2 + $0x2d7] sm:$0x1]
    %v3498 = vperm.slane %v3497, 0
    %v3500 = vsel %vm63, %v3491, 0
    %v3503 = vsel %vm63, %v3492, 0
    %v3506 = vsel %vm63, %v3493, 0
    %3508 = vmatpush.xpose.msra.mxu0 0.0
    %3509 = vmatpush.xpose.msra.mxu0 0.0
    %3510 = vmatpush.xpose.msra.mxu0 0.0
    %3511 = vmatpush.xpose.msra.mxu0 0.0
    %3512 = vmatpush.xpose.msra.mxu0 0.0
    %3513 = vmatpush.xpose.msra.mxu0 0.0
    %3514 = vmatpush.xpose.msra.mxu0 0.0
    %3515 = vmatpush.xpose.msra.mxu0 0.0
    %3516 = vmatpush.xpose.msra.mxu0 0.0
    %3517 = vmatpush.xpose.msra.mxu0 0.0
    %3518 = vmatpush.xpose.msra.mxu0 0.0
    %3519 = vmatpush.xpose.msra.mxu0 0.0
    %3520 = vmatpush.xpose.msra.mxu0 0.0
    %3521 = vmatpush.xpose.msra.mxu0 0.0
    %3522 = vmatpush.xpose.msra.mxu0 0.0
    %3523 = vmatpush.xpose.msra.mxu0 %v3506
    %3524 = vmatmul.f32.gmra.mxu0 %v3500
    %v3525 = vpop.f32.mrf.mxu0
    %v3526 = vadd.f32 %v3498, %v3525
    %3527 = vmatmul.f32.gmra.mxu0 %v3503
    %v3528 = vpop.f32.mrf.mxu0
    %v3529 = vadd.f32 %v3498, %v3528
    %3530 = vdwg.mxu0
    %v3532 = vsel %vm63, %v3494, 0
    %3534 = vmatpush.xpose.msra.mxu0 0.0
    %3535 = vmatpush.xpose.msra.mxu0 0.0
    %3536 = vmatpush.xpose.msra.mxu0 0.0
    %3537 = vmatpush.xpose.msra.mxu0 0.0
    %3538 = vmatpush.xpose.msra.mxu0 0.0
    %3539 = vmatpush.xpose.msra.mxu0 0.0
    %3540 = vmatpush.xpose.msra.mxu0 0.0
    %3541 = vmatpush.xpose.msra.mxu0 0.0
    %3542 = vmatpush.xpose.msra.mxu0 0.0
    %3543 = vmatpush.xpose.msra.mxu0 0.0
    %3544 = vmatpush.xpose.msra.mxu0 0.0
    %3545 = vmatpush.xpose.msra.mxu0 0.0
    %3546 = vmatpush.xpose.msra.mxu0 0.0
    %3547 = vmatpush.xpose.msra.mxu0 0.0
    %3548 = vmatpush.xpose.msra.mxu0 0.0
    %3549 = vmatpush.xpose.msra.mxu0 %v3532
    %3550 = vmatmul.f32.gmra.mxu0 %v1216
    %v3551 = vpop.f32.mrf.mxu0
    %v3552 = vadd.f32 0.0, %v3551
    %3553 = vmatmul.f32.gmra.mxu0 %v1219
    %v3554 = vpop.f32.mrf.mxu0
    %v3555 = vadd.f32 0.0, %v3554
    %3556 = vmatmul.f32.gmra.mxu0 %v1222
    %v3557 = vpop.f32.mrf.mxu0
    %v3558 = vadd.f32 0.0, %v3557
    %3559 = vmatmul.f32.gmra.mxu0 %v1225
    %v3560 = vpop.f32.mrf.mxu0
    %v3561 = vadd.f32 0.0, %v3560
    %3562 = vdwg.mxu0
    %v3564 = vsel %vm63, %v3495, 0
    %3566 = vmatpush.xpose.msra.mxu0 0.0
    %3567 = vmatpush.xpose.msra.mxu0 0.0
    %3568 = vmatpush.xpose.msra.mxu0 0.0
    %3569 = vmatpush.xpose.msra.mxu0 0.0
    %3570 = vmatpush.xpose.msra.mxu0 0.0
    %3571 = vmatpush.xpose.msra.mxu0 0.0
    %3572 = vmatpush.xpose.msra.mxu0 0.0
    %3573 = vmatpush.xpose.msra.mxu0 0.0
    %3574 = vmatpush.xpose.msra.mxu0 0.0
    %3575 = vmatpush.xpose.msra.mxu0 0.0
    %3576 = vmatpush.xpose.msra.mxu0 0.0
    %3577 = vmatpush.xpose.msra.mxu0 0.0
    %3578 = vmatpush.xpose.msra.mxu0 0.0
    %3579 = vmatpush.xpose.msra.mxu0 0.0
    %3580 = vmatpush.xpose.msra.mxu0 0.0
    %3581 = vmatpush.xpose.msra.mxu0 %v3564
    %3582 = vmatmul.f32.gmra.mxu0 %v1260
    %v3583 = vpop.f32.mrf.mxu0
    %v3584 = vadd.f32 0.0, %v3583
    %3585 = vmatmul.f32.gmra.mxu0 %v1263
    %v3586 = vpop.f32.mrf.mxu0
    %v3587 = vadd.f32 0.0, %v3586
    %3588 = vmatmul.f32.gmra.mxu0 %v1266
    %v3589 = vpop.f32.mrf.mxu0
    %v3590 = vadd.f32 0.0, %v3589
    %3591 = vmatmul.f32.gmra.mxu0 %v1269
    %v3592 = vpop.f32.mrf.mxu0
    %v3593 = vadd.f32 0.0, %v3592
    %3594 = vdwg.mxu0
    %v3596 = vsel %vm184, %v3526, 0
    %v3599 = vsel %vm184, %v3552, 0
    %v3602 = vsel %vm184, %v3555, 0
    %3604 = vmatpush.xpose.msra.mxu0 0.0
    %3605 = vmatpush.xpose.msra.mxu0 0.0
    %3606 = vmatpush.xpose.msra.mxu0 0.0
    %3607 = vmatpush.xpose.msra.mxu0 0.0
    %3608 = vmatpush.xpose.msra.mxu0 0.0
    %3609 = vmatpush.xpose.msra.mxu0 0.0
    %3610 = vmatpush.xpose.msra.mxu0 0.0
    %3611 = vmatpush.xpose.msra.mxu0 0.0
    %3612 = vmatpush.xpose.msra.mxu0 0.0
    %3613 = vmatpush.xpose.msra.mxu0 0.0
    %3614 = vmatpush.xpose.msra.mxu0 0.0
    %3615 = vmatpush.xpose.msra.mxu0 0.0
    %3616 = vmatpush.xpose.msra.mxu0 0.0
    %3617 = vmatpush.xpose.msra.mxu0 0.0
    %3618 = vmatpush.xpose.msra.mxu0 %v3602
    %3619 = vmatpush.xpose.msra.mxu0 %v3599
    %3620 = vmatmul.f32.gmra.mxu0 %v3596
    %v3621 = vpop.f32.mrf.mxu0
    %v3622 = vadd.f32 0.0, %v3621
    %3623 = vdwg.mxu0
    %v3625 = vsel %vm184, %v3529, 0
    %v3628 = vsel %vm184, %v3558, 0
    %v3631 = vsel %vm184, %v3561, 0
    %3633 = vmatpush.xpose.msra.mxu0 0.0
    %3634 = vmatpush.xpose.msra.mxu0 0.0
    %3635 = vmatpush.xpose.msra.mxu0 0.0
    %3636 = vmatpush.xpose.msra.mxu0 0.0
    %3637 = vmatpush.xpose.msra.mxu0 0.0
    %3638 = vmatpush.xpose.msra.mxu0 0.0
    %3639 = vmatpush.xpose.msra.mxu0 0.0
    %3640 = vmatpush.xpose.msra.mxu0 0.0
    %3641 = vmatpush.xpose.msra.mxu0 0.0
    %3642 = vmatpush.xpose.msra.mxu0 0.0
    %3643 = vmatpush.xpose.msra.mxu0 0.0
    %3644 = vmatpush.xpose.msra.mxu0 0.0
    %3645 = vmatpush.xpose.msra.mxu0 0.0
    %3646 = vmatpush.xpose.msra.mxu0 0.0
    %3647 = vmatpush.xpose.msra.mxu0 %v3631
    %3648 = vmatpush.xpose.msra.mxu0 %v3628
    %3649 = vmatmul.f32.gmra.mxu0 %v3625
    %v3650 = vpop.f32.mrf.mxu0
    %v3651 = vadd.f32 0.0, %v3650
    %3652 = vdwg.mxu0
    %v3653 = vsel %vm243, %v3622, -inf
    %3654 = vmax.xlane.f32.xlu0 %v3653
    %v3655 = vpop.xlane.xlu0 %3654
    %v3656 = vsel %vm243, %v3651, -inf
    %3657 = vmax.xlane.f32.xlu0 %v3656
    %v3658 = vpop.xlane.xlu0 %3657
    %v3659 = vsub.f32 %v3622, %v3655
    %v3660 = vsub.f32 %v3651, %v3658
    %v3661 = vmul.f32 %v3659, 1.442695
    %v3662 = vpow.pop %v3661
    %v3663 = vmul.f32 %v3660, 1.442695
    %v3664 = vpow.pop %v3663
    %v3665 = vsel %vm243, %v3662, 0.0
    %3666 = vadd.xlane.f32.xlu0 %v3665
    %v3667 = vpop.xlane.xlu0 %3666
    %v3668 = vsel %vm243, %v3664, 0.0
    %3669 = vadd.xlane.f32.xlu0 %v3668
    %v3670 = vpop.xlane.xlu0 %3669
    %v3671 = vrcp.pop %v3667
    %v3672 = vrcp.pop %v3670
    %v3673 = vmul.f32 %v3662, %v3671
    %v3674 = vmul.f32 %v3664, %v3672
    %v3676 = vsel %vm243, %v3673, 0
    %3678 = vmatpush.msra.mxu0 0.0
    %3679 = vmatpush.msra.mxu0 0.0
    %3680 = vmatpush.msra.mxu0 0.0
    %3681 = vmatpush.msra.mxu0 0.0
    %3682 = vmatpush.msra.mxu0 0.0
    %3683 = vmatpush.msra.mxu0 0.0
    %3684 = vmatpush.msra.mxu0 0.0
    %3685 = vmatpush.msra.mxu0 0.0
    %3686 = vmatpush.msra.mxu0 0.0
    %3687 = vmatpush.msra.mxu0 0.0
    %3688 = vmatpush.msra.mxu0 0.0
    %3689 = vmatpush.msra.mxu0 0.0
    %3690 = vmatpush.msra.mxu0 0.0
    %3691 = vmatpush.msra.mxu0 0.0
    %3692 = vmatpush.msra.mxu0 %v3587
    %3693 = vmatpush.msra.mxu0 %v3584
    %3694 = vmatmul.f32.gmra.mxu0 %v3676
    %v3695 = vpop.f32.mrf.mxu0
    %v3696 = vadd.f32 0.0, %v3695
    %3697 = vdwg.mxu0
    %v3699 = vsel %vm243, %v3674, 0
    %3701 = vmatpush.msra.mxu0 0.0
    %3702 = vmatpush.msra.mxu0 0.0
    %3703 = vmatpush.msra.mxu0 0.0
    %3704 = vmatpush.msra.mxu0 0.0
    %3705 = vmatpush.msra.mxu0 0.0
    %3706 = vmatpush.msra.mxu0 0.0
    %3707 = vmatpush.msra.mxu0 0.0
    %3708 = vmatpush.msra.mxu0 0.0
    %3709 = vmatpush.msra.mxu0 0.0
    %3710 = vmatpush.msra.mxu0 0.0
    %3711 = vmatpush.msra.mxu0 0.0
    %3712 = vmatpush.msra.mxu0 0.0
    %3713 = vmatpush.msra.mxu0 0.0
    %3714 = vmatpush.msra.mxu0 0.0
    %3715 = vmatpush.msra.mxu0 %v3593
    %3716 = vmatpush.msra.mxu0 %v3590
    %3717 = vmatmul.f32.gmra.mxu0 %v3699
    %v3718 = vpop.f32.mrf.mxu0
    %v3719 = vadd.f32 0.0, %v3718
    %3720 = vdwg.mxu0
    %v3721 = vld [vmem:[#allocation2 + $0x1e8] sm:$0xff]
    %v3722 = vld [vmem:[#allocation2 + $0x208] sm:$0xff]
    %v3723 = vld [vmem:[#allocation2 + $0x228] sm:$0xff]
    %v3724 = vld [vmem:[#allocation2 + $0x248] sm:$0xff]
    %v3725 = vld [vmem:[#allocation2 + $0x2d8] sm:$0x1]
    %v3726 = vperm.slane %v3725, 0
    %v3728 = vsel %vm63, %v3721, 0
    %3730 = vmatpush.xpose.msra.mxu0 0.0
    %3731 = vmatpush.xpose.msra.mxu0 0.0
    %3732 = vmatpush.xpose.msra.mxu0 0.0
    %3733 = vmatpush.xpose.msra.mxu0 0.0
    %3734 = vmatpush.xpose.msra.mxu0 0.0
    %3735 = vmatpush.xpose.msra.mxu0 0.0
    %3736 = vmatpush.xpose.msra.mxu0 0.0
    %3737 = vmatpush.xpose.msra.mxu0 0.0
    %3738 = vmatpush.xpose.msra.mxu0 0.0
    %3739 = vmatpush.xpose.msra.mxu0 0.0
    %3740 = vmatpush.xpose.msra.mxu0 0.0
    %3741 = vmatpush.xpose.msra.mxu0 0.0
    %3742 = vmatpush.xpose.msra.mxu0 0.0
    %3743 = vmatpush.xpose.msra.mxu0 0.0
    %3744 = vmatpush.xpose.msra.mxu0 0.0
    %3745 = vmatpush.xpose.msra.mxu0 %v3728
    %3746 = vmatmul.f32.gmra.mxu0 %v3500
    %v3747 = vpop.f32.mrf.mxu0
    %v3748 = vadd.f32 %v3726, %v3747
    %3749 = vmatmul.f32.gmra.mxu0 %v3503
    %v3750 = vpop.f32.mrf.mxu0
    %v3751 = vadd.f32 %v3726, %v3750
    %3752 = vdwg.mxu0
    %v3754 = vsel %vm63, %v3722, 0
    %3756 = vmatpush.xpose.msra.mxu0 0.0
    %3757 = vmatpush.xpose.msra.mxu0 0.0
    %3758 = vmatpush.xpose.msra.mxu0 0.0
    %3759 = vmatpush.xpose.msra.mxu0 0.0
    %3760 = vmatpush.xpose.msra.mxu0 0.0
    %3761 = vmatpush.xpose.msra.mxu0 0.0
    %3762 = vmatpush.xpose.msra.mxu0 0.0
    %3763 = vmatpush.xpose.msra.mxu0 0.0
    %3764 = vmatpush.xpose.msra.mxu0 0.0
    %3765 = vmatpush.xpose.msra.mxu0 0.0
    %3766 = vmatpush.xpose.msra.mxu0 0.0
    %3767 = vmatpush.xpose.msra.mxu0 0.0
    %3768 = vmatpush.xpose.msra.mxu0 0.0
    %3769 = vmatpush.xpose.msra.mxu0 0.0
    %3770 = vmatpush.xpose.msra.mxu0 0.0
    %3771 = vmatpush.xpose.msra.mxu0 %v3754
    %3772 = vmatmul.f32.gmra.mxu0 %v1216
    %v3773 = vpop.f32.mrf.mxu0
    %v3774 = vadd.f32 0.0, %v3773
    %3775 = vmatmul.f32.gmra.mxu0 %v1219
    %v3776 = vpop.f32.mrf.mxu0
    %v3777 = vadd.f32 0.0, %v3776
    %3778 = vmatmul.f32.gmra.mxu0 %v1222
    %v3779 = vpop.f32.mrf.mxu0
    %v3780 = vadd.f32 0.0, %v3779
    %3781 = vmatmul.f32.gmra.mxu0 %v1225
    %v3782 = vpop.f32.mrf.mxu0
    %v3783 = vadd.f32 0.0, %v3782
    %3784 = vdwg.mxu0
    %v3786 = vsel %vm63, %v3723, 0
    %3788 = vmatpush.xpose.msra.mxu0 0.0
    %3789 = vmatpush.xpose.msra.mxu0 0.0
    %3790 = vmatpush.xpose.msra.mxu0 0.0
    %3791 = vmatpush.xpose.msra.mxu0 0.0
    %3792 = vmatpush.xpose.msra.mxu0 0.0
    %3793 = vmatpush.xpose.msra.mxu0 0.0
    %3794 = vmatpush.xpose.msra.mxu0 0.0
    %3795 = vmatpush.xpose.msra.mxu0 0.0
    %3796 = vmatpush.xpose.msra.mxu0 0.0
    %3797 = vmatpush.xpose.msra.mxu0 0.0
    %3798 = vmatpush.xpose.msra.mxu0 0.0
    %3799 = vmatpush.xpose.msra.mxu0 0.0
    %3800 = vmatpush.xpose.msra.mxu0 0.0
    %3801 = vmatpush.xpose.msra.mxu0 0.0
    %3802 = vmatpush.xpose.msra.mxu0 0.0
    %3803 = vmatpush.xpose.msra.mxu0 %v3786
    %3804 = vmatmul.f32.gmra.mxu0 %v1260
    %v3805 = vpop.f32.mrf.mxu0
    %v3806 = vadd.f32 0.0, %v3805
    %3807 = vmatmul.f32.gmra.mxu0 %v1263
    %v3808 = vpop.f32.mrf.mxu0
    %v3809 = vadd.f32 0.0, %v3808
    %3810 = vmatmul.f32.gmra.mxu0 %v1266
    %v3811 = vpop.f32.mrf.mxu0
    %v3812 = vadd.f32 0.0, %v3811
    %3813 = vmatmul.f32.gmra.mxu0 %v1269
    %v3814 = vpop.f32.mrf.mxu0
    %v3815 = vadd.f32 0.0, %v3814
    %3816 = vdwg.mxu0
    %v3818 = vsel %vm184, %v3748, 0
    %v3821 = vsel %vm184, %v3774, 0
    %v3824 = vsel %vm184, %v3777, 0
    %3826 = vmatpush.xpose.msra.mxu0 0.0
    %3827 = vmatpush.xpose.msra.mxu0 0.0
    %3828 = vmatpush.xpose.msra.mxu0 0.0
    %3829 = vmatpush.xpose.msra.mxu0 0.0
    %3830 = vmatpush.xpose.msra.mxu0 0.0
    %3831 = vmatpush.xpose.msra.mxu0 0.0
    %3832 = vmatpush.xpose.msra.mxu0 0.0
    %3833 = vmatpush.xpose.msra.mxu0 0.0
    %3834 = vmatpush.xpose.msra.mxu0 0.0
    %3835 = vmatpush.xpose.msra.mxu0 0.0
    %3836 = vmatpush.xpose.msra.mxu0 0.0
    %3837 = vmatpush.xpose.msra.mxu0 0.0
    %3838 = vmatpush.xpose.msra.mxu0 0.0
    %3839 = vmatpush.xpose.msra.mxu0 0.0
    %3840 = vmatpush.xpose.msra.mxu0 %v3824
    %3841 = vmatpush.xpose.msra.mxu0 %v3821
    %3842 = vmatmul.f32.gmra.mxu0 %v3818
    %v3843 = vpop.f32.mrf.mxu0
    %v3844 = vadd.f32 0.0, %v3843
    %3845 = vdwg.mxu0
    %v3847 = vsel %vm184, %v3751, 0
    %v3850 = vsel %vm184, %v3780, 0
    %v3853 = vsel %vm184, %v3783, 0
    %3855 = vmatpush.xpose.msra.mxu0 0.0
    %3856 = vmatpush.xpose.msra.mxu0 0.0
    %3857 = vmatpush.xpose.msra.mxu0 0.0
    %3858 = vmatpush.xpose.msra.mxu0 0.0
    %3859 = vmatpush.xpose.msra.mxu0 0.0
    %3860 = vmatpush.xpose.msra.mxu0 0.0
    %3861 = vmatpush.xpose.msra.mxu0 0.0
    %3862 = vmatpush.xpose.msra.mxu0 0.0
    %3863 = vmatpush.xpose.msra.mxu0 0.0
    %3864 = vmatpush.xpose.msra.mxu0 0.0
    %3865 = vmatpush.xpose.msra.mxu0 0.0
    %3866 = vmatpush.xpose.msra.mxu0 0.0
    %3867 = vmatpush.xpose.msra.mxu0 0.0
    %3868 = vmatpush.xpose.msra.mxu0 0.0
    %3869 = vmatpush.xpose.msra.mxu0 %v3853
    %3870 = vmatpush.xpose.msra.mxu0 %v3850
    %3871 = vmatmul.f32.gmra.mxu0 %v3847
    %v3872 = vpop.f32.mrf.mxu0
    %v3873 = vadd.f32 0.0, %v3872
    %3874 = vdwg.mxu0
    %v3875 = vsel %vm243, %v3844, -inf
    %3876 = vmax.xlane.f32.xlu0 %v3875
    %v3877 = vpop.xlane.xlu0 %3876
    %v3878 = vsel %vm243, %v3873, -inf
    %3879 = vmax.xlane.f32.xlu0 %v3878
    %v3880 = vpop.xlane.xlu0 %3879
    %v3881 = vsub.f32 %v3844, %v3877
    %v3882 = vsub.f32 %v3873, %v3880
    %v3883 = vmul.f32 %v3881, 1.442695
    %v3884 = vpow.pop %v3883
    %v3885 = vmul.f32 %v3882, 1.442695
    %v3886 = vpow.pop %v3885
    %v3887 = vsel %vm243, %v3884, 0.0
    %3888 = vadd.xlane.f32.xlu0 %v3887
    %v3889 = vpop.xlane.xlu0 %3888
    %v3890 = vsel %vm243, %v3886, 0.0
    %3891 = vadd.xlane.f32.xlu0 %v3890
    %v3892 = vpop.xlane.xlu0 %3891
    %v3893 = vrcp.pop %v3889
    %v3894 = vrcp.pop %v3892
    %v3895 = vmul.f32 %v3884, %v3893
    %v3896 = vmul.f32 %v3886, %v3894
    %v3898 = vsel %vm243, %v3895, 0
    %3900 = vmatpush.msra.mxu0 0.0
    %3901 = vmatpush.msra.mxu0 0.0
    %3902 = vmatpush.msra.mxu0 0.0
    %3903 = vmatpush.msra.mxu0 0.0
    %3904 = vmatpush.msra.mxu0 0.0
    %3905 = vmatpush.msra.mxu0 0.0
    %3906 = vmatpush.msra.mxu0 0.0
    %3907 = vmatpush.msra.mxu0 0.0
    %3908 = vmatpush.msra.mxu0 0.0
    %3909 = vmatpush.msra.mxu0 0.0
    %3910 = vmatpush.msra.mxu0 0.0
    %3911 = vmatpush.msra.mxu0 0.0
    %3912 = vmatpush.msra.mxu0 0.0
    %3913 = vmatpush.msra.mxu0 0.0
    %3914 = vmatpush.msra.mxu0 %v3809
    %3915 = vmatpush.msra.mxu0 %v3806
    %3916 = vmatmul.f32.gmra.mxu0 %v3898
    %v3917 = vpop.f32.mrf.mxu0
    %v3918 = vadd.f32 0.0, %v3917
    %3919 = vdwg.mxu0
    %v3921 = vsel %vm243, %v3896, 0
    %3923 = vmatpush.msra.mxu0 0.0
    %3924 = vmatpush.msra.mxu0 0.0
    %3925 = vmatpush.msra.mxu0 0.0
    %3926 = vmatpush.msra.mxu0 0.0
    %3927 = vmatpush.msra.mxu0 0.0
    %3928 = vmatpush.msra.mxu0 0.0
    %3929 = vmatpush.msra.mxu0 0.0
    %3930 = vmatpush.msra.mxu0 0.0
    %3931 = vmatpush.msra.mxu0 0.0
    %3932 = vmatpush.msra.mxu0 0.0
    %3933 = vmatpush.msra.mxu0 0.0
    %3934 = vmatpush.msra.mxu0 0.0
    %3935 = vmatpush.msra.mxu0 0.0
    %3936 = vmatpush.msra.mxu0 0.0
    %3937 = vmatpush.msra.mxu0 %v3815
    %3938 = vmatpush.msra.mxu0 %v3812
    %3939 = vmatmul.f32.gmra.mxu0 %v3921
    %v3940 = vpop.f32.mrf.mxu0
    %v3941 = vadd.f32 0.0, %v3940
    %3942 = vdwg.mxu0
    %v3944 = vsel %vm184, %v3918, 0
    %v3947 = vsel %vm184, %v3941, 0
    %3949 = vmatpush.msra.mxu0 0.0
    %3950 = vmatpush.msra.mxu0 0.0
    %3951 = vmatpush.msra.mxu0 0.0
    %3952 = vmatpush.msra.mxu0 0.0
    %3953 = vmatpush.msra.mxu0 0.0
    %3954 = vmatpush.msra.mxu0 0.0
    %3955 = vmatpush.msra.mxu0 0.0
    %3956 = vmatpush.msra.mxu0 0.0
    %3957 = vmatpush.msra.mxu0 0.0
    %3958 = vmatpush.msra.mxu0 0.0
    %3959 = vmatpush.msra.mxu0 0.0
    %3960 = vmatpush.msra.mxu0 0.0
    %3961 = vmatpush.msra.mxu0 0.0
    %3962 = vmatpush.msra.mxu0 0.0
    %3963 = vmatpush.msra.mxu0 0.0
    %3964 = vmatpush.msra.mxu0 %v3724
    %3965 = vmatmul.f32.gmra.mxu0 %v3944
    %v3966 = vpop.f32.mrf.mxu0
    %v3967 = vadd.f32 0.0, %v3966
    %3968 = vmatmul.f32.gmra.mxu0 %v3947
    %v3969 = vpop.f32.mrf.mxu0
    %v3970 = vadd.f32 0.0, %v3969
    %3971 = vdwg.mxu0
    %v3973 = vsel %vm184, %v3696, 0
    %v3976 = vsel %vm184, %v3719, 0
    %3978 = vmatpush.msra.mxu0 0.0
    %3979 = vmatpush.msra.mxu0 0.0
    %3980 = vmatpush.msra.mxu0 0.0
    %3981 = vmatpush.msra.mxu0 0.0
    %3982 = vmatpush.msra.mxu0 0.0
    %3983 = vmatpush.msra.mxu0 0.0
    %3984 = vmatpush.msra.mxu0 0.0
    %3985 = vmatpush.msra.mxu0 0.0
    %3986 = vmatpush.msra.mxu0 0.0
    %3987 = vmatpush.msra.mxu0 0.0
    %3988 = vmatpush.msra.mxu0 0.0
    %3989 = vmatpush.msra.mxu0 0.0
    %3990 = vmatpush.msra.mxu0 0.0
    %3991 = vmatpush.msra.mxu0 0.0
    %3992 = vmatpush.msra.mxu0 0.0
    %3993 = vmatpush.msra.mxu0 %v3496
    %3994 = vmatmul.f32.gmra.mxu0 %v3973
    %v3995 = vpop.f32.mrf.mxu0
    %v3996 = vadd.f32 %v3967, %v3995
    %3997 = vmatmul.f32.gmra.mxu0 %v3976
    %v3998 = vpop.f32.mrf.mxu0
    %v3999 = vadd.f32 %v3970, %v3998
    %4000 = vdwg.mxu0
    %v4001 = vld [vmem:[#allocation2 + $0x1f0] sm:$0xff]
    %v4002 = vld [vmem:[#allocation2 + $0x210] sm:$0xff]
    %v4003 = vld [vmem:[#allocation2 + $0x230] sm:$0xff]
    %v4004 = vld [vmem:[#allocation2 + $0x250] sm:$0xff]
    %v4005 = vld [vmem:[#allocation2 + $0x2d9] sm:$0x1]
    %v4006 = vperm.slane %v4005, 0
    %v4008 = vsel %vm63, %v4001, 0
    %4010 = vmatpush.xpose.msra.mxu0 0.0
    %4011 = vmatpush.xpose.msra.mxu0 0.0
    %4012 = vmatpush.xpose.msra.mxu0 0.0
    %4013 = vmatpush.xpose.msra.mxu0 0.0
    %4014 = vmatpush.xpose.msra.mxu0 0.0
    %4015 = vmatpush.xpose.msra.mxu0 0.0
    %4016 = vmatpush.xpose.msra.mxu0 0.0
    %4017 = vmatpush.xpose.msra.mxu0 0.0
    %4018 = vmatpush.xpose.msra.mxu0 0.0
    %4019 = vmatpush.xpose.msra.mxu0 0.0
    %4020 = vmatpush.xpose.msra.mxu0 0.0
    %4021 = vmatpush.xpose.msra.mxu0 0.0
    %4022 = vmatpush.xpose.msra.mxu0 0.0
    %4023 = vmatpush.xpose.msra.mxu0 0.0
    %4024 = vmatpush.xpose.msra.mxu0 0.0
    %4025 = vmatpush.xpose.msra.mxu0 %v4008
    %4026 = vmatmul.f32.gmra.mxu0 %v3500
    %v4027 = vpop.f32.mrf.mxu0
    %v4028 = vadd.f32 %v4006, %v4027
    %4029 = vmatmul.f32.gmra.mxu0 %v3503
    %v4030 = vpop.f32.mrf.mxu0
    %v4031 = vadd.f32 %v4006, %v4030
    %4032 = vdwg.mxu0
    %v4034 = vsel %vm63, %v4002, 0
    %4036 = vmatpush.xpose.msra.mxu0 0.0
    %4037 = vmatpush.xpose.msra.mxu0 0.0
    %4038 = vmatpush.xpose.msra.mxu0 0.0
    %4039 = vmatpush.xpose.msra.mxu0 0.0
    %4040 = vmatpush.xpose.msra.mxu0 0.0
    %4041 = vmatpush.xpose.msra.mxu0 0.0
    %4042 = vmatpush.xpose.msra.mxu0 0.0
    %4043 = vmatpush.xpose.msra.mxu0 0.0
    %4044 = vmatpush.xpose.msra.mxu0 0.0
    %4045 = vmatpush.xpose.msra.mxu0 0.0
    %4046 = vmatpush.xpose.msra.mxu0 0.0
    %4047 = vmatpush.xpose.msra.mxu0 0.0
    %4048 = vmatpush.xpose.msra.mxu0 0.0
    %4049 = vmatpush.xpose.msra.mxu0 0.0
    %4050 = vmatpush.xpose.msra.mxu0 0.0
    %4051 = vmatpush.xpose.msra.mxu0 %v4034
    %4052 = vmatmul.f32.gmra.mxu0 %v1216
    %v4053 = vpop.f32.mrf.mxu0
    %v4054 = vadd.f32 0.0, %v4053
    %4055 = vmatmul.f32.gmra.mxu0 %v1219
    %v4056 = vpop.f32.mrf.mxu0
    %v4057 = vadd.f32 0.0, %v4056
    %4058 = vmatmul.f32.gmra.mxu0 %v1222
    %v4059 = vpop.f32.mrf.mxu0
    %v4060 = vadd.f32 0.0, %v4059
    %4061 = vmatmul.f32.gmra.mxu0 %v1225
    %v4062 = vpop.f32.mrf.mxu0
    %v4063 = vadd.f32 0.0, %v4062
    %4064 = vdwg.mxu0
    %v4066 = vsel %vm63, %v4003, 0
    %4068 = vmatpush.xpose.msra.mxu0 0.0
    %4069 = vmatpush.xpose.msra.mxu0 0.0
    %4070 = vmatpush.xpose.msra.mxu0 0.0
    %4071 = vmatpush.xpose.msra.mxu0 0.0
    %4072 = vmatpush.xpose.msra.mxu0 0.0
    %4073 = vmatpush.xpose.msra.mxu0 0.0
    %4074 = vmatpush.xpose.msra.mxu0 0.0
    %4075 = vmatpush.xpose.msra.mxu0 0.0
    %4076 = vmatpush.xpose.msra.mxu0 0.0
    %4077 = vmatpush.xpose.msra.mxu0 0.0
    %4078 = vmatpush.xpose.msra.mxu0 0.0
    %4079 = vmatpush.xpose.msra.mxu0 0.0
    %4080 = vmatpush.xpose.msra.mxu0 0.0
    %4081 = vmatpush.xpose.msra.mxu0 0.0
    %4082 = vmatpush.xpose.msra.mxu0 0.0
    %4083 = vmatpush.xpose.msra.mxu0 %v4066
    %4084 = vmatmul.f32.gmra.mxu0 %v1260
    %v4085 = vpop.f32.mrf.mxu0
    %v4086 = vadd.f32 0.0, %v4085
    %4087 = vmatmul.f32.gmra.mxu0 %v1263
    %v4088 = vpop.f32.mrf.mxu0
    %v4089 = vadd.f32 0.0, %v4088
    %4090 = vmatmul.f32.gmra.mxu0 %v1266
    %v4091 = vpop.f32.mrf.mxu0
    %v4092 = vadd.f32 0.0, %v4091
    %4093 = vmatmul.f32.gmra.mxu0 %v1269
    %v4094 = vpop.f32.mrf.mxu0
    %v4095 = vadd.f32 0.0, %v4094
    %4096 = vdwg.mxu0
    %v4098 = vsel %vm184, %v4028, 0
    %v4101 = vsel %vm184, %v4054, 0
    %v4104 = vsel %vm184, %v4057, 0
    %4106 = vmatpush.xpose.msra.mxu0 0.0
    %4107 = vmatpush.xpose.msra.mxu0 0.0
    %4108 = vmatpush.xpose.msra.mxu0 0.0
    %4109 = vmatpush.xpose.msra.mxu0 0.0
    %4110 = vmatpush.xpose.msra.mxu0 0.0
    %4111 = vmatpush.xpose.msra.mxu0 0.0
    %4112 = vmatpush.xpose.msra.mxu0 0.0
    %4113 = vmatpush.xpose.msra.mxu0 0.0
    %4114 = vmatpush.xpose.msra.mxu0 0.0
    %4115 = vmatpush.xpose.msra.mxu0 0.0
    %4116 = vmatpush.xpose.msra.mxu0 0.0
    %4117 = vmatpush.xpose.msra.mxu0 0.0
    %4118 = vmatpush.xpose.msra.mxu0 0.0
    %4119 = vmatpush.xpose.msra.mxu0 0.0
    %4120 = vmatpush.xpose.msra.mxu0 %v4104
    %4121 = vmatpush.xpose.msra.mxu0 %v4101
    %4122 = vmatmul.f32.gmra.mxu0 %v4098
    %v4123 = vpop.f32.mrf.mxu0
    %v4124 = vadd.f32 0.0, %v4123
    %4125 = vdwg.mxu0
    %v4127 = vsel %vm184, %v4031, 0
    %v4130 = vsel %vm184, %v4060, 0
    %v4133 = vsel %vm184, %v4063, 0
    %4135 = vmatpush.xpose.msra.mxu0 0.0
    %4136 = vmatpush.xpose.msra.mxu0 0.0
    %4137 = vmatpush.xpose.msra.mxu0 0.0
    %4138 = vmatpush.xpose.msra.mxu0 0.0
    %4139 = vmatpush.xpose.msra.mxu0 0.0
    %4140 = vmatpush.xpose.msra.mxu0 0.0
    %4141 = vmatpush.xpose.msra.mxu0 0.0
    %4142 = vmatpush.xpose.msra.mxu0 0.0
    %4143 = vmatpush.xpose.msra.mxu0 0.0
    %4144 = vmatpush.xpose.msra.mxu0 0.0
    %4145 = vmatpush.xpose.msra.mxu0 0.0
    %4146 = vmatpush.xpose.msra.mxu0 0.0
    %4147 = vmatpush.xpose.msra.mxu0 0.0
    %4148 = vmatpush.xpose.msra.mxu0 0.0
    %4149 = vmatpush.xpose.msra.mxu0 %v4133
    %4150 = vmatpush.xpose.msra.mxu0 %v4130
    %4151 = vmatmul.f32.gmra.mxu0 %v4127
    %v4152 = vpop.f32.mrf.mxu0
    %v4153 = vadd.f32 0.0, %v4152
    %4154 = vdwg.mxu0
    %v4155 = vsel %vm243, %v4124, -inf
    %4156 = vmax.xlane.f32.xlu0 %v4155
    %v4157 = vpop.xlane.xlu0 %4156
    %v4158 = vsel %vm243, %v4153, -inf
    %4159 = vmax.xlane.f32.xlu0 %v4158
    %v4160 = vpop.xlane.xlu0 %4159
    %v4161 = vsub.f32 %v4124, %v4157
    %v4162 = vsub.f32 %v4153, %v4160
    %v4163 = vmul.f32 %v4161, 1.442695
    %v4164 = vpow.pop %v4163
    %v4165 = vmul.f32 %v4162, 1.442695
    %v4166 = vpow.pop %v4165
    %v4167 = vsel %vm243, %v4164, 0.0
    %4168 = vadd.xlane.f32.xlu0 %v4167
    %v4169 = vpop.xlane.xlu0 %4168
    %v4170 = vsel %vm243, %v4166, 0.0
    %4171 = vadd.xlane.f32.xlu0 %v4170
    %v4172 = vpop.xlane.xlu0 %4171
    %v4173 = vrcp.pop %v4169
    %v4174 = vrcp.pop %v4172
    %v4175 = vmul.f32 %v4164, %v4173
    %v4176 = vmul.f32 %v4166, %v4174
    %v4178 = vsel %vm243, %v4175, 0
    %4180 = vmatpush.msra.mxu0 0.0
    %4181 = vmatpush.msra.mxu0 0.0
    %4182 = vmatpush.msra.mxu0 0.0
    %4183 = vmatpush.msra.mxu0 0.0
    %4184 = vmatpush.msra.mxu0 0.0
    %4185 = vmatpush.msra.mxu0 0.0
    %4186 = vmatpush.msra.mxu0 0.0
    %4187 = vmatpush.msra.mxu0 0.0
    %4188 = vmatpush.msra.mxu0 0.0
    %4189 = vmatpush.msra.mxu0 0.0
    %4190 = vmatpush.msra.mxu0 0.0
    %4191 = vmatpush.msra.mxu0 0.0
    %4192 = vmatpush.msra.mxu0 0.0
    %4193 = vmatpush.msra.mxu0 0.0
    %4194 = vmatpush.msra.mxu0 %v4089
    %4195 = vmatpush.msra.mxu0 %v4086
    %4196 = vmatmul.f32.gmra.mxu0 %v4178
    %v4197 = vpop.f32.mrf.mxu0
    %v4198 = vadd.f32 0.0, %v4197
    %4199 = vdwg.mxu0
    %v4201 = vsel %vm243, %v4176, 0
    %4203 = vmatpush.msra.mxu0 0.0
    %4204 = vmatpush.msra.mxu0 0.0
    %4205 = vmatpush.msra.mxu0 0.0
    %4206 = vmatpush.msra.mxu0 0.0
    %4207 = vmatpush.msra.mxu0 0.0
    %4208 = vmatpush.msra.mxu0 0.0
    %4209 = vmatpush.msra.mxu0 0.0
    %4210 = vmatpush.msra.mxu0 0.0
    %4211 = vmatpush.msra.mxu0 0.0
    %4212 = vmatpush.msra.mxu0 0.0
    %4213 = vmatpush.msra.mxu0 0.0
    %4214 = vmatpush.msra.mxu0 0.0
    %4215 = vmatpush.msra.mxu0 0.0
    %4216 = vmatpush.msra.mxu0 0.0
    %4217 = vmatpush.msra.mxu0 %v4095
    %4218 = vmatpush.msra.mxu0 %v4092
    %4219 = vmatmul.f32.gmra.mxu0 %v4201
    %v4220 = vpop.f32.mrf.mxu0
    %v4221 = vadd.f32 0.0, %v4220
    %4222 = vdwg.mxu0
    %v4224 = vsel %vm184, %v4198, 0
    %v4227 = vsel %vm184, %v4221, 0
    %4229 = vmatpush.msra.mxu0 0.0
    %4230 = vmatpush.msra.mxu0 0.0
    %4231 = vmatpush.msra.mxu0 0.0
    %4232 = vmatpush.msra.mxu0 0.0
    %4233 = vmatpush.msra.mxu0 0.0
    %4234 = vmatpush.msra.mxu0 0.0
    %4235 = vmatpush.msra.mxu0 0.0
    %4236 = vmatpush.msra.mxu0 0.0
    %4237 = vmatpush.msra.mxu0 0.0
    %4238 = vmatpush.msra.mxu0 0.0
    %4239 = vmatpush.msra.mxu0 0.0
    %4240 = vmatpush.msra.mxu0 0.0
    %4241 = vmatpush.msra.mxu0 0.0
    %4242 = vmatpush.msra.mxu0 0.0
    %4243 = vmatpush.msra.mxu0 0.0
    %4244 = vmatpush.msra.mxu0 %v4004
    %4245 = vmatmul.f32.gmra.mxu0 %v4224
    %v4246 = vpop.f32.mrf.mxu0
    %v4247 = vadd.f32 0.0, %v4246
    %4248 = vmatmul.f32.gmra.mxu0 %v4227
    %v4249 = vpop.f32.mrf.mxu0
    %v4250 = vadd.f32 0.0, %v4249
    %4251 = vdwg.mxu0
    %v4252 = vadd.f32 %v3996, %v4247
    %v4253 = vadd.f32 %v3999, %v4250
    %v4254 = vld [vmem:[#allocation2 + $0x1f8] sm:$0xff]
    %v4255 = vld [vmem:[#allocation2 + $0x218] sm:$0xff]
    %v4256 = vld [vmem:[#allocation2 + $0x238] sm:$0xff]
    %v4257 = vld [vmem:[#allocation2 + $0x258] sm:$0xff]
    %v4258 = vld [vmem:[#allocation2 + $0x2da] sm:$0x1]
    %v4259 = vperm.slane %v4258, 0
    %v4261 = vsel %vm63, %v4254, 0
    %4263 = vmatpush.xpose.msra.mxu0 0.0
    %4264 = vmatpush.xpose.msra.mxu0 0.0
    %4265 = vmatpush.xpose.msra.mxu0 0.0
    %4266 = vmatpush.xpose.msra.mxu0 0.0
    %4267 = vmatpush.xpose.msra.mxu0 0.0
    %4268 = vmatpush.xpose.msra.mxu0 0.0
    %4269 = vmatpush.xpose.msra.mxu0 0.0
    %4270 = vmatpush.xpose.msra.mxu0 0.0
    %4271 = vmatpush.xpose.msra.mxu0 0.0
    %4272 = vmatpush.xpose.msra.mxu0 0.0
    %4273 = vmatpush.xpose.msra.mxu0 0.0
    %4274 = vmatpush.xpose.msra.mxu0 0.0
    %4275 = vmatpush.xpose.msra.mxu0 0.0
    %4276 = vmatpush.xpose.msra.mxu0 0.0
    %4277 = vmatpush.xpose.msra.mxu0 0.0
    %4278 = vmatpush.xpose.msra.mxu0 %v4261
    %4279 = vmatmul.f32.gmra.mxu0 %v3500
    %v4280 = vpop.f32.mrf.mxu0
    %v4281 = vadd.f32 %v4259, %v4280
    %4282 = vmatmul.f32.gmra.mxu0 %v3503
    %v4283 = vpop.f32.mrf.mxu0
    %v4284 = vadd.f32 %v4259, %v4283
    %4285 = vdwg.mxu0
    %v4287 = vsel %vm63, %v4255, 0
    %4289 = vmatpush.xpose.msra.mxu0 0.0
    %4290 = vmatpush.xpose.msra.mxu0 0.0
    %4291 = vmatpush.xpose.msra.mxu0 0.0
    %4292 = vmatpush.xpose.msra.mxu0 0.0
    %4293 = vmatpush.xpose.msra.mxu0 0.0
    %4294 = vmatpush.xpose.msra.mxu0 0.0
    %4295 = vmatpush.xpose.msra.mxu0 0.0
    %4296 = vmatpush.xpose.msra.mxu0 0.0
    %4297 = vmatpush.xpose.msra.mxu0 0.0
    %4298 = vmatpush.xpose.msra.mxu0 0.0
    %4299 = vmatpush.xpose.msra.mxu0 0.0
    %4300 = vmatpush.xpose.msra.mxu0 0.0
    %4301 = vmatpush.xpose.msra.mxu0 0.0
    %4302 = vmatpush.xpose.msra.mxu0 0.0
    %4303 = vmatpush.xpose.msra.mxu0 0.0
    %4304 = vmatpush.xpose.msra.mxu0 %v4287
    %4305 = vmatmul.f32.gmra.mxu0 %v1216
    %v4306 = vpop.f32.mrf.mxu0
    %v4307 = vadd.f32 0.0, %v4306
    %4308 = vmatmul.f32.gmra.mxu0 %v1219
    %v4309 = vpop.f32.mrf.mxu0
    %v4310 = vadd.f32 0.0, %v4309
    %4311 = vmatmul.f32.gmra.mxu0 %v1222
    %v4312 = vpop.f32.mrf.mxu0
    %v4313 = vadd.f32 0.0, %v4312
    %4314 = vmatmul.f32.gmra.mxu0 %v1225
    %v4315 = vpop.f32.mrf.mxu0
    %v4316 = vadd.f32 0.0, %v4315
    %4317 = vdwg.mxu0
    %v4319 = vsel %vm63, %v4256, 0
    %4321 = vmatpush.xpose.msra.mxu0 0.0
    %4322 = vmatpush.xpose.msra.mxu0 0.0
    %4323 = vmatpush.xpose.msra.mxu0 0.0
    %4324 = vmatpush.xpose.msra.mxu0 0.0
    %4325 = vmatpush.xpose.msra.mxu0 0.0
    %4326 = vmatpush.xpose.msra.mxu0 0.0
    %4327 = vmatpush.xpose.msra.mxu0 0.0
    %4328 = vmatpush.xpose.msra.mxu0 0.0
    %4329 = vmatpush.xpose.msra.mxu0 0.0
    %4330 = vmatpush.xpose.msra.mxu0 0.0
    %4331 = vmatpush.xpose.msra.mxu0 0.0
    %4332 = vmatpush.xpose.msra.mxu0 0.0
    %4333 = vmatpush.xpose.msra.mxu0 0.0
    %4334 = vmatpush.xpose.msra.mxu0 0.0
    %4335 = vmatpush.xpose.msra.mxu0 0.0
    %4336 = vmatpush.xpose.msra.mxu0 %v4319
    %4337 = vmatmul.f32.gmra.mxu0 %v1260
    %v4338 = vpop.f32.mrf.mxu0
    %v4339 = vadd.f32 0.0, %v4338
    %4340 = vmatmul.f32.gmra.mxu0 %v1263
    %v4341 = vpop.f32.mrf.mxu0
    %v4342 = vadd.f32 0.0, %v4341
    %4343 = vmatmul.f32.gmra.mxu0 %v1266
    %v4344 = vpop.f32.mrf.mxu0
    %v4345 = vadd.f32 0.0, %v4344
    %4346 = vmatmul.f32.gmra.mxu0 %v1269
    %v4347 = vpop.f32.mrf.mxu0
    %v4348 = vadd.f32 0.0, %v4347
    %4349 = vdwg.mxu0
    %v4351 = vsel %vm184, %v4281, 0
    %v4354 = vsel %vm184, %v4307, 0
    %v4357 = vsel %vm184, %v4310, 0
    %4359 = vmatpush.xpose.msra.mxu0 0.0
    %4360 = vmatpush.xpose.msra.mxu0 0.0
    %4361 = vmatpush.xpose.msra.mxu0 0.0
    %4362 = vmatpush.xpose.msra.mxu0 0.0
    %4363 = vmatpush.xpose.msra.mxu0 0.0
    %4364 = vmatpush.xpose.msra.mxu0 0.0
    %4365 = vmatpush.xpose.msra.mxu0 0.0
    %4366 = vmatpush.xpose.msra.mxu0 0.0
    %4367 = vmatpush.xpose.msra.mxu0 0.0
    %4368 = vmatpush.xpose.msra.mxu0 0.0
    %4369 = vmatpush.xpose.msra.mxu0 0.0
    %4370 = vmatpush.xpose.msra.mxu0 0.0
    %4371 = vmatpush.xpose.msra.mxu0 0.0
    %4372 = vmatpush.xpose.msra.mxu0 0.0
    %4373 = vmatpush.xpose.msra.mxu0 %v4357
    %4374 = vmatpush.xpose.msra.mxu0 %v4354
    %4375 = vmatmul.f32.gmra.mxu0 %v4351
    %v4376 = vpop.f32.mrf.mxu0
    %v4377 = vadd.f32 0.0, %v4376
    %4378 = vdwg.mxu0
    %v4380 = vsel %vm184, %v4284, 0
    %v4383 = vsel %vm184, %v4313, 0
    %v4386 = vsel %vm184, %v4316, 0
    %4388 = vmatpush.xpose.msra.mxu0 0.0
    %4389 = vmatpush.xpose.msra.mxu0 0.0
    %4390 = vmatpush.xpose.msra.mxu0 0.0
    %4391 = vmatpush.xpose.msra.mxu0 0.0
    %4392 = vmatpush.xpose.msra.mxu0 0.0
    %4393 = vmatpush.xpose.msra.mxu0 0.0
    %4394 = vmatpush.xpose.msra.mxu0 0.0
    %4395 = vmatpush.xpose.msra.mxu0 0.0
    %4396 = vmatpush.xpose.msra.mxu0 0.0
    %4397 = vmatpush.xpose.msra.mxu0 0.0
    %4398 = vmatpush.xpose.msra.mxu0 0.0
    %4399 = vmatpush.xpose.msra.mxu0 0.0
    %4400 = vmatpush.xpose.msra.mxu0 0.0
    %4401 = vmatpush.xpose.msra.mxu0 0.0
    %4402 = vmatpush.xpose.msra.mxu0 %v4386
    %4403 = vmatpush.xpose.msra.mxu0 %v4383
    %4404 = vmatmul.f32.gmra.mxu0 %v4380
    %v4405 = vpop.f32.mrf.mxu0
    %v4406 = vadd.f32 0.0, %v4405
    %4407 = vdwg.mxu0
    %v4408 = vsel %vm243, %v4377, -inf
    %4409 = vmax.xlane.f32.xlu0 %v4408
    %v4410 = vpop.xlane.xlu0 %4409
    %v4411 = vsel %vm243, %v4406, -inf
    %4412 = vmax.xlane.f32.xlu0 %v4411
    %v4413 = vpop.xlane.xlu0 %4412
    %v4414 = vsub.f32 %v4377, %v4410
    %v4415 = vsub.f32 %v4406, %v4413
    %v4416 = vmul.f32 %v4414, 1.442695
    %v4417 = vpow.pop %v4416
    %v4418 = vmul.f32 %v4415, 1.442695
    %v4419 = vpow.pop %v4418
    %v4420 = vsel %vm243, %v4417, 0.0
    %4421 = vadd.xlane.f32.xlu0 %v4420
    %v4422 = vpop.xlane.xlu0 %4421
    %v4423 = vsel %vm243, %v4419, 0.0
    %4424 = vadd.xlane.f32.xlu0 %v4423
    %v4425 = vpop.xlane.xlu0 %4424
    %v4426 = vrcp.pop %v4422
    %v4427 = vrcp.pop %v4425
    %v4428 = vmul.f32 %v4417, %v4426
    %v4429 = vmul.f32 %v4419, %v4427
    %v4431 = vsel %vm243, %v4428, 0
    %4433 = vmatpush.msra.mxu0 0.0
    %4434 = vmatpush.msra.mxu0 0.0
    %4435 = vmatpush.msra.mxu0 0.0
    %4436 = vmatpush.msra.mxu0 0.0
    %4437 = vmatpush.msra.mxu0 0.0
    %4438 = vmatpush.msra.mxu0 0.0
    %4439 = vmatpush.msra.mxu0 0.0
    %4440 = vmatpush.msra.mxu0 0.0
    %4441 = vmatpush.msra.mxu0 0.0
    %4442 = vmatpush.msra.mxu0 0.0
    %4443 = vmatpush.msra.mxu0 0.0
    %4444 = vmatpush.msra.mxu0 0.0
    %4445 = vmatpush.msra.mxu0 0.0
    %4446 = vmatpush.msra.mxu0 0.0
    %4447 = vmatpush.msra.mxu0 %v4342
    %4448 = vmatpush.msra.mxu0 %v4339
    %4449 = vmatmul.f32.gmra.mxu0 %v4431
    %v4450 = vpop.f32.mrf.mxu0
    %v4451 = vadd.f32 0.0, %v4450
    %4452 = vdwg.mxu0
    %v4454 = vsel %vm243, %v4429, 0
    %4456 = vmatpush.msra.mxu0 0.0
    %4457 = vmatpush.msra.mxu0 0.0
    %4458 = vmatpush.msra.mxu0 0.0
    %4459 = vmatpush.msra.mxu0 0.0
    %4460 = vmatpush.msra.mxu0 0.0
    %4461 = vmatpush.msra.mxu0 0.0
    %4462 = vmatpush.msra.mxu0 0.0
    %4463 = vmatpush.msra.mxu0 0.0
    %4464 = vmatpush.msra.mxu0 0.0
    %4465 = vmatpush.msra.mxu0 0.0
    %4466 = vmatpush.msra.mxu0 0.0
    %4467 = vmatpush.msra.mxu0 0.0
    %4468 = vmatpush.msra.mxu0 0.0
    %4469 = vmatpush.msra.mxu0 0.0
    %4470 = vmatpush.msra.mxu0 %v4348
    %4471 = vmatpush.msra.mxu0 %v4345
    %4472 = vmatmul.f32.gmra.mxu0 %v4454
    %v4473 = vpop.f32.mrf.mxu0
    %v4474 = vadd.f32 0.0, %v4473
    %4475 = vdwg.mxu0
    %v4477 = vsel %vm184, %v4451, 0
    %v4480 = vsel %vm184, %v4474, 0
    %4482 = vmatpush.msra.mxu0 0.0
    %4483 = vmatpush.msra.mxu0 0.0
    %4484 = vmatpush.msra.mxu0 0.0
    %4485 = vmatpush.msra.mxu0 0.0
    %4486 = vmatpush.msra.mxu0 0.0
    %4487 = vmatpush.msra.mxu0 0.0
    %4488 = vmatpush.msra.mxu0 0.0
    %4489 = vmatpush.msra.mxu0 0.0
    %4490 = vmatpush.msra.mxu0 0.0
    %4491 = vmatpush.msra.mxu0 0.0
    %4492 = vmatpush.msra.mxu0 0.0
    %4493 = vmatpush.msra.mxu0 0.0
    %4494 = vmatpush.msra.mxu0 0.0
    %4495 = vmatpush.msra.mxu0 0.0
    %4496 = vmatpush.msra.mxu0 0.0
    %4497 = vmatpush.msra.mxu0 %v4257
    %4498 = vmatmul.f32.gmra.mxu0 %v4477
    %v4499 = vpop.f32.mrf.mxu0
    %v4500 = vadd.f32 0.0, %v4499
    %4501 = vmatmul.f32.gmra.mxu0 %v4480
    %v4502 = vpop.f32.mrf.mxu0
    %v4503 = vadd.f32 0.0, %v4502
    %4504 = vdwg.mxu0
    %v4505 = vadd.f32 %v4252, %v4500
    %v4506 = vadd.f32 %v4253, %v4503
    %v4507 = vld [vmem:[#allocation2 + $0x2db] sm:$0x1]
    %v4508 = vperm.slane %v4507, 0
    %v4509 = vadd.f32 %v4505, %v4508
    %v4510 = vadd.f32 %v4506, %v4508
    %v4511 = vadd.f32 %v3489, %v4509
    %v4512 = vadd.f32 %v3490, %v4510
    %v4513 = vld [vmem:[#allocation2 + $0x2e0] sm:$0x1]
    %v4514 = vld [vmem:[#allocation2 + $0x2e1] sm:$0x1]
    %v4515 = vsel %vm63, %v4511, 0.0
    %4516 = vadd.xlane.f32.xlu0 %v4515
    %v4517 = vpop.xlane.xlu0 %4516
    %v4518 = vsel %vm63, %v4512, 0.0
    %4519 = vadd.xlane.f32.xlu0 %v4518
    %v4520 = vpop.xlane.xlu0 %4519
    %v4521 = vmul.f32 %v4517, %v1130
    %v4522 = vmul.f32 %v4520, %v1130
    %v4523 = vsub.f32 %v4511, %v4521
    %v4524 = vsub.f32 %v4512, %v4522
    %v4525 = vmul.f32 %v4523, %v4523
    %v4526 = vmul.f32 %v4524, %v4524
    %v4527 = vsel %vm63, %v4525, 0.0
    %4528 = vadd.xlane.f32.xlu0 %v4527
    %v4529 = vpop.xlane.xlu0 %4528
    %v4530 = vsel %vm63, %v4526, 0.0
    %4531 = vadd.xlane.f32.xlu0 %v4530
    %v4532 = vpop.xlane.xlu0 %4531
    %v4533 = vmul.f32 %v4529, %v1130
    %v4534 = vmul.f32 %v4532, %v1130
    %v4535 = vadd.f32 %v4533, 1e-05
    %v4536 = vadd.f32 %v4534, 1e-05
    %v4537 = vrsqrt.pop %v4535
    %v4538 = vmul.f32 %v4537, %v4535
    %v4539 = vmul.f32 %v4538, %v4537
    %v4540 = vmul.f32 0.5, %v4539
    %v4541 = vsub.f32 1.5, %v4540
    %v4542 = vmul.f32 %v4537, %v4541
    %vm4543 = vweird.f32 %v4535
    %vm4544 = vweird.f32 %v4537
    %vm4545 = vmor %vm4543, %vm4544
    %v4546 = vsel %vm4545, %v4537, %v4542
    %v4547 = vrsqrt.pop %v4536
    %v4548 = vmul.f32 %v4547, %v4536
    %v4549 = vmul.f32 %v4548, %v4547
    %v4550 = vmul.f32 0.5, %v4549
    %v4551 = vsub.f32 1.5, %v4550
    %v4552 = vmul.f32 %v4547, %v4551
    %vm4553 = vweird.f32 %v4536
    %vm4554 = vweird.f32 %v4547
    %vm4555 = vmor %vm4553, %vm4554
    %v4556 = vsel %vm4555, %v4547, %v4552
    %v4557 = vmul.f32 %v4523, %v4546
    %v4558 = vmul.f32 %v4524, %v4556
    %v4559 = vperm.slane %v4513, 0
    %v4560 = vmul.f32 %v4557, %v4559
    %v4561 = vmul.f32 %v4558, %v4559
    %v4562 = vperm.slane %v4514, 0
    %v4563 = vadd.f32 %v4560, %v4562
    %v4564 = vadd.f32 %v4561, %v4562
    %v4565 = vld [vmem:[#allocation2 + $0x260] sm:$0xff]
    %v4566 = vld [vmem:[#allocation2 + $0x268] sm:$0xff]
    %v4567 = vld [vmem:[#allocation2 + $0x270] sm:$0xff]
    %v4568 = vld [vmem:[#allocation2 + $0x278] sm:$0xff]
    %v4569 = vld [vmem:[#allocation2 + $0x2dc] sm:$0x1]
    %v4570 = vperm.slane %v4569, 0
    %v4572 = vsel %vm63, %v4563, 0
    %v4575 = vsel %vm63, %v4564, 0
    %4577 = vmatpush.msra.mxu0 0.0
    %4578 = vmatpush.msra.mxu0 0.0
    %4579 = vmatpush.msra.mxu0 0.0
    %4580 = vmatpush.msra.mxu0 0.0
    %4581 = vmatpush.msra.mxu0 0.0
    %4582 = vmatpush.msra.mxu0 0.0
    %4583 = vmatpush.msra.mxu0 0.0
    %4584 = vmatpush.msra.mxu0 0.0
    %4585 = vmatpush.msra.mxu0 0.0
    %4586 = vmatpush.msra.mxu0 0.0
    %4587 = vmatpush.msra.mxu0 0.0
    %4588 = vmatpush.msra.mxu0 0.0
    %4589 = vmatpush.msra.mxu0 %v4568
    %4590 = vmatpush.msra.mxu0 %v4567
    %4591 = vmatpush.msra.mxu0 %v4566
    %4592 = vmatpush.msra.mxu0 %v4565
    %4593 = vmatmul.f32.gmra.mxu0 %v4572
    %v4594 = vpop.f32.mrf.mxu0
    %v4595 = vadd.f32 %v4570, %v4594
    %4596 = vmatmul.f32.gmra.mxu0 %v4575
    %v4597 = vpop.f32.mrf.mxu0
    %v4598 = vadd.f32 %v4570, %v4597
    %4599 = vdwg.mxu0
    %v4600 = vmax.f32 %v4595, 0.0
    %v4601 = vmax.f32 %v4598, 0.0
    %v4602 = vld [vmem:[#allocation2 + $0x280] sm:$0xff]
    %v4603 = vld [vmem:[#allocation2 + $0x288] sm:$0xff]
    %v4604 = vld [vmem:[#allocation2 + $0x290] sm:$0xff]
    %v4605 = vld [vmem:[#allocation2 + $0x298] sm:$0xff]
    %v4606 = vld [vmem:[#allocation2 + $0x2a0] sm:$0xff]
    %v4607 = vld [vmem:[#allocation2 + $0x2a8] sm:$0xff]
    %v4608 = vld [vmem:[#allocation2 + $0x2b0] sm:$0xff]
    %v4609 = vld [vmem:[#allocation2 + $0x2b8] sm:$0xff]
    %v4610 = vld [vmem:[#allocation2 + $0x2dd] sm:$0x1]
    %v4611 = vperm.slane %v4610, 0
    %v4613 = vsel %vm2320, %v4600, 0
    %v4616 = vsel %vm2320, %v4601, 0
    %4618 = vmatpush.msra.mxu0 0.0
    %4619 = vmatpush.msra.mxu0 0.0
    %4620 = vmatpush.msra.mxu0 0.0
    %4621 = vmatpush.msra.mxu0 0.0
    %4622 = vmatpush.msra.mxu0 0.0
    %4623 = vmatpush.msra.mxu0 0.0
    %4624 = vmatpush.msra.mxu0 0.0
    %4625 = vmatpush.msra.mxu0 0.0
    %4626 = vmatpush.msra.mxu0 %v4609
    %4627 = vmatpush.msra.mxu0 %v4608
    %4628 = vmatpush.msra.mxu0 %v4607
    %4629 = vmatpush.msra.mxu0 %v4606
    %4630 = vmatpush.msra.mxu0 %v4605
    %4631 = vmatpush.msra.mxu0 %v4604
    %4632 = vmatpush.msra.mxu0 %v4603
    %4633 = vmatpush.msra.mxu0 %v4602
    %4634 = vmatmul.f32.gmra.mxu0 %v4613
    %v4635 = vpop.f32.mrf.mxu0
    %v4636 = vadd.f32 %v4611, %v4635
    %4637 = vmatmul.f32.gmra.mxu0 %v4616
    %v4638 = vpop.f32.mrf.mxu0
    %v4639 = vadd.f32 %v4611, %v4638
    %4640 = vdwg.mxu0
    %v4641 = vadd.f32 %v4563, %v4636
    %v4642 = vadd.f32 %v4564, %v4639
    %v4643 = vld [vmem:[#allocation2 + $0x2e2] sm:$0x1]
    %v4644 = vld [vmem:[#allocation2 + $0x2e3] sm:$0x1]
    %v4645 = vsel %vm63, %v4641, 0.0
    %4646 = vadd.xlane.f32.xlu0 %v4645
    %v4647 = vpop.xlane.xlu0 %4646
    %v4648 = vsel %vm63, %v4642, 0.0
    %4649 = vadd.xlane.f32.xlu0 %v4648
    %v4650 = vpop.xlane.xlu0 %4649
    %v4651 = vmul.f32 %v4647, %v1130
    %v4652 = vmul.f32 %v4650, %v1130
    %v4653 = vsub.f32 %v4641, %v4651
    %v4654 = vsub.f32 %v4642, %v4652
    %v4655 = vmul.f32 %v4653, %v4653
    %v4656 = vmul.f32 %v4654, %v4654
    %v4657 = vsel %vm63, %v4655, 0.0
    %4658 = vadd.xlane.f32.xlu0 %v4657
    %v4659 = vpop.xlane.xlu0 %4658
    %v4660 = vsel %vm63, %v4656, 0.0
    %4661 = vadd.xlane.f32.xlu0 %v4660
    %v4662 = vpop.xlane.xlu0 %4661
    %v4663 = vmul.f32 %v4659, %v1130
    %v4664 = vmul.f32 %v4662, %v1130
    %v4665 = vadd.f32 %v4663, 1e-05
    %v4666 = vadd.f32 %v4664, 1e-05
    %v4667 = vrsqrt.pop %v4665
    %v4668 = vmul.f32 %v4667, %v4665
    %v4669 = vmul.f32 %v4668, %v4667
    %v4670 = vmul.f32 0.5, %v4669
    %v4671 = vsub.f32 1.5, %v4670
    %v4672 = vmul.f32 %v4667, %v4671
    %vm4673 = vweird.f32 %v4665
    %vm4674 = vweird.f32 %v4667
    %vm4675 = vmor %vm4673, %vm4674
    %v4676 = vsel %vm4675, %v4667, %v4672
    %v4677 = vrsqrt.pop %v4666
    %v4678 = vmul.f32 %v4677, %v4666
    %v4679 = vmul.f32 %v4678, %v4677
    %v4680 = vmul.f32 0.5, %v4679
    %v4681 = vsub.f32 1.5, %v4680
    %v4682 = vmul.f32 %v4677, %v4681
    %vm4683 = vweird.f32 %v4666
    %vm4684 = vweird.f32 %v4677
    %vm4685 = vmor %vm4683, %vm4684
    %v4686 = vsel %vm4685, %v4677, %v4682
    %v4687 = vmul.f32 %v4653, %v4676
    %v4688 = vmul.f32 %v4654, %v4686
    %v4689 = vperm.slane %v4643, 0
    %v4690 = vmul.f32 %v4687, %v4689
    %v4691 = vmul.f32 %v4688, %v4689
    %v4692 = vperm.slane %v4644, 0
    %v4693 = vadd.f32 %v4690, %v4692
    %v4694 = vadd.f32 %v4691, %v4692
    %v4695 = vld [vmem:[#allocation2 + $0x2e4] sm:$0x1]
    %v4696 = vld [vmem:[#allocation2 + $0x2e5] sm:$0x1]
    %v4697 = vsel %vm63, %v4693, 0.0
    %4698 = vadd.xlane.f32.xlu0 %v4697
    %v4699 = vpop.xlane.xlu0 %4698
    %v4700 = vsel %vm63, %v4694, 0.0
    %4701 = vadd.xlane.f32.xlu0 %v4700
    %v4702 = vpop.xlane.xlu0 %4701
    %v4703 = vmul.f32 %v4699, %v1130
    %v4704 = vmul.f32 %v4702, %v1130
    %v4705 = vsub.f32 %v4693, %v4703
    %v4706 = vsub.f32 %v4694, %v4704
    %v4707 = vmul.f32 %v4705, %v4705
    %v4708 = vmul.f32 %v4706, %v4706
    %v4709 = vsel %vm63, %v4707, 0.0
    %4710 = vadd.xlane.f32.xlu0 %v4709
    %v4711 = vpop.xlane.xlu0 %4710
    %v4712 = vsel %vm63, %v4708, 0.0
    %4713 = vadd.xlane.f32.xlu0 %v4712
    %v4714 = vpop.xlane.xlu0 %4713
    %v4715 = vmul.f32 %v4711, %v1130
    %v4716 = vmul.f32 %v4714, %v1130
    %v4717 = vadd.f32 %v4715, 1e-05
    %v4718 = vadd.f32 %v4716, 1e-05
    %v4719 = vrsqrt.pop %v4717
    %v4720 = vmul.f32 %v4719, %v4717
    %v4721 = vmul.f32 %v4720, %v4719
    %v4722 = vmul.f32 0.5, %v4721
    %v4723 = vsub.f32 1.5, %v4722
    %v4724 = vmul.f32 %v4719, %v4723
    %vm4725 = vweird.f32 %v4717
    %vm4726 = vweird.f32 %v4719
    %vm4727 = vmor %vm4725, %vm4726
    %v4728 = vsel %vm4727, %v4719, %v4724
    %v4729 = vrsqrt.pop %v4718
    %v4730 = vmul.f32 %v4729, %v4718
    %v4731 = vmul.f32 %v4730, %v4729
    %v4732 = vmul.f32 0.5, %v4731
    %v4733 = vsub.f32 1.5, %v4732
    %v4734 = vmul.f32 %v4729, %v4733
    %vm4735 = vweird.f32 %v4718
    %vm4736 = vweird.f32 %v4729
    %vm4737 = vmor %vm4735, %vm4736
    %v4738 = vsel %vm4737, %v4729, %v4734
    %v4739 = vmul.f32 %v4705, %v4728
    %v4740 = vmul.f32 %v4706, %v4738
    %v4741 = vperm.slane %v4695, 0
    %v4742 = vmul.f32 %v4739, %v4741
    %v4743 = vmul.f32 %v4740, %v4741
    %v4744 = vperm.slane %v4696, 0
    %v4745 = vadd.f32 %v4742, %v4744
    %v4746 = vadd.f32 %v4743, %v4744
    %4747 = vst.msk [vmem:[#allocation5] sm:$0xff] %vm63, %v4745
    %4748 = vst.msk [vmem:[#allocation5 + $0x8] sm:$0xff] %vm63, %v4746
    // Predicated region
    $region14: #{tpu_custom_call.1} parent=1 // pred_check
      _
    $region15: #{tpu_custom_call.1} parent=1 // pred_check_branch
      %4750 = sbr.rel (0) target = $region17
    $region16: #{tpu_custom_call.1} parent=1 // pred_region
      %4752 = vsyncadd [#allocation4], 0
      %s4753 = sshll.u32 [#allocation5], 4
      %s4754 = int_to_ptr.vmem [resolvable:$true] %s4753
      %s4755 = sshll.u32 %s2, 4
      %s4756 = int_to_ptr.hbm [resolvable:$true] %s4755
      %4761 = dma.vmem_to_hbm [thread:$0]  %s4754, 256, %s4756, [#allocation4], 128, 128, 8
    $region17: #{tpu_custom_call.1} parent=1 // pred_fallthru
      _
    // Predicated region
    $region18: #{tpu_custom_call.1} parent=1 // pred_check
      _
    $region19: #{tpu_custom_call.1} parent=1 // pred_check_branch
      %4763 = sbr.rel (0) target = $region21
    $region20: #{tpu_custom_call.1} parent=1 // pred_region
      %4765 = vsyncadd [#allocation7], 0
      %s4766 = sshll.u32 [#allocation6], 4
      %s4767 = int_to_ptr.vmem [resolvable:$true] %s4766
      %s4768 = sshll.u32 %s3, 4
      %s4769 = int_to_ptr.hbm [resolvable:$true] %s4768
      %4774 = dma.vmem_to_hbm [thread:$0]  %s4767, 512, %s4769, [#allocation7], 128, 128, 8
    $region21: #{tpu_custom_call.1} parent=1 // pred_fallthru
      _
    // Predicated region
    $region22: #{tpu_custom_call.1} parent=1 // pred_check
      _
    $region23: #{tpu_custom_call.1} parent=1 // pred_check_branch
      %4776 = sbr.rel (0) target = $region25
    $region24: #{tpu_custom_call.1} parent=1 // pred_region
      %4778 = dma.done [#allocation4], 256
    $region25: #{tpu_custom_call.1} parent=1 // pred_fallthru
      _
    // Predicated region
    $region26: #{tpu_custom_call.1} parent=1 // pred_check
      _
    $region27: #{tpu_custom_call.1} parent=1 // pred_check_branch
      %4780 = sbr.rel (0) target = $region29
    $region28: #{tpu_custom_call.1} parent=1 // pred_region
      %4782 = dma.done [#allocation7], 512
    $region29: #{tpu_custom_call.1} parent=1 // pred_fallthru
      _
    %4783 = vsyncpa [#allocation3], 1
    %4784 = vsyncpa [#allocation4], 1
    %4785 = vsyncpa [#allocation7], 1

</llo_original>
